<compile_context>
chip_gen: v7x
topology: tpu7x:2x2x1
jax: 0.10.0
libtpu: 0.0.40
codegen_flags: <defaults>
</compile_context>

<pallas_src>
import functools

import jax
import jax.numpy as jnp
from jax import lax
from jax.experimental import pallas as pl
from jax.experimental.pallas import tpu as pltpu


def resblock2_kernel(x_ref, w1_ref, b1_ref, w2_ref, b2_ref, w3_ref, b3_ref,
                     out_ref, pad_ref, patch_ref, *, res_scale, H, W, K):
    # x_ref:     (1, H*W, 2C)        one batch element, channel-minor
    # w1_ref:    (2C, C)             1x1 conv weight, (Cin, Cout)
    # w2_ref:    (K*K*C, C)          3x3 conv weight, im2col-flattened
    # w3_ref:    (K*K*C, C)
    # b*_ref:    (1, C)              f32 biases
    # out_ref:   (1, H*W, C)
    # pad_ref:   (H+2P, W+2P, C)     zero-haloed activation scratch
    # patch_ref: (H*W, K*K*C)        im2col patch slab scratch
    C = w1_ref.shape[1]
    P = (K - 1) // 2
    cdt = pad_ref.dtype

    # Zero only the halo strips (cheap), every step -> no cross-iteration
    # scratch state, safe under "parallel" grid sharding across TensorCores.
    # Invariant: the border of pad_ref is zero whenever a tap window is read.
    pad_ref[pl.ds(0, P), :, :] = jnp.zeros((P, W + 2 * P, C), cdt)
    pad_ref[pl.ds(H + P, P), :, :] = jnp.zeros((P, W + 2 * P, C), cdt)
    pad_ref[:, pl.ds(0, P), :] = jnp.zeros((H + 2 * P, P, C), cdt)
    pad_ref[:, pl.ds(W + P, P), :] = jnp.zeros((H + 2 * P, P, C), cdt)

    x = x_ref[0]                                            # (H*W, 2C)

    # ---- 1x1 conv: ori = x @ w1 + b1 (single MXU matmul, f32 accumulate) ----
    ori = jnp.dot(x, w1_ref[...],
                  preferred_element_type=jnp.float32) + b1_ref[...]

    def conv_kxk(act_f32, w_ref):
        """'same' KxK conv as ONE im2col matmul (contraction depth K*K*C)."""
        # Write the activation into the interior of the zero-haloed scratch.
        pad_ref[pl.ds(P, H), pl.ds(P, W), :] = (
            act_f32.astype(cdt).reshape(H, W, C))
        # Build the (H*W, K*K*C) patch slab: one shifted window per tap,
        # packed into its C-wide column (static lane offsets).
        for t in range(K * K):
            dy, dx = t // K, t % K
            patch_ref[:, pl.ds(t * C, C)] = (
                pad_ref[pl.ds(dy, H), pl.ds(dx, W), :].reshape(H * W, C))
        # Single fused matmul instead of K*K tiny C-deep matmuls.
        return jnp.dot(patch_ref[...], w_ref[...],
                       preferred_element_type=jnp.float32)

    # ---- body: conv3x3 -> ReLU -> conv3x3 ----
    t1 = jnp.maximum(conv_kxk(ori, w2_ref) + b2_ref[...], 0.0)
    r = conv_kxk(t1, w3_ref) + b3_ref[...]

    # ---- residual: res * res_scale + ori ----
    out_ref[0] = (r * res_scale + ori).astype(out_ref.dtype)


def resblock2_pallas(x_nchw, w1, b1, w2, b2, w3, b3, res_scale=1.0,
                     compute_dtype=jnp.float32):
    """x_nchw: (N, 2C, H, W); w1: (C, 2C, 1, 1); w2, w3: (C, C, K, K) OIHW.

    compute_dtype=jnp.bfloat16 is recommended on v6e/v7x (matmul operands in
    bf16, f32 accumulation); default f32 matches the PyTorch/f32 reference.
    """
    N, Cin, H, W = x_nchw.shape
    C = w1.shape[0]
    K = w2.shape[2]
    assert Cin == 2 * C and K % 2 == 1
    P = (K - 1) // 2

    # NCHW -> (N, H*W, 2C). Channel-minor is the matmul operand layout.
    # TODO(synk): in an NHWC end-to-end model these transposes disappear.
    x = jnp.transpose(x_nchw, (0, 2, 3, 1)).reshape(N, H * W, Cin)
    x = x.astype(compute_dtype)

    # OIHW -> (Cin, Cout) for the 1x1 conv.
    w1f = jnp.transpose(w1, (2, 3, 1, 0)).reshape(Cin, C).astype(compute_dtype)
    # OIHW -> (KH, KW, Cin, Cout) -> (K*K*Cin, Cout), tap-major / ci-minor,
    # matching the im2col patch-slab column order built in the kernel.
    w2f = jnp.transpose(w2, (2, 3, 1, 0)).reshape(K * K * C, C).astype(compute_dtype)
    w3f = jnp.transpose(w3, (2, 3, 1, 0)).reshape(K * K * C, C).astype(compute_dtype)
    b1r = b1.reshape(1, C).astype(jnp.float32)
    b2r = b2.reshape(1, C).astype(jnp.float32)
    b3r = b3.reshape(1, C).astype(jnp.float32)

    kernel = functools.partial(resblock2_kernel, res_scale=float(res_scale),
                               H=H, W=W, K=K)

    itemsize = jnp.dtype(compute_dtype).itemsize
    flops = int(N * (2 * H * W * Cin * C + 2 * (2 * H * W * (K * K * C) * C)))
    bytes_accessed = int(N * H * W * Cin * itemsize            # x
                         + N * H * W * C * 4                   # out (f32)
                         + (Cin * C + 2 * K * K * C * C) * itemsize
                         + 3 * C * 4)                          # biases

    out = pl.pallas_call(
        kernel,
        out_shape=jax.ShapeDtypeStruct((N, H * W, C), jnp.float32),
        grid=(N,),
        in_specs=[
            pl.BlockSpec((1, H * W, Cin), lambda n: (n, 0, 0)),
            pl.BlockSpec((Cin, C), lambda n: (0, 0)),
            pl.BlockSpec((1, C), lambda n: (0, 0)),
            pl.BlockSpec((K * K * C, C), lambda n: (0, 0)),
            pl.BlockSpec((1, C), lambda n: (0, 0)),
            pl.BlockSpec((K * K * C, C), lambda n: (0, 0)),
            pl.BlockSpec((1, C), lambda n: (0, 0)),
        ],
        out_specs=pl.BlockSpec((1, H * W, C), lambda n: (n, 0, 0)),
        scratch_shapes=[
            pltpu.VMEM((H + 2 * P, W + 2 * P, C), compute_dtype),  # pad halo
            pltpu.VMEM((H * W, K * K * C), compute_dtype),         # im2col slab
        ],
        compiler_params=pltpu.CompilerParams(
            dimension_semantics=("parallel",),      # batch elems independent
            vmem_limit_bytes=64 * 1024 * 1024),
        cost_estimate=pl.CostEstimate(flops=flops, transcendentals=0,
                                      bytes_accessed=bytes_accessed),
    )(x, w1f, b1r, w2f, b2r, w3f, b3r)

    out = out.reshape(N, H, W, C)
    return jnp.transpose(out, (0, 3, 1, 2))                    # NHWC -> NCHW


def resblock2_reference(x, w1, b1, w2, b2, w3, b3, res_scale=1.0):
    """Pure-JAX reference in NCHW / OIHW, mirroring the PyTorch forward."""
    dn = ("NCHW", "OIHW", "NCHW")

    def conv(inp, w, b, pad):
        y = lax.conv_general_dilated(inp, w, (1, 1), [(pad, pad), (pad, pad)],
                                     dimension_numbers=dn)
        return y + b.reshape(1, -1, 1, 1)

    ori = conv(x, w1, b1, 0)
    t = jnp.maximum(conv(ori, w2, b2, 1), 0.0)
    r = conv(t, w3, b3, 1)
    return r * res_scale + ori


if __name__ == "__main__":
    # Small shapes consistent with the module: n_feat=4 -> input has 8 channels.
    N, n_feat, H, W, ksz = 2, 4, 16, 16, 3
    res_scale = 1.0

    key = jax.random.PRNGKey(0)
    kx, k1, k2, k3, kb1, kb2, kb3 = jax.random.split(key, 7)

    x = jax.random.normal(kx, (N, 2 * n_feat, H, W), dtype=jnp.float32)

    # Deterministic synthetic parameters (OIHW, like nn.Conv2d.weight).
    w1 = 0.1 * jax.random.normal(k1, (n_feat, 2 * n_feat, 1, 1), jnp.float32)
    b1 = 0.1 * jax.random.normal(kb1, (n_feat,), jnp.float32)
    w2 = 0.1 * jax.random.normal(k2, (n_feat, n_feat, ksz, ksz), jnp.float32)
    b2 = 0.1 * jax.random.normal(kb2, (n_feat,), jnp.float32)
    w3 = 0.1 * jax.random.normal(k3, (n_feat, n_feat, ksz, ksz), jnp.float32)
    b3 = 0.1 * jax.random.normal(kb3, (n_feat,), jnp.float32)

    out = resblock2_pallas(x, w1, b1, w2, b2, w3, b3, res_scale)
    out = jax.block_until_ready(out)

    ref = resblock2_reference(x, w1, b1, w2, b2, w3, b3, res_scale)
    assert out.shape == (N, n_feat, H, W)
    assert jnp.allclose(out, ref, atol=1e-4, rtol=1e-4), (
        float(jnp.max(jnp.abs(out - ref))))

    print("KERNEL_OK")
</pallas_src>

<mosaic_0001>
module attributes {stable_mosaic.version = 11 : i64} {
  func.func @resblock2_kernel(%arg0: i32, %arg1: memref<1x256x8xf32, #tpu.memory_space<vmem>>, %arg2: memref<8x4xf32, #tpu.memory_space<vmem>>, %arg3: memref<1x4xf32, #tpu.memory_space<vmem>>, %arg4: memref<36x4xf32, #tpu.memory_space<vmem>>, %arg5: memref<1x4xf32, #tpu.memory_space<vmem>>, %arg6: memref<36x4xf32, #tpu.memory_space<vmem>>, %arg7: memref<1x4xf32, #tpu.memory_space<vmem>>, %arg8: memref<1x256x4xf32, #tpu.memory_space<vmem>>, %arg9: memref<18x18x4xf32, #tpu.memory_space<vmem>>, %arg10: memref<256x36xf32, #tpu.memory_space<vmem>>) attributes {dimension_semantics = [#tpu.dimension_semantics<parallel>], iteration_bounds = array<i64: 2>, scalar_prefetch = 0 : i64, scratch_operands = 2 : i64, tpu.core_type = #tpu.core_type<tc>, window_params = [{transform_indices = @transform_0, window_bounds = array<i64: 1, 256, 8>}, {pipeline_mode = #tpu.pipeline_mode<synchronous>, transform_indices = @transform_1, window_bounds = array<i64: 8, 4>}, {pipeline_mode = #tpu.pipeline_mode<synchronous>, transform_indices = @transform_2, window_bounds = array<i64: 1, 4>}, {pipeline_mode = #tpu.pipeline_mode<synchronous>, transform_indices = @transform_3, window_bounds = array<i64: 36, 4>}, {pipeline_mode = #tpu.pipeline_mode<synchronous>, transform_indices = @transform_4, window_bounds = array<i64: 1, 4>}, {pipeline_mode = #tpu.pipeline_mode<synchronous>, transform_indices = @transform_5, window_bounds = array<i64: 36, 4>}, {pipeline_mode = #tpu.pipeline_mode<synchronous>, transform_indices = @transform_6, window_bounds = array<i64: 1, 4>}, {transform_indices = @transform_7, window_bounds = array<i64: 1, 256, 4>}]} {
    %cst = arith.constant 0.000000e+00 : f32
    %0 = vector.broadcast %cst : f32 to vector<1x18x4xf32>
    %c0 = arith.constant 0 : index
    %c0_0 = arith.constant 0 : index
    %c0_1 = arith.constant 0 : index
    %1 = vector.load %arg9[%c0, %c0_0, %c0_1] : memref<18x18x4xf32, #tpu.memory_space<vmem>>, vector<1x18x4xf32>
    tpu.vector_store %arg9[%c0, %c0_0, %c0_1], %0 {strides = array<i32>} : memref<18x18x4xf32, #tpu.memory_space<vmem>>, vector<1x18x4xf32>,
    %cst_2 = arith.constant 0.000000e+00 : f32
    %2 = vector.broadcast %cst_2 : f32 to vector<1x18x4xf32>
    %c17 = arith.constant 17 : index
    %c0_3 = arith.constant 0 : index
    %c0_4 = arith.constant 0 : index
    %3 = vector.load %arg9[%c17, %c0_3, %c0_4] : memref<18x18x4xf32, #tpu.memory_space<vmem>>, vector<1x18x4xf32>
    tpu.vector_store %arg9[%c17, %c0_3, %c0_4], %2 {strides = array<i32>} : memref<18x18x4xf32, #tpu.memory_space<vmem>>, vector<1x18x4xf32>,
    %cst_5 = arith.constant 0.000000e+00 : f32
    %4 = vector.broadcast %cst_5 : f32 to vector<18x1x4xf32>
    %c0_6 = arith.constant 0 : index
    %c0_7 = arith.constant 0 : index
    %c0_8 = arith.constant 0 : index
    %5 = vector.load %arg9[%c0_6, %c0_7, %c0_8] : memref<18x18x4xf32, #tpu.memory_space<vmem>>, vector<18x1x4xf32>
    tpu.vector_store %arg9[%c0_6, %c0_7, %c0_8], %4 {strides = array<i32>} : memref<18x18x4xf32, #tpu.memory_space<vmem>>, vector<18x1x4xf32>,
    %cst_9 = arith.constant 0.000000e+00 : f32
    %6 = vector.broadcast %cst_9 : f32 to vector<18x1x4xf32>
    %c0_10 = arith.constant 0 : index
    %c17_11 = arith.constant 17 : index
    %c0_12 = arith.constant 0 : index
    %7 = vector.load %arg9[%c0_10, %c17_11, %c0_12] : memref<18x18x4xf32, #tpu.memory_space<vmem>>, vector<18x1x4xf32>
    tpu.vector_store %arg9[%c0_10, %c17_11, %c0_12], %6 {strides = array<i32>} : memref<18x18x4xf32, #tpu.memory_space<vmem>>, vector<18x1x4xf32>,
    %c0_13 = arith.constant 0 : index
    %c0_14 = arith.constant 0 : index
    %c0_15 = arith.constant 0 : index
    %8 = vector.load %arg1[%c0_13, %c0_14, %c0_15] : memref<1x256x8xf32, #tpu.memory_space<vmem>>, vector<1x256x8xf32>
    %9 = vector.shape_cast %8 : vector<1x256x8xf32> to vector<256x8xf32>
    %c0_16 = arith.constant 0 : index
    %c0_17 = arith.constant 0 : index
    %10 = vector.load %arg2[%c0_16, %c0_17] : memref<8x4xf32, #tpu.memory_space<vmem>>, vector<8x4xf32>
    %cst_18 = arith.constant dense<0.000000e+00> : vector<256x4xf32>
    %11 = tpu.matmul %9, %10, %cst_18 {dimension_numbers = #tpu.dot_dimension_numbers<[1], [0], [0], [1], [0, 0, 1, 1], [], []>} : vector<256x8xf32>, vector<8x4xf32>, vector<256x4xf32> -> vector<256x4xf32>
    %c0_19 = arith.constant 0 : index
    %c0_20 = arith.constant 0 : index
    %12 = vector.load %arg3[%c0_19, %c0_20] : memref<1x4xf32, #tpu.memory_space<vmem>>, vector<1x4xf32>
    %13 = vector.broadcast %12 : vector<1x4xf32> to vector<256x4xf32>
    %14 = arith.addf %11, %13 : vector<256x4xf32>
    %15 = vector.shape_cast %14 : vector<256x4xf32> to vector<16x16x4xf32>
    %c1 = arith.constant 1 : index
    %c1_21 = arith.constant 1 : index
    %c0_22 = arith.constant 0 : index
    %16 = vector.load %arg9[%c1, %c1_21, %c0_22] : memref<18x18x4xf32, #tpu.memory_space<vmem>>, vector<16x16x4xf32>
    tpu.vector_store %arg9[%c1, %c1_21, %c0_22], %15 {strides = array<i32>} : memref<18x18x4xf32, #tpu.memory_space<vmem>>, vector<16x16x4xf32>,
    %c0_23 = arith.constant 0 : index
    %c0_24 = arith.constant 0 : index
    %c0_25 = arith.constant 0 : index
    %17 = vector.load %arg9[%c0_23, %c0_24, %c0_25] : memref<18x18x4xf32, #tpu.memory_space<vmem>>, vector<16x16x4xf32>
    %18 = vector.shape_cast %17 : vector<16x16x4xf32> to vector<256x4xf32>
    %c0_26 = arith.constant 0 : index
    %c0_27 = arith.constant 0 : index
    %19 = vector.load %arg10[%c0_26, %c0_27] : memref<256x36xf32, #tpu.memory_space<vmem>>, vector<256x4xf32>
    tpu.vector_store %arg10[%c0_26, %c0_27], %18 {strides = array<i32>} : memref<256x36xf32, #tpu.memory_space<vmem>>, vector<256x4xf32>,
    %c0_28 = arith.constant 0 : index
    %c1_29 = arith.constant 1 : index
    %c0_30 = arith.constant 0 : index
    %20 = vector.load %arg9[%c0_28, %c1_29, %c0_30] : memref<18x18x4xf32, #tpu.memory_space<vmem>>, vector<16x16x4xf32>
    %21 = vector.shape_cast %20 : vector<16x16x4xf32> to vector<256x4xf32>
    %c0_31 = arith.constant 0 : index
    %c4 = arith.constant 4 : index
    %22 = vector.load %arg10[%c0_31, %c4] : memref<256x36xf32, #tpu.memory_space<vmem>>, vector<256x4xf32>
    tpu.vector_store %arg10[%c0_31, %c4], %21 {strides = array<i32>} : memref<256x36xf32, #tpu.memory_space<vmem>>, vector<256x4xf32>,
    %c0_32 = arith.constant 0 : index
    %c2 = arith.constant 2 : index
    %c0_33 = arith.constant 0 : index
    %23 = vector.load %arg9[%c0_32, %c2, %c0_33] : memref<18x18x4xf32, #tpu.memory_space<vmem>>, vector<16x16x4xf32>
    %24 = vector.shape_cast %23 : vector<16x16x4xf32> to vector<256x4xf32>
    %c0_34 = arith.constant 0 : index
    %c8 = arith.constant 8 : index
    %25 = vector.load %arg10[%c0_34, %c8] : memref<256x36xf32, #tpu.memory_space<vmem>>, vector<256x4xf32>
    tpu.vector_store %arg10[%c0_34, %c8], %24 {strides = array<i32>} : memref<256x36xf32, #tpu.memory_space<vmem>>, vector<256x4xf32>,
    %c1_35 = arith.constant 1 : index
    %c0_36 = arith.constant 0 : index
    %c0_37 = arith.constant 0 : index
    %26 = vector.load %arg9[%c1_35, %c0_36, %c0_37] : memref<18x18x4xf32, #tpu.memory_space<vmem>>, vector<16x16x4xf32>
    %27 = vector.shape_cast %26 : vector<16x16x4xf32> to vector<256x4xf32>
    %c0_38 = arith.constant 0 : index
    %c12 = arith.constant 12 : index
    %28 = vector.load %arg10[%c0_38, %c12] : memref<256x36xf32, #tpu.memory_space<vmem>>, vector<256x4xf32>
    tpu.vector_store %arg10[%c0_38, %c12], %27 {strides = array<i32>} : memref<256x36xf32, #tpu.memory_space<vmem>>, vector<256x4xf32>,
    %c1_39 = arith.constant 1 : index
    %c1_40 = arith.constant 1 : index
    %c0_41 = arith.constant 0 : index
    %29 = vector.load %arg9[%c1_39, %c1_40, %c0_41] : memref<18x18x4xf32, #tpu.memory_space<vmem>>, vector<16x16x4xf32>
    %30 = vector.shape_cast %29 : vector<16x16x4xf32> to vector<256x4xf32>
    %c0_42 = arith.constant 0 : index
    %c16 = arith.constant 16 : index
    %31 = vector.load %arg10[%c0_42, %c16] : memref<256x36xf32, #tpu.memory_space<vmem>>, vector<256x4xf32>
    tpu.vector_store %arg10[%c0_42, %c16], %30 {strides = array<i32>} : memref<256x36xf32, #tpu.memory_space<vmem>>, vector<256x4xf32>,
    %c1_43 = arith.constant 1 : index
    %c2_44 = arith.constant 2 : index
    %c0_45 = arith.constant 0 : index
    %32 = vector.load %arg9[%c1_43, %c2_44, %c0_45] : memref<18x18x4xf32, #tpu.memory_space<vmem>>, vector<16x16x4xf32>
    %33 = vector.shape_cast %32 : vector<16x16x4xf32> to vector<256x4xf32>
    %c0_46 = arith.constant 0 : index
    %c20 = arith.constant 20 : index
    %34 = vector.load %arg10[%c0_46, %c20] : memref<256x36xf32, #tpu.memory_space<vmem>>, vector<256x4xf32>
    tpu.vector_store %arg10[%c0_46, %c20], %33 {strides = array<i32>} : memref<256x36xf32, #tpu.memory_space<vmem>>, vector<256x4xf32>,
    %c2_47 = arith.constant 2 : index
    %c0_48 = arith.constant 0 : index
    %c0_49 = arith.constant 0 : index
    %35 = vector.load %arg9[%c2_47, %c0_48, %c0_49] : memref<18x18x4xf32, #tpu.memory_space<vmem>>, vector<16x16x4xf32>
    %36 = vector.shape_cast %35 : vector<16x16x4xf32> to vector<256x4xf32>
    %c0_50 = arith.constant 0 : index
    %c24 = arith.constant 24 : index
    %37 = vector.load %arg10[%c0_50, %c24] : memref<256x36xf32, #tpu.memory_space<vmem>>, vector<256x4xf32>
    tpu.vector_store %arg10[%c0_50, %c24], %36 {strides = array<i32>} : memref<256x36xf32, #tpu.memory_space<vmem>>, vector<256x4xf32>,
    %c2_51 = arith.constant 2 : index
    %c1_52 = arith.constant 1 : index
    %c0_53 = arith.constant 0 : index
    %38 = vector.load %arg9[%c2_51, %c1_52, %c0_53] : memref<18x18x4xf32, #tpu.memory_space<vmem>>, vector<16x16x4xf32>
    %39 = vector.shape_cast %38 : vector<16x16x4xf32> to vector<256x4xf32>
    %c0_54 = arith.constant 0 : index
    %c28 = arith.constant 28 : index
    %40 = vector.load %arg10[%c0_54, %c28] : memref<256x36xf32, #tpu.memory_space<vmem>>, vector<256x4xf32>
    tpu.vector_store %arg10[%c0_54, %c28], %39 {strides = array<i32>} : memref<256x36xf32, #tpu.memory_space<vmem>>, vector<256x4xf32>,
    %c2_55 = arith.constant 2 : index
    %c2_56 = arith.constant 2 : index
    %c0_57 = arith.constant 0 : index
    %41 = vector.load %arg9[%c2_55, %c2_56, %c0_57] : memref<18x18x4xf32, #tpu.memory_space<vmem>>, vector<16x16x4xf32>
    %42 = vector.shape_cast %41 : vector<16x16x4xf32> to vector<256x4xf32>
    %c0_58 = arith.constant 0 : index
    %c32 = arith.constant 32 : index
    %43 = vector.load %arg10[%c0_58, %c32] : memref<256x36xf32, #tpu.memory_space<vmem>>, vector<256x4xf32>
    tpu.vector_store %arg10[%c0_58, %c32], %42 {strides = array<i32>} : memref<256x36xf32, #tpu.memory_space<vmem>>, vector<256x4xf32>,
    %c0_59 = arith.constant 0 : index
    %c0_60 = arith.constant 0 : index
    %44 = vector.load %arg10[%c0_59, %c0_60] : memref<256x36xf32, #tpu.memory_space<vmem>>, vector<256x36xf32>
    %c0_61 = arith.constant 0 : index
    %c0_62 = arith.constant 0 : index
    %45 = vector.load %arg4[%c0_61, %c0_62] : memref<36x4xf32, #tpu.memory_space<vmem>>, vector<36x4xf32>
    %cst_63 = arith.constant dense<0.000000e+00> : vector<256x4xf32>
    %46 = tpu.matmul %44, %45, %cst_63 {dimension_numbers = #tpu.dot_dimension_numbers<[1], [0], [0], [1], [0, 0, 1, 1], [], []>} : vector<256x36xf32>, vector<36x4xf32>, vector<256x4xf32> -> vector<256x4xf32>
    %c0_64 = arith.constant 0 : index
    %c0_65 = arith.constant 0 : index
    %47 = vector.load %arg5[%c0_64, %c0_65] : memref<1x4xf32, #tpu.memory_space<vmem>>, vector<1x4xf32>
    %48 = vector.broadcast %47 : vector<1x4xf32> to vector<256x4xf32>
    %49 = arith.addf %46, %48 : vector<256x4xf32>
    %cst_66 = arith.constant 0.000000e+00 : f32
    %50 = vector.broadcast %cst_66 : f32 to vector<256x4xf32>
    %51 = arith.maximumf %49, %50 : vector<256x4xf32>
    %52 = vector.shape_cast %51 : vector<256x4xf32> to vector<16x16x4xf32>
    %c1_67 = arith.constant 1 : index
    %c1_68 = arith.constant 1 : index
    %c0_69 = arith.constant 0 : index
    %53 = vector.load %arg9[%c1_67, %c1_68, %c0_69] : memref<18x18x4xf32, #tpu.memory_space<vmem>>, vector<16x16x4xf32>
    tpu.vector_store %arg9[%c1_67, %c1_68, %c0_69], %52 {strides = array<i32>} : memref<18x18x4xf32, #tpu.memory_space<vmem>>, vector<16x16x4xf32>,
    %c0_70 = arith.constant 0 : index
    %c0_71 = arith.constant 0 : index
    %c0_72 = arith.constant 0 : index
    %54 = vector.load %arg9[%c0_70, %c0_71, %c0_72] : memref<18x18x4xf32, #tpu.memory_space<vmem>>, vector<16x16x4xf32>
    %55 = vector.shape_cast %54 : vector<16x16x4xf32> to vector<256x4xf32>
    %c0_73 = arith.constant 0 : index
    %c0_74 = arith.constant 0 : index
    %56 = vector.load %arg10[%c0_73, %c0_74] : memref<256x36xf32, #tpu.memory_space<vmem>>, vector<256x4xf32>
    tpu.vector_store %arg10[%c0_73, %c0_74], %55 {strides = array<i32>} : memref<256x36xf32, #tpu.memory_space<vmem>>, vector<256x4xf32>,
    %c0_75 = arith.constant 0 : index
    %c1_76 = arith.constant 1 : index
    %c0_77 = arith.constant 0 : index
    %57 = vector.load %arg9[%c0_75, %c1_76, %c0_77] : memref<18x18x4xf32, #tpu.memory_space<vmem>>, vector<16x16x4xf32>
    %58 = vector.shape_cast %57 : vector<16x16x4xf32> to vector<256x4xf32>
    %c0_78 = arith.constant 0 : index
    %c4_79 = arith.constant 4 : index
    %59 = vector.load %arg10[%c0_78, %c4_79] : memref<256x36xf32, #tpu.memory_space<vmem>>, vector<256x4xf32>
    tpu.vector_store %arg10[%c0_78, %c4_79], %58 {strides = array<i32>} : memref<256x36xf32, #tpu.memory_space<vmem>>, vector<256x4xf32>,
    %c0_80 = arith.constant 0 : index
    %c2_81 = arith.constant 2 : index
    %c0_82 = arith.constant 0 : index
    %60 = vector.load %arg9[%c0_80, %c2_81, %c0_82] : memref<18x18x4xf32, #tpu.memory_space<vmem>>, vector<16x16x4xf32>
    %61 = vector.shape_cast %60 : vector<16x16x4xf32> to vector<256x4xf32>
    %c0_83 = arith.constant 0 : index
    %c8_84 = arith.constant 8 : index
    %62 = vector.load %arg10[%c0_83, %c8_84] : memref<256x36xf32, #tpu.memory_space<vmem>>, vector<256x4xf32>
    tpu.vector_store %arg10[%c0_83, %c8_84], %61 {strides = array<i32>} : memref<256x36xf32, #tpu.memory_space<vmem>>, vector<256x4xf32>,
    %c1_85 = arith.constant 1 : index
    %c0_86 = arith.constant 0 : index
    %c0_87 = arith.constant 0 : index
    %63 = vector.load %arg9[%c1_85, %c0_86, %c0_87] : memref<18x18x4xf32, #tpu.memory_space<vmem>>, vector<16x16x4xf32>
    %64 = vector.shape_cast %63 : vector<16x16x4xf32> to vector<256x4xf32>
    %c0_88 = arith.constant 0 : index
    %c12_89 = arith.constant 12 : index
    %65 = vector.load %arg10[%c0_88, %c12_89] : memref<256x36xf32, #tpu.memory_space<vmem>>, vector<256x4xf32>
    tpu.vector_store %arg10[%c0_88, %c12_89], %64 {strides = array<i32>} : memref<256x36xf32, #tpu.memory_space<vmem>>, vector<256x4xf32>,
    %c1_90 = arith.constant 1 : index
    %c1_91 = arith.constant 1 : index
    %c0_92 = arith.constant 0 : index
    %66 = vector.load %arg9[%c1_90, %c1_91, %c0_92] : memref<18x18x4xf32, #tpu.memory_space<vmem>>, vector<16x16x4xf32>
    %67 = vector.shape_cast %66 : vector<16x16x4xf32> to vector<256x4xf32>
    %c0_93 = arith.constant 0 : index
    %c16_94 = arith.constant 16 : index
    %68 = vector.load %arg10[%c0_93, %c16_94] : memref<256x36xf32, #tpu.memory_space<vmem>>, vector<256x4xf32>
    tpu.vector_store %arg10[%c0_93, %c16_94], %67 {strides = array<i32>} : memref<256x36xf32, #tpu.memory_space<vmem>>, vector<256x4xf32>,
    %c1_95 = arith.constant 1 : index
    %c2_96 = arith.constant 2 : index
    %c0_97 = arith.constant 0 : index
    %69 = vector.load %arg9[%c1_95, %c2_96, %c0_97] : memref<18x18x4xf32, #tpu.memory_space<vmem>>, vector<16x16x4xf32>
    %70 = vector.shape_cast %69 : vector<16x16x4xf32> to vector<256x4xf32>
    %c0_98 = arith.constant 0 : index
    %c20_99 = arith.constant 20 : index
    %71 = vector.load %arg10[%c0_98, %c20_99] : memref<256x36xf32, #tpu.memory_space<vmem>>, vector<256x4xf32>
    tpu.vector_store %arg10[%c0_98, %c20_99], %70 {strides = array<i32>} : memref<256x36xf32, #tpu.memory_space<vmem>>, vector<256x4xf32>,
    %c2_100 = arith.constant 2 : index
    %c0_101 = arith.constant 0 : index
    %c0_102 = arith.constant 0 : index
    %72 = vector.load %arg9[%c2_100, %c0_101, %c0_102] : memref<18x18x4xf32, #tpu.memory_space<vmem>>, vector<16x16x4xf32>
    %73 = vector.shape_cast %72 : vector<16x16x4xf32> to vector<256x4xf32>
    %c0_103 = arith.constant 0 : index
    %c24_104 = arith.constant 24 : index
    %74 = vector.load %arg10[%c0_103, %c24_104] : memref<256x36xf32, #tpu.memory_space<vmem>>, vector<256x4xf32>
    tpu.vector_store %arg10[%c0_103, %c24_104], %73 {strides = array<i32>} : memref<256x36xf32, #tpu.memory_space<vmem>>, vector<256x4xf32>,
    %c2_105 = arith.constant 2 : index
    %c1_106 = arith.constant 1 : index
    %c0_107 = arith.constant 0 : index
    %75 = vector.load %arg9[%c2_105, %c1_106, %c0_107] : memref<18x18x4xf32, #tpu.memory_space<vmem>>, vector<16x16x4xf32>
    %76 = vector.shape_cast %75 : vector<16x16x4xf32> to vector<256x4xf32>
    %c0_108 = arith.constant 0 : index
    %c28_109 = arith.constant 28 : index
    %77 = vector.load %arg10[%c0_108, %c28_109] : memref<256x36xf32, #tpu.memory_space<vmem>>, vector<256x4xf32>
    tpu.vector_store %arg10[%c0_108, %c28_109], %76 {strides = array<i32>} : memref<256x36xf32, #tpu.memory_space<vmem>>, vector<256x4xf32>,
    %c2_110 = arith.constant 2 : index
    %c2_111 = arith.constant 2 : index
    %c0_112 = arith.constant 0 : index
    %78 = vector.load %arg9[%c2_110, %c2_111, %c0_112] : memref<18x18x4xf32, #tpu.memory_space<vmem>>, vector<16x16x4xf32>
    %79 = vector.shape_cast %78 : vector<16x16x4xf32> to vector<256x4xf32>
    %c0_113 = arith.constant 0 : index
    %c32_114 = arith.constant 32 : index
    %80 = vector.load %arg10[%c0_113, %c32_114] : memref<256x36xf32, #tpu.memory_space<vmem>>, vector<256x4xf32>
    tpu.vector_store %arg10[%c0_113, %c32_114], %79 {strides = array<i32>} : memref<256x36xf32, #tpu.memory_space<vmem>>, vector<256x4xf32>,
    %c0_115 = arith.constant 0 : index
    %c0_116 = arith.constant 0 : index
    %81 = vector.load %arg10[%c0_115, %c0_116] : memref<256x36xf32, #tpu.memory_space<vmem>>, vector<256x36xf32>
    %c0_117 = arith.constant 0 : index
    %c0_118 = arith.constant 0 : index
    %82 = vector.load %arg6[%c0_117, %c0_118] : memref<36x4xf32, #tpu.memory_space<vmem>>, vector<36x4xf32>
    %cst_119 = arith.constant dense<0.000000e+00> : vector<256x4xf32>
    %83 = tpu.matmul %81, %82, %cst_119 {dimension_numbers = #tpu.dot_dimension_numbers<[1], [0], [0], [1], [0, 0, 1, 1], [], []>} : vector<256x36xf32>, vector<36x4xf32>, vector<256x4xf32> -> vector<256x4xf32>
    %c0_120 = arith.constant 0 : index
    %c0_121 = arith.constant 0 : index
    %84 = vector.load %arg7[%c0_120, %c0_121] : memref<1x4xf32, #tpu.memory_space<vmem>>, vector<1x4xf32>
    %85 = vector.broadcast %84 : vector<1x4xf32> to vector<256x4xf32>
    %86 = arith.addf %83, %85 : vector<256x4xf32>
    %cst_122 = arith.constant 1.000000e+00 : f32
    %87 = vector.broadcast %cst_122 : f32 to vector<256x4xf32>
    %88 = arith.mulf %86, %87 : vector<256x4xf32>
    %89 = arith.addf %88, %14 : vector<256x4xf32>
    %c0_123 = arith.constant 0 : index
    %c0_124 = arith.constant 0 : index
    %c0_125 = arith.constant 0 : index
    %90 = vector.load %arg8[%c0_123, %c0_124, %c0_125] : memref<1x256x4xf32, #tpu.memory_space<vmem>>, vector<1x256x4xf32>
    %91 = vector.shape_cast %90 : vector<1x256x4xf32> to vector<256x4xf32>
    %92 = vector.shape_cast %89 : vector<256x4xf32> to vector<1x256x4xf32>
    tpu.vector_store %arg8[%c0_123, %c0_124, %c0_125], %92 {strides = array<i32>} : memref<1x256x4xf32, #tpu.memory_space<vmem>>, vector<1x256x4xf32>,
    return
  }
  func.func @transform_0(%arg0: i32) -> (i32, i32, i32) {
    %c0_i32 = arith.constant 0 : i32
    %c0_i32_0 = arith.constant 0 : i32
    %c0_i32_1 = arith.constant 0 : i32
    return %arg0, %c0_i32, %c0_i32_0 : i32, i32, i32
  }
  func.func @transform_1(%arg0: i32) -> (i32, i32) {
    %c0_i32 = arith.constant 0 : i32
    %c0_i32_0 = arith.constant 0 : i32
    %c0_i32_1 = arith.constant 0 : i32
    return %c0_i32, %c0_i32_0 : i32, i32
  }
  func.func @transform_2(%arg0: i32) -> (i32, i32) {
    %c0_i32 = arith.constant 0 : i32
    %c0_i32_0 = arith.constant 0 : i32
    %c0_i32_1 = arith.constant 0 : i32
    return %c0_i32, %c0_i32_0 : i32, i32
  }
  func.func @transform_3(%arg0: i32) -> (i32, i32) {
    %c0_i32 = arith.constant 0 : i32
    %c0_i32_0 = arith.constant 0 : i32
    %c0_i32_1 = arith.constant 0 : i32
    return %c0_i32, %c0_i32_0 : i32, i32
  }
  func.func @transform_4(%arg0: i32) -> (i32, i32) {
    %c0_i32 = arith.constant 0 : i32
    %c0_i32_0 = arith.constant 0 : i32
    %c0_i32_1 = arith.constant 0 : i32
    return %c0_i32, %c0_i32_0 : i32, i32
  }
  func.func @transform_5(%arg0: i32) -> (i32, i32) {
    %c0_i32 = arith.constant 0 : i32
    %c0_i32_0 = arith.constant 0 : i32
    %c0_i32_1 = arith.constant 0 : i32
    return %c0_i32, %c0_i32_0 : i32, i32
  }
  func.func @transform_6(%arg0: i32) -> (i32, i32) {
    %c0_i32 = arith.constant 0 : i32
    %c0_i32_0 = arith.constant 0 : i32
    %c0_i32_1 = arith.constant 0 : i32
    return %c0_i32, %c0_i32_0 : i32, i32
  }
  func.func @transform_7(%arg0: i32) -> (i32, i32, i32) {
    %c0_i32 = arith.constant 0 : i32
    %c0_i32_0 = arith.constant 0 : i32
    %c0_i32_1 = arith.constant 0 : i32
    return %arg0, %c0_i32, %c0_i32_0 : i32, i32, i32
  }
}

</mosaic_0001>

<llo_original>
// kernel: tpu_custom_call.1
$region0: #{tpu_custom_call.1}
  #allocation0 [shape = 'u32[]', space=smem, size = 0x4, offset = 0x4, fixed_abs, tag = 'smem constant byte address 0x4 - core index']
  #allocation1 [shape = 'u32[144,128]{1,0:T(1,128)}', space=vmem, size = 0x12000, scoped, tag = 'internal scratch']
  #allocation2 [shape = 'f32[18,18,4]{2,1,0:T(8,128)}', space=vmem, size = 0x36000, scoped, tag = 'scratch operand']
  #allocation3 [shape = 'f32[256,36]{1,0:T(8,128)}', space=vmem, size = 0x20000, scoped, tag = 'scratch operand']
  %s0 = inlined_call_operand.hbm [shape: f32[2,256,8], index: 0, kind: input, shape index: {}]
  %s1 = inlined_call_operand.hbm [shape: f32[8,4], index: 1, kind: input, shape index: {}]
  %s2 = inlined_call_operand.hbm [shape: f32[1,4], index: 2, kind: input, shape index: {}]
  %s3 = inlined_call_operand.hbm [shape: f32[36,4], index: 3, kind: input, shape index: {}]
  %s4 = inlined_call_operand.hbm [shape: f32[1,4], index: 4, kind: input, shape index: {}]
  %s5 = inlined_call_operand.hbm [shape: f32[36,4], index: 5, kind: input, shape index: {}]
  %s6 = inlined_call_operand.hbm [shape: f32[1,4], index: 6, kind: input, shape index: {}]
  %s7 = inlined_call_operand.hbm [shape: f32[2,256,4], index: 7, kind: output, shape index: {}]
  %s8 = sld [smem:[#allocation0]]
  $region89: #{tpu_custom_call.1} parent=0
    _
  %s10 = ssub.s32 1, %s8
  %s11 = scalar_select 0, %s10, %s8
  $region1: #{tpu_custom_call.1} parent=0
    #allocation4 [shape = 'u8[262144]{0}', space=vmem, size = 0x40000, scoped, tag = 'input window, operand 0']
    #allocation5 [shape = 's32[2]{0}', space=sflag, size = 0x8, scoped, tag = 'scoped memory for tpu_custom_call.1']
    #allocation6 [shape = 's32[2]{0}', space=sflag, size = 0x8, scoped, tag = 'scoped memory for tpu_custom_call.1']
    #allocation7 [shape = 'u8[4096]{0}', space=vmem, size = 0x1000, scoped, tag = 'input window, operand 1, single buffered']
    #allocation8 [shape = 's32[1]{0}', space=sflag, size = 0x4, scoped, tag = 'scoped memory for tpu_custom_call.1']
    #allocation9 [shape = 'u8[512]{0}', space=vmem, size = 0x400, scoped, tag = 'input window, operand 2, single buffered']
    #allocation10 [shape = 'u8[20480]{0}', space=vmem, size = 0x5000, scoped, tag = 'input window, operand 3, single buffered']
    #allocation11 [shape = 's32[1]{0}', space=sflag, size = 0x4, scoped, tag = 'scoped memory for tpu_custom_call.1']
    #allocation12 [shape = 'u8[512]{0}', space=vmem, size = 0x400, scoped, tag = 'input window, operand 4, single buffered']
    #allocation13 [shape = 'u8[20480]{0}', space=vmem, size = 0x5000, scoped, tag = 'input window, operand 5, single buffered']
    #allocation14 [shape = 's32[1]{0}', space=sflag, size = 0x4, scoped, tag = 'scoped memory for tpu_custom_call.1']
    #allocation15 [shape = 'u8[512]{0}', space=vmem, size = 0x400, scoped, tag = 'input window, operand 6, single buffered']
    #allocation16 [shape = 'u8[262144]{0}', space=vmem, size = 0x40000, scoped, tag = 'output window, operand 0']
    %12 = vsyncpa [#allocation5], 0
    %s13 = scalar_lea.sflag [#allocation5], 1
    %14 = vsyncpa %s13, 0
    %15 = vsyncpa [#allocation8], 0
    %16 = vsyncpa [#allocation11], 0
    %17 = vsyncpa [#allocation14], 0
    %18 = vsyncpa [#allocation6], 0
    %s19 = scalar_lea.sflag [#allocation6], 1
    %20 = vsyncpa %s19, 0
    loop: start=0, step=1, limit=4
    $region2: #{tpu_custom_call.1} parent=1 // loop_pre_header
      _
    $region3: #{tpu_custom_call.1} parent=1 // loop_header
      %s22 = sphi 0, %s26
      %p23 = scmp.ge.s32.totalorder %s22, 4
      %s32 = sphi 0, %s34
      %s35 = sphi 0, %s32
      %s36 = sphi 0, %s35
      %s52 = sphi 0, %s36
      %s56 = sphi 0, %s56
      %s58 = sphi 0, %s56
      %s59 = sphi 0, %s58
      %s73 = sphi 0, %s59
      %s77 = sphi 0, %s77
      %s79 = sphi 0, %s77
      %s80 = sphi 0, %s79
      %s94 = sphi 0, %s80
      %s98 = sphi 0, %s98
      %s100 = sphi 0, %s98
      %s101 = sphi 0, %s100
      %s115 = sphi 0, %s101
      %s119 = sphi 0, %s119
      %s121 = sphi 0, %s119
      %s122 = sphi 0, %s121
      %s136 = sphi 0, %s122
      %s140 = sphi 0, %s140
      %s142 = sphi 0, %s140
      %s143 = sphi 0, %s142
      %s157 = sphi 0, %s143
      %s161 = sphi 0, %s161
      %s163 = sphi 0, %s161
      %s164 = sphi 0, %s163
      %s178 = sphi 0, %s164
      %s184 = sphi 0, %s186
      %s187 = sphi 0, %s184
      %s188 = sphi 0, %s187
      %s204 = sphi 0, %s188
    $region4: #{tpu_custom_call.1} parent=1 // loop_header_branch
      %25 = sbr.rel (%p23) target = $region8
    $region5: #{tpu_custom_call.1} parent=1 // loop_body
      %s27 = ssub.s32 %s22, 1
      %s28 = ssub.s32 %s22, 2
      %s29 = sadd.s32 %s22, 1
      %s30 = ssub.s32 %s22, %s29
      %p31 = scmp.eq.s32.totalorder %s30, 0
      %s33 = sadd.s32 %s32, 1
      %s34 = scalar_select %p31, %s32, %s33
      %p37 = pneg %p31
      %p38 = scmp.eq.s32.totalorder %s22, 1
      %p39 = por %p37, %p38
      %p40 = scmp.ne.s32.totalorder %s32, %s35
      %p41 = scmp.eq.s32.totalorder %s22, 0
      %p42 = por %p40, %p41
      %p43 = scmp.ne.s32.totalorder %s32, %s35
      %p44 = scmp.eq.s32.totalorder %s27, 1
      %p45 = por %p43, %p44
      %p46 = scmp.ne.s32.totalorder %s35, %s36
      %p47 = scmp.eq.s32.totalorder %s27, 0
      %p48 = por %p46, %p47
      %p49 = scmp.ne.s32.totalorder %s35, %s36
      %p50 = scmp.eq.s32.totalorder %s28, 1
      %p51 = por %p49, %p50
      %p53 = scmp.ne.s32.totalorder %s36, %s52
      %p54 = scmp.eq.s32.totalorder %s28, 0
      %p55 = por %p53, %p54
      %s57 = sadd.s32 %s56, 1
      %p60 = scmp.eq.s32.totalorder %s22, 1
      %p61 = scmp.ne.s32.totalorder %s56, %s58
      %p62 = scmp.eq.s32.totalorder %s22, 0
      %p63 = por %p61, %p62
      %p64 = scmp.ne.s32.totalorder %s56, %s58
      %p65 = scmp.eq.s32.totalorder %s27, 1
      %p66 = por %p64, %p65
      %p67 = scmp.ne.s32.totalorder %s58, %s59
      %p68 = scmp.eq.s32.totalorder %s27, 0
      %p69 = por %p67, %p68
      %p70 = scmp.ne.s32.totalorder %s58, %s59
      %p71 = scmp.eq.s32.totalorder %s28, 1
      %p72 = por %p70, %p71
      %p74 = scmp.ne.s32.totalorder %s59, %s73
      %p75 = scmp.eq.s32.totalorder %s28, 0
      %p76 = por %p74, %p75
      %s78 = sadd.s32 %s77, 1
      %p81 = scmp.eq.s32.totalorder %s22, 1
      %p82 = scmp.ne.s32.totalorder %s77, %s79
      %p83 = scmp.eq.s32.totalorder %s22, 0
      %p84 = por %p82, %p83
      %p85 = scmp.ne.s32.totalorder %s77, %s79
      %p86 = scmp.eq.s32.totalorder %s27, 1
      %p87 = por %p85, %p86
      %p88 = scmp.ne.s32.totalorder %s79, %s80
      %p89 = scmp.eq.s32.totalorder %s27, 0
      %p90 = por %p88, %p89
      %p91 = scmp.ne.s32.totalorder %s79, %s80
      %p92 = scmp.eq.s32.totalorder %s28, 1
      %p93 = por %p91, %p92
      %p95 = scmp.ne.s32.totalorder %s80, %s94
      %p96 = scmp.eq.s32.totalorder %s28, 0
      %p97 = por %p95, %p96
      %s99 = sadd.s32 %s98, 1
      %p102 = scmp.eq.s32.totalorder %s22, 1
      %p103 = scmp.ne.s32.totalorder %s98, %s100
      %p104 = scmp.eq.s32.totalorder %s22, 0
      %p105 = por %p103, %p104
      %p106 = scmp.ne.s32.totalorder %s98, %s100
      %p107 = scmp.eq.s32.totalorder %s27, 1
      %p108 = por %p106, %p107
      %p109 = scmp.ne.s32.totalorder %s100, %s101
      %p110 = scmp.eq.s32.totalorder %s27, 0
      %p111 = por %p109, %p110
      %p112 = scmp.ne.s32.totalorder %s100, %s101
      %p113 = scmp.eq.s32.totalorder %s28, 1
      %p114 = por %p112, %p113
      %p116 = scmp.ne.s32.totalorder %s101, %s115
      %p117 = scmp.eq.s32.totalorder %s28, 0
      %p118 = por %p116, %p117
      %s120 = sadd.s32 %s119, 1
      %p123 = scmp.eq.s32.totalorder %s22, 1
      %p124 = scmp.ne.s32.totalorder %s119, %s121
      %p125 = scmp.eq.s32.totalorder %s22, 0
      %p126 = por %p124, %p125
      %p127 = scmp.ne.s32.totalorder %s119, %s121
      %p128 = scmp.eq.s32.totalorder %s27, 1
      %p129 = por %p127, %p128
      %p130 = scmp.ne.s32.totalorder %s121, %s122
      %p131 = scmp.eq.s32.totalorder %s27, 0
      %p132 = por %p130, %p131
      %p133 = scmp.ne.s32.totalorder %s121, %s122
      %p134 = scmp.eq.s32.totalorder %s28, 1
      %p135 = por %p133, %p134
      %p137 = scmp.ne.s32.totalorder %s122, %s136
      %p138 = scmp.eq.s32.totalorder %s28, 0
      %p139 = por %p137, %p138
      %s141 = sadd.s32 %s140, 1
      %p144 = scmp.eq.s32.totalorder %s22, 1
      %p145 = scmp.ne.s32.totalorder %s140, %s142
      %p146 = scmp.eq.s32.totalorder %s22, 0
      %p147 = por %p145, %p146
      %p148 = scmp.ne.s32.totalorder %s140, %s142
      %p149 = scmp.eq.s32.totalorder %s27, 1
      %p150 = por %p148, %p149
      %p151 = scmp.ne.s32.totalorder %s142, %s143
      %p152 = scmp.eq.s32.totalorder %s27, 0
      %p153 = por %p151, %p152
      %p154 = scmp.ne.s32.totalorder %s142, %s143
      %p155 = scmp.eq.s32.totalorder %s28, 1
      %p156 = por %p154, %p155
      %p158 = scmp.ne.s32.totalorder %s143, %s157
      %p159 = scmp.eq.s32.totalorder %s28, 0
      %p160 = por %p158, %p159
      %s162 = sadd.s32 %s161, 1
      %p165 = scmp.eq.s32.totalorder %s22, 1
      %p166 = scmp.ne.s32.totalorder %s161, %s163
      %p167 = scmp.eq.s32.totalorder %s22, 0
      %p168 = por %p166, %p167
      %p169 = scmp.ne.s32.totalorder %s161, %s163
      %p170 = scmp.eq.s32.totalorder %s27, 1
      %p171 = por %p169, %p170
      %p172 = scmp.ne.s32.totalorder %s163, %s164
      %p173 = scmp.eq.s32.totalorder %s27, 0
      %p174 = por %p172, %p173
      %p175 = scmp.ne.s32.totalorder %s163, %s164
      %p176 = scmp.eq.s32.totalorder %s28, 1
      %p177 = por %p175, %p176
      %p179 = scmp.ne.s32.totalorder %s164, %s178
      %p180 = scmp.eq.s32.totalorder %s28, 0
      %p181 = por %p179, %p180
      %s182 = ssub.s32 %s22, %s29
      %p183 = scmp.eq.s32.totalorder %s182, 0
      %s185 = sadd.s32 %s184, 1
      %s186 = scalar_select %p183, %s184, %s185
      %p189 = pneg %p183
      %p190 = scmp.eq.s32.totalorder %s22, 1
      %p191 = por %p189, %p190
      %p192 = scmp.ne.s32.totalorder %s184, %s187
      %p193 = scmp.eq.s32.totalorder %s22, 0
      %p194 = por %p192, %p193
      %p195 = scmp.ne.s32.totalorder %s184, %s187
      %p196 = scmp.eq.s32.totalorder %s27, 1
      %p197 = por %p195, %p196
      %p198 = scmp.ne.s32.totalorder %s187, %s188
      %p199 = scmp.eq.s32.totalorder %s27, 0
      %p200 = por %p198, %p199
      %p201 = scmp.ne.s32.totalorder %s187, %s188
      %p202 = scmp.eq.s32.totalorder %s28, 1
      %p203 = por %p201, %p202
      %p205 = scmp.ne.s32.totalorder %s188, %s204
      %p206 = scmp.eq.s32.totalorder %s28, 0
      %p207 = por %p205, %p206
      %p208 = scmp.le.s32.totalorder 1, %s22
      %p209 = scmp.lt.s32.totalorder %s22, 3
      %p210 = pnand %p208, %p209
      %p211 = pneg %p210
      // Predicated region
      $region9: #{tpu_custom_call.1} parent=5 // pred_check
        _
      $region10: #{tpu_custom_call.1} parent=5 // pred_check_branch
        %213 = sbr.rel (%p210) target = $region12
      $region11: #{tpu_custom_call.1} parent=5 // pred_region
        %s214 = ssub.s32 %s22, 1
        // Predicated region
        $region13: #{tpu_custom_call.1} parent=11 // pred_check
          %p215 = pneg %p69
        $region14: #{tpu_custom_call.1} parent=11 // pred_check_branch
          %217 = sbr.rel (%p215) target = $region16
        $region15: #{tpu_custom_call.1} parent=11 // pred_region
          %s219 = ssub.s32 128, 128
          %220 = vsyncadd [#allocation8], %s219
          %s222 = sshll.u32 [#allocation7], 4
          %s223 = int_to_ptr.vmem [resolvable:$true] %s222
          %225 = dma.hbm_to_vmem [thread:$0]  %s1, 128, %s223, [#allocation8]
        $region16: #{tpu_custom_call.1} parent=11 // pred_fallthru
          _
        // Predicated region
        $region17: #{tpu_custom_call.1} parent=11 // pred_check
          %p226 = pneg %p90
        $region18: #{tpu_custom_call.1} parent=11 // pred_check_branch
          %228 = sbr.rel (%p226) target = $region20
        $region19: #{tpu_custom_call.1} parent=11 // pred_region
          %s230 = ssub.s32 16, 16
          %231 = vsyncadd [#allocation8], %s230
          %s233 = sshll.u32 [#allocation9], 4
          %s234 = int_to_ptr.vmem [resolvable:$true] %s233
          %236 = dma.hbm_to_vmem [thread:$0]  %s2, 16, %s234, [#allocation8]
        $region20: #{tpu_custom_call.1} parent=11 // pred_fallthru
          _
        // Predicated region
        $region21: #{tpu_custom_call.1} parent=11 // pred_check
          %p237 = pneg %p111
        $region22: #{tpu_custom_call.1} parent=11 // pred_check_branch
          %239 = sbr.rel (%p237) target = $region24
        $region23: #{tpu_custom_call.1} parent=11 // pred_region
          %s241 = ssub.s32 640, 640
          %242 = vsyncadd [#allocation11], %s241
          %s243 = sshll.u32 [#allocation10], 4
          %s244 = int_to_ptr.vmem [resolvable:$true] %s243
          %249 = dma.hbm_to_vmem [thread:$0]  %s3, 640, %s244, [#allocation11], 128, 128, 8
        $region24: #{tpu_custom_call.1} parent=11 // pred_fallthru
          _
        // Predicated region
        $region25: #{tpu_custom_call.1} parent=11 // pred_check
          %p250 = pneg %p132
        $region26: #{tpu_custom_call.1} parent=11 // pred_check_branch
          %252 = sbr.rel (%p250) target = $region28
        $region27: #{tpu_custom_call.1} parent=11 // pred_region
          %s254 = ssub.s32 16, 16
          %255 = vsyncadd [#allocation11], %s254
          %s257 = sshll.u32 [#allocation12], 4
          %s258 = int_to_ptr.vmem [resolvable:$true] %s257
          %260 = dma.hbm_to_vmem [thread:$0]  %s4, 16, %s258, [#allocation11]
        $region28: #{tpu_custom_call.1} parent=11 // pred_fallthru
          _
        // Predicated region
        $region29: #{tpu_custom_call.1} parent=11 // pred_check
          %p261 = pneg %p153
        $region30: #{tpu_custom_call.1} parent=11 // pred_check_branch
          %263 = sbr.rel (%p261) target = $region32
        $region31: #{tpu_custom_call.1} parent=11 // pred_region
          %s265 = ssub.s32 640, 640
          %266 = vsyncadd [#allocation14], %s265
          %s267 = sshll.u32 [#allocation13], 4
          %s268 = int_to_ptr.vmem [resolvable:$true] %s267
          %273 = dma.hbm_to_vmem [thread:$0]  %s5, 640, %s268, [#allocation14], 128, 128, 8
        $region32: #{tpu_custom_call.1} parent=11 // pred_fallthru
          _
        // Predicated region
        $region33: #{tpu_custom_call.1} parent=11 // pred_check
          %p274 = pneg %p174
        $region34: #{tpu_custom_call.1} parent=11 // pred_check_branch
          %276 = sbr.rel (%p274) target = $region36
        $region35: #{tpu_custom_call.1} parent=11 // pred_region
          %s278 = ssub.s32 16, 16
          %279 = vsyncadd [#allocation14], %s278
          %s281 = sshll.u32 [#allocation15], 4
          %s282 = int_to_ptr.vmem [resolvable:$true] %s281
          %284 = dma.hbm_to_vmem [thread:$0]  %s6, 16, %s282, [#allocation14]
        $region36: #{tpu_custom_call.1} parent=11 // pred_fallthru
          _
      $region12: #{tpu_custom_call.1} parent=5 // pred_fallthru
        _
      %p285 = scmp.lt.s32.totalorder %s22, 2
      // Predicated region
      $region37: #{tpu_custom_call.1} parent=5 // pred_check
        %p286 = pneg %p285
      $region38: #{tpu_custom_call.1} parent=5 // pred_check_branch
        %288 = sbr.rel (%p286) target = $region40
      $region39: #{tpu_custom_call.1} parent=5 // pred_region
        // Predicated region
        $region41: #{tpu_custom_call.1} parent=39 // pred_check
          %p289 = pneg %p42
        $region42: #{tpu_custom_call.1} parent=39 // pred_check_branch
          %291 = sbr.rel (%p289) target = $region44
        $region43: #{tpu_custom_call.1} parent=39 // pred_region
          %s292 = sand.u32 %s32, 1
          %s293 = scalar_lea.sflag [#allocation5], %s292
          %s294 = sand.u32 %s32, 1
          %s295 = smul.addr %s294, 256
          %s296 = scalar_lea.vmem [#allocation4], %s295
          %s298 = ssub.s32 4096, 4096
          %299 = vsyncadd %s293, %s298
          %s300 = smul.addr %s22, 32
          %s301 = smul.addr %s300, 128
          %s302 = scalar_lea.hbm %s0, %s301
          %s303 = sshll.u32 %s296, 4
          %s304 = int_to_ptr.vmem [resolvable:$true] %s303
          %309 = dma.hbm_to_vmem [thread:$0]  %s302, 4096, %s304, %s293, 128, 128, 8
        $region44: #{tpu_custom_call.1} parent=39 // pred_fallthru
          _
      $region40: #{tpu_custom_call.1} parent=5 // pred_fallthru
        _
      %p310 = scmp.le.s32.totalorder 1, %s22
      %p311 = scmp.lt.s32.totalorder %s22, 3
      %p312 = pnand %p310, %p311
      %p313 = pneg %p312
      // Predicated region
      $region45: #{tpu_custom_call.1} parent=5 // pred_check
        _
      $region46: #{tpu_custom_call.1} parent=5 // pred_check_branch
        %315 = sbr.rel (%p312) target = $region48
      $region47: #{tpu_custom_call.1} parent=5 // pred_region
        %s316 = ssub.s32 %s22, 1
        %s317 = sand.u32 %s35, 1
        %s318 = scalar_lea.sflag [#allocation5], %s317
        %s319 = sand.u32 %s35, 1
        %s320 = smul.addr %s319, 256
        %s321 = scalar_lea.vmem [#allocation4], %s320
        // Predicated region
        $region49: #{tpu_custom_call.1} parent=47 // pred_check
          %p322 = pneg %p48
        $region50: #{tpu_custom_call.1} parent=47 // pred_check_branch
          %324 = sbr.rel (%p322) target = $region52
        $region51: #{tpu_custom_call.1} parent=47 // pred_region
          %325 = dma.done %s318, 4096
        $region52: #{tpu_custom_call.1} parent=47 // pred_fallthru
          _
        // Predicated region
        $region53: #{tpu_custom_call.1} parent=47 // pred_check
          %p326 = pneg %p69
        $region54: #{tpu_custom_call.1} parent=47 // pred_check_branch
          %328 = sbr.rel (%p326) target = $region56
        $region55: #{tpu_custom_call.1} parent=47 // pred_region
          %329 = dma.done [#allocation8], 128
        $region56: #{tpu_custom_call.1} parent=47 // pred_fallthru
          _
        // Predicated region
        $region57: #{tpu_custom_call.1} parent=47 // pred_check
          %p330 = pneg %p90
        $region58: #{tpu_custom_call.1} parent=47 // pred_check_branch
          %332 = sbr.rel (%p330) target = $region60
        $region59: #{tpu_custom_call.1} parent=47 // pred_region
          %333 = dma.done [#allocation8], 16
        $region60: #{tpu_custom_call.1} parent=47 // pred_fallthru
          _
        // Predicated region
        $region61: #{tpu_custom_call.1} parent=47 // pred_check
          %p334 = pneg %p111
        $region62: #{tpu_custom_call.1} parent=47 // pred_check_branch
          %336 = sbr.rel (%p334) target = $region64
        $region63: #{tpu_custom_call.1} parent=47 // pred_region
          %337 = dma.done [#allocation11], 640
        $region64: #{tpu_custom_call.1} parent=47 // pred_fallthru
          _
        // Predicated region
        $region65: #{tpu_custom_call.1} parent=47 // pred_check
          %p338 = pneg %p132
        $region66: #{tpu_custom_call.1} parent=47 // pred_check_branch
          %340 = sbr.rel (%p338) target = $region68
        $region67: #{tpu_custom_call.1} parent=47 // pred_region
          %341 = dma.done [#allocation11], 16
        $region68: #{tpu_custom_call.1} parent=47 // pred_fallthru
          _
        // Predicated region
        $region69: #{tpu_custom_call.1} parent=47 // pred_check
          %p342 = pneg %p153
        $region70: #{tpu_custom_call.1} parent=47 // pred_check_branch
          %344 = sbr.rel (%p342) target = $region72
        $region71: #{tpu_custom_call.1} parent=47 // pred_region
          %345 = dma.done [#allocation14], 640
        $region72: #{tpu_custom_call.1} parent=47 // pred_fallthru
          _
        // Predicated region
        $region73: #{tpu_custom_call.1} parent=47 // pred_check
          %p346 = pneg %p174
        $region74: #{tpu_custom_call.1} parent=47 // pred_check_branch
          %348 = sbr.rel (%p346) target = $region76
        $region75: #{tpu_custom_call.1} parent=47 // pred_region
          %349 = dma.done [#allocation14], 16
        $region76: #{tpu_custom_call.1} parent=47 // pred_fallthru
          _
        %s350 = sand.u32 %s35, 1
        %s351 = scalar_lea.sflag [#allocation5], %s350
        %s352 = sand.u32 %s35, 1
        %s353 = smul.addr %s352, 256
        %s354 = scalar_lea.vmem [#allocation4], %s353
        %p355 = pneg %p48
        %p356 = pneg %p45
        %p357 = pneg %p69
        %p358 = pneg %p66
        %p359 = pneg %p90
        %p360 = pneg %p87
        %p361 = pneg %p111
        %p362 = pneg %p108
        %p363 = pneg %p132
        %p364 = pneg %p129
        %p365 = pneg %p153
        %p366 = pneg %p150
        %p367 = pneg %p174
        %p368 = pneg %p171
        %p369 = pneg %p200
        %p370 = pneg %p197
        %s371 = sand.u32 %s187, 1
        %s372 = scalar_lea.sflag [#allocation6], %s371
        %s373 = sand.u32 %s187, 1
        %s374 = smul.addr %s373, 256
        %s375 = scalar_lea.vmem [#allocation16], %s374
        %vm376 = vcmask 31744
        %377 = vst.msk [vmem:[#allocation2] sm:$0xff] %vm376, 0.0
        %378 = vst.msk [vmem:[#allocation2 + $0x8] sm:$0xff] %vm376, 0.0
        %vm379 = vcmask 25600
        %380 = vst.msk [vmem:[#allocation2 + $0x10] sm:$0x3] %vm379, 0.0
        %s381 = scalar_lea.vmem [#allocation2], 408
        %382 = vst.msk [vmem:[%s381] sm:$0xff] %vm376, 0.0
        %383 = vst.msk [vmem:[%s381 + $0x8] sm:$0xff] %vm376, 0.0
        %384 = vst.msk [vmem:[%s381 + $0x10] sm:$0x3] %vm379, 0.0
        %vm385 = vcmask 24576
        %386 = vst.msk [vmem:[#allocation2] sm:$0x1] %vm385, 0.0
        %387 = vst.msk [vmem:[#allocation2 + $0x18] sm:$0x1] %vm385, 0.0
        %388 = vst.msk [vmem:[#allocation2 + $0x30] sm:$0x1] %vm385, 0.0
        %389 = vst.msk [vmem:[#allocation2 + $0x48] sm:$0x1] %vm385, 0.0
        %390 = vst.msk [vmem:[#allocation2 + $0x60] sm:$0x1] %vm385, 0.0
        %391 = vst.msk [vmem:[#allocation2 + $0x78] sm:$0x1] %vm385, 0.0
        %392 = vst.msk [vmem:[#allocation2 + $0x90] sm:$0x1] %vm385, 0.0
        %393 = vst.msk [vmem:[#allocation2 + $0xa8] sm:$0x1] %vm385, 0.0
        %394 = vst.msk [vmem:[#allocation2 + $0xc0] sm:$0x1] %vm385, 0.0
        %395 = vst.msk [vmem:[#allocation2 + $0xd8] sm:$0x1] %vm385, 0.0
        %396 = vst.msk [vmem:[#allocation2 + $0xf0] sm:$0x1] %vm385, 0.0
        %397 = vst.msk [vmem:[#allocation2 + $0x108] sm:$0x1] %vm385, 0.0
        %398 = vst.msk [vmem:[#allocation2 + $0x120] sm:$0x1] %vm385, 0.0
        %399 = vst.msk [vmem:[#allocation2 + $0x138] sm:$0x1] %vm385, 0.0
        %400 = vst.msk [vmem:[#allocation2 + $0x150] sm:$0x1] %vm385, 0.0
        %401 = vst.msk [vmem:[#allocation2 + $0x168] sm:$0x1] %vm385, 0.0
        %402 = vst.msk [vmem:[#allocation2 + $0x180] sm:$0x1] %vm385, 0.0
        %403 = vst.msk [vmem:[#allocation2 + $0x198] sm:$0x1] %vm385, 0.0
        %404 = vst.msk [vmem:[#allocation2 + $0x11] sm:$0x1] %vm385, 0.0
        %405 = vst.msk [vmem:[#allocation2 + $0x29] sm:$0x1] %vm385, 0.0
        %406 = vst.msk [vmem:[#allocation2 + $0x41] sm:$0x1] %vm385, 0.0
        %407 = vst.msk [vmem:[#allocation2 + $0x59] sm:$0x1] %vm385, 0.0
        %408 = vst.msk [vmem:[#allocation2 + $0x71] sm:$0x1] %vm385, 0.0
        %409 = vst.msk [vmem:[#allocation2 + $0x89] sm:$0x1] %vm385, 0.0
        %410 = vst.msk [vmem:[#allocation2 + $0xa1] sm:$0x1] %vm385, 0.0
        %411 = vst.msk [vmem:[#allocation2 + $0xb9] sm:$0x1] %vm385, 0.0
        %412 = vst.msk [vmem:[#allocation2 + $0xd1] sm:$0x1] %vm385, 0.0
        %413 = vst.msk [vmem:[#allocation2 + $0xe9] sm:$0x1] %vm385, 0.0
        %414 = vst.msk [vmem:[#allocation2 + $0x101] sm:$0x1] %vm385, 0.0
        %415 = vst.msk [vmem:[#allocation2 + $0x119] sm:$0x1] %vm385, 0.0
        %416 = vst.msk [vmem:[#allocation2 + $0x131] sm:$0x1] %vm385, 0.0
        %417 = vst.msk [vmem:[#allocation2 + $0x149] sm:$0x1] %vm385, 0.0
        %418 = vst.msk [vmem:[#allocation2 + $0x161] sm:$0x1] %vm385, 0.0
        %419 = vst.msk [vmem:[#allocation2 + $0x179] sm:$0x1] %vm385, 0.0
        %420 = vst.msk [vmem:[#allocation2 + $0x191] sm:$0x1] %vm385, 0.0
        %421 = vst.msk [vmem:[#allocation2 + $0x1a9] sm:$0x1] %vm385, 0.0
        %v422 = vld [vmem:[%s321] sm:$0xff]
        %v423 = vld [vmem:[%s321 + $0x8] sm:$0xff]
        %v424 = vld [vmem:[%s321 + $0x10] sm:$0xff]
        %v425 = vld [vmem:[%s321 + $0x18] sm:$0xff]
        %v426 = vld [vmem:[%s321 + $0x20] sm:$0xff]
        %v427 = vld [vmem:[%s321 + $0x28] sm:$0xff]
        %v428 = vld [vmem:[%s321 + $0x30] sm:$0xff]
        %v429 = vld [vmem:[%s321 + $0x38] sm:$0xff]
        %v430 = vld [vmem:[%s321 + $0x40] sm:$0xff]
        %v431 = vld [vmem:[%s321 + $0x48] sm:$0xff]
        %v432 = vld [vmem:[%s321 + $0x50] sm:$0xff]
        %v433 = vld [vmem:[%s321 + $0x58] sm:$0xff]
        %v434 = vld [vmem:[%s321 + $0x60] sm:$0xff]
        %v435 = vld [vmem:[%s321 + $0x68] sm:$0xff]
        %v436 = vld [vmem:[%s321 + $0x70] sm:$0xff]
        %v437 = vld [vmem:[%s321 + $0x78] sm:$0xff]
        %v438 = vld [vmem:[%s321 + $0x80] sm:$0xff]
        %v439 = vld [vmem:[%s321 + $0x88] sm:$0xff]
        %v440 = vld [vmem:[%s321 + $0x90] sm:$0xff]
        %v441 = vld [vmem:[%s321 + $0x98] sm:$0xff]
        %v442 = vld [vmem:[%s321 + $0xa0] sm:$0xff]
        %v443 = vld [vmem:[%s321 + $0xa8] sm:$0xff]
        %v444 = vld [vmem:[%s321 + $0xb0] sm:$0xff]
        %v445 = vld [vmem:[%s321 + $0xb8] sm:$0xff]
        %v446 = vld [vmem:[%s321 + $0xc0] sm:$0xff]
        %v447 = vld [vmem:[%s321 + $0xc8] sm:$0xff]
        %v448 = vld [vmem:[%s321 + $0xd0] sm:$0xff]
        %v449 = vld [vmem:[%s321 + $0xd8] sm:$0xff]
        %v450 = vld [vmem:[%s321 + $0xe0] sm:$0xff]
        %v451 = vld [vmem:[%s321 + $0xe8] sm:$0xff]
        %v452 = vld [vmem:[%s321 + $0xf0] sm:$0xff]
        %v453 = vld [vmem:[%s321 + $0xf8] sm:$0xff]
        %v454 = vld [vmem:[#allocation7] sm:$0xff]
        %v455 = vld [vmem:[#allocation9] sm:$0x1]
        %v457 = vlaneseq
        %v458 = vshrl.u32 %v457, 7
        %v459 = vsub.s32 0, %v458
        %v460 = vrot.slane %v455, %v459
        %vm462 = vcmask 64512
        %v464 = vsel %vm462, %v422, 0
        %v467 = vsel %vm462, %v423, 0
        %v470 = vsel %vm462, %v424, 0
        %v473 = vsel %vm462, %v425, 0
        %v476 = vsel %vm462, %v426, 0
        %v479 = vsel %vm462, %v427, 0
        %v482 = vsel %vm462, %v428, 0
        %v485 = vsel %vm462, %v429, 0
        %v488 = vsel %vm462, %v430, 0
        %v491 = vsel %vm462, %v431, 0
        %v494 = vsel %vm462, %v432, 0
        %v497 = vsel %vm462, %v433, 0
        %v500 = vsel %vm462, %v434, 0
        %v503 = vsel %vm462, %v435, 0
        %v506 = vsel %vm462, %v436, 0
        %v509 = vsel %vm462, %v437, 0
        %v512 = vsel %vm462, %v438, 0
        %v515 = vsel %vm462, %v439, 0
        %v518 = vsel %vm462, %v440, 0
        %v521 = vsel %vm462, %v441, 0
        %v524 = vsel %vm462, %v442, 0
        %v527 = vsel %vm462, %v443, 0
        %v530 = vsel %vm462, %v444, 0
        %v533 = vsel %vm462, %v445, 0
        %v536 = vsel %vm462, %v446, 0
        %v539 = vsel %vm462, %v447, 0
        %v542 = vsel %vm462, %v448, 0
        %v545 = vsel %vm462, %v449, 0
        %v548 = vsel %vm462, %v450, 0
        %v551 = vsel %vm462, %v451, 0
        %v554 = vsel %vm462, %v452, 0
        %v557 = vsel %vm462, %v453, 0
        %559 = vmatprep.subr.mxu0 0.0
        %560 = vmatpush1.msra.mxu0 %v454
        %561 = vmatprep.subr.mxu0 0.0
        %562 = vmatpush1.msra.mxu0 0.0
        %563 = vmatprep.subr.mxu0 0.0
        %564 = vmatpush1.msra.mxu0 0.0
        %565 = vmatprep.subr.mxu0 0.0
        %566 = vmatpush1.msra.mxu0 0.0
        %567 = vmatprep.subr.mxu0 0.0
        %568 = vmatpush1.msra.mxu0 0.0
        %569 = vmatprep.subr.mxu0 0.0
        %570 = vmatpush1.msra.mxu0 0.0
        %571 = vmatprep.subr.mxu0 0.0
        %572 = vmatpush1.msra.mxu0 0.0
        %573 = vmatprep.subr.mxu0 0.0
        %574 = vmatpush1.msra.mxu0 0.0
        %575 = vmatprep.subr.mxu0 0.0
        %576 = vmatpush1.msra.mxu0 0.0
        %577 = vmatprep.subr.mxu0 0.0
        %578 = vmatpush1.msra.mxu0 0.0
        %579 = vmatprep.subr.mxu0 0.0
        %580 = vmatpush1.msra.mxu0 0.0
        %581 = vmatprep.subr.mxu0 0.0
        %582 = vmatpush1.msra.mxu0 0.0
        %583 = vmatprep.subr.mxu0 0.0
        %584 = vmatpush1.msra.mxu0 0.0
        %585 = vmatprep.subr.mxu0 0.0
        %586 = vmatpush1.msra.mxu0 0.0
        %587 = vmatprep.subr.mxu0 0.0
        %588 = vmatpush1.msra.mxu0 0.0
        %589 = vmatprep.subr.mxu0 0.0
        %590 = vmatpush1.msra.mxu0 0.0
        %591 = vmatprep.subr.mxu0 0.0
        %592 = vmatpush1.msra.mxu0 0.0
        %593 = vmatprep.subr.mxu0 0.0
        %594 = vmatpush1.msra.mxu0 0.0
        %595 = vmatprep.subr.mxu0 0.0
        %596 = vmatpush1.msra.mxu0 0.0
        %597 = vmatprep.subr.mxu0 0.0
        %598 = vmatpush1.msra.mxu0 0.0
        %599 = vmatprep.subr.mxu0 0.0
        %600 = vmatpush1.msra.mxu0 0.0
        %601 = vmatprep.subr.mxu0 0.0
        %602 = vmatpush1.msra.mxu0 0.0
        %603 = vmatprep.subr.mxu0 0.0
        %604 = vmatpush1.msra.mxu0 0.0
        %605 = vmatprep.subr.mxu0 0.0
        %606 = vmatpush1.msra.mxu0 0.0
        %607 = vmatprep.subr.mxu0 0.0
        %608 = vmatpush1.msra.mxu0 0.0
        %609 = vmatprep.subr.mxu0 0.0
        %610 = vmatpush1.msra.mxu0 0.0
        %611 = vmatprep.subr.mxu0 0.0
        %612 = vmatpush1.msra.mxu0 0.0
        %613 = vmatprep.subr.mxu0 0.0
        %614 = vmatpush1.msra.mxu0 0.0
        %615 = vmatprep.subr.mxu0 0.0
        %616 = vmatpush1.msra.mxu0 0.0
        %617 = vmatprep.subr.mxu0 0.0
        %618 = vmatpush1.msra.mxu0 0.0
        %619 = vmatprep.subr.mxu0 0.0
        %620 = vmatpush1.msra.mxu0 0.0
        %621 = vmatprep.subr.mxu0 0.0
        %622 = vmatpush1.msra.mxu0 0.0
        %623 = vmatprep.mubr.f32.mxu0 0.0
        %624 = vmatmul.mubr.f32.gmra.mrb[0].mxu0 %v464
        %v625 = vpop.f32.mrb[0].mxu0
        %v626 = vadd.f32 %v460, %v625
        %v627 = vpop.f32.mrb[0].mxu0
        %628 = vmatprep.mubr.f32.mxu0 0.0
        %629 = vmatmul.mubr.f32.gmra.mrb[0].mxu0 %v467
        %v630 = vpop.f32.mrb[0].mxu0
        %v631 = vadd.f32 %v460, %v630
        %v632 = vpop.f32.mrb[0].mxu0
        %633 = vmatprep.mubr.f32.mxu0 0.0
        %634 = vmatmul.mubr.f32.gmra.mrb[0].mxu0 %v470
        %v635 = vpop.f32.mrb[0].mxu0
        %v636 = vadd.f32 %v460, %v635
        %v637 = vpop.f32.mrb[0].mxu0
        %638 = vmatprep.mubr.f32.mxu0 0.0
        %639 = vmatmul.mubr.f32.gmra.mrb[0].mxu0 %v473
        %v640 = vpop.f32.mrb[0].mxu0
        %v641 = vadd.f32 %v460, %v640
        %v642 = vpop.f32.mrb[0].mxu0
        %643 = vmatprep.mubr.f32.mxu0 0.0
        %644 = vmatmul.mubr.f32.gmra.mrb[0].mxu0 %v476
        %v645 = vpop.f32.mrb[0].mxu0
        %v646 = vadd.f32 %v460, %v645
        %v647 = vpop.f32.mrb[0].mxu0
        %648 = vmatprep.mubr.f32.mxu0 0.0
        %649 = vmatmul.mubr.f32.gmra.mrb[0].mxu0 %v479
        %v650 = vpop.f32.mrb[0].mxu0
        %v651 = vadd.f32 %v460, %v650
        %v652 = vpop.f32.mrb[0].mxu0
        %653 = vmatprep.mubr.f32.mxu0 0.0
        %654 = vmatmul.mubr.f32.gmra.mrb[0].mxu0 %v482
        %v655 = vpop.f32.mrb[0].mxu0
        %v656 = vadd.f32 %v460, %v655
        %v657 = vpop.f32.mrb[0].mxu0
        %658 = vmatprep.mubr.f32.mxu0 0.0
        %659 = vmatmul.mubr.f32.gmra.mrb[0].mxu0 %v485
        %v660 = vpop.f32.mrb[0].mxu0
        %v661 = vadd.f32 %v460, %v660
        %v662 = vpop.f32.mrb[0].mxu0
        %663 = vmatprep.mubr.f32.mxu0 0.0
        %664 = vmatmul.mubr.f32.gmra.mrb[0].mxu0 %v488
        %v665 = vpop.f32.mrb[0].mxu0
        %v666 = vadd.f32 %v460, %v665
        %v667 = vpop.f32.mrb[0].mxu0
        %668 = vmatprep.mubr.f32.mxu0 0.0
        %669 = vmatmul.mubr.f32.gmra.mrb[0].mxu0 %v491
        %v670 = vpop.f32.mrb[0].mxu0
        %v671 = vadd.f32 %v460, %v670
        %v672 = vpop.f32.mrb[0].mxu0
        %673 = vmatprep.mubr.f32.mxu0 0.0
        %674 = vmatmul.mubr.f32.gmra.mrb[0].mxu0 %v494
        %v675 = vpop.f32.mrb[0].mxu0
        %v676 = vadd.f32 %v460, %v675
        %v677 = vpop.f32.mrb[0].mxu0
        %678 = vmatprep.mubr.f32.mxu0 0.0
        %679 = vmatmul.mubr.f32.gmra.mrb[0].mxu0 %v497
        %v680 = vpop.f32.mrb[0].mxu0
        %v681 = vadd.f32 %v460, %v680
        %v682 = vpop.f32.mrb[0].mxu0
        %683 = vmatprep.mubr.f32.mxu0 0.0
        %684 = vmatmul.mubr.f32.gmra.mrb[0].mxu0 %v500
        %v685 = vpop.f32.mrb[0].mxu0
        %v686 = vadd.f32 %v460, %v685
        %v687 = vpop.f32.mrb[0].mxu0
        %688 = vmatprep.mubr.f32.mxu0 0.0
        %689 = vmatmul.mubr.f32.gmra.mrb[0].mxu0 %v503
        %v690 = vpop.f32.mrb[0].mxu0
        %v691 = vadd.f32 %v460, %v690
        %v692 = vpop.f32.mrb[0].mxu0
        %693 = vmatprep.mubr.f32.mxu0 0.0
        %694 = vmatmul.mubr.f32.gmra.mrb[0].mxu0 %v506
        %v695 = vpop.f32.mrb[0].mxu0
        %v696 = vadd.f32 %v460, %v695
        %v697 = vpop.f32.mrb[0].mxu0
        %698 = vmatprep.mubr.f32.mxu0 0.0
        %699 = vmatmul.mubr.f32.gmra.mrb[0].mxu0 %v509
        %v700 = vpop.f32.mrb[0].mxu0
        %v701 = vadd.f32 %v460, %v700
        %v702 = vpop.f32.mrb[0].mxu0
        %703 = vmatprep.mubr.f32.mxu0 0.0
        %704 = vmatmul.mubr.f32.gmra.mrb[0].mxu0 %v512
        %v705 = vpop.f32.mrb[0].mxu0
        %v706 = vadd.f32 %v460, %v705
        %v707 = vpop.f32.mrb[0].mxu0
        %708 = vmatprep.mubr.f32.mxu0 0.0
        %709 = vmatmul.mubr.f32.gmra.mrb[0].mxu0 %v515
        %v710 = vpop.f32.mrb[0].mxu0
        %v711 = vadd.f32 %v460, %v710
        %v712 = vpop.f32.mrb[0].mxu0
        %713 = vmatprep.mubr.f32.mxu0 0.0
        %714 = vmatmul.mubr.f32.gmra.mrb[0].mxu0 %v518
        %v715 = vpop.f32.mrb[0].mxu0
        %v716 = vadd.f32 %v460, %v715
        %v717 = vpop.f32.mrb[0].mxu0
        %718 = vmatprep.mubr.f32.mxu0 0.0
        %719 = vmatmul.mubr.f32.gmra.mrb[0].mxu0 %v521
        %v720 = vpop.f32.mrb[0].mxu0
        %v721 = vadd.f32 %v460, %v720
        %v722 = vpop.f32.mrb[0].mxu0
        %723 = vmatprep.mubr.f32.mxu0 0.0
        %724 = vmatmul.mubr.f32.gmra.mrb[0].mxu0 %v524
        %v725 = vpop.f32.mrb[0].mxu0
        %v726 = vadd.f32 %v460, %v725
        %v727 = vpop.f32.mrb[0].mxu0
        %728 = vmatprep.mubr.f32.mxu0 0.0
        %729 = vmatmul.mubr.f32.gmra.mrb[0].mxu0 %v527
        %v730 = vpop.f32.mrb[0].mxu0
        %v731 = vadd.f32 %v460, %v730
        %v732 = vpop.f32.mrb[0].mxu0
        %733 = vmatprep.mubr.f32.mxu0 0.0
        %734 = vmatmul.mubr.f32.gmra.mrb[0].mxu0 %v530
        %v735 = vpop.f32.mrb[0].mxu0
        %v736 = vadd.f32 %v460, %v735
        %v737 = vpop.f32.mrb[0].mxu0
        %738 = vmatprep.mubr.f32.mxu0 0.0
        %739 = vmatmul.mubr.f32.gmra.mrb[0].mxu0 %v533
        %v740 = vpop.f32.mrb[0].mxu0
        %v741 = vadd.f32 %v460, %v740
        %v742 = vpop.f32.mrb[0].mxu0
        %743 = vmatprep.mubr.f32.mxu0 0.0
        %744 = vmatmul.mubr.f32.gmra.mrb[0].mxu0 %v536
        %v745 = vpop.f32.mrb[0].mxu0
        %v746 = vadd.f32 %v460, %v745
        %v747 = vpop.f32.mrb[0].mxu0
        %748 = vmatprep.mubr.f32.mxu0 0.0
        %749 = vmatmul.mubr.f32.gmra.mrb[0].mxu0 %v539
        %v750 = vpop.f32.mrb[0].mxu0
        %v751 = vadd.f32 %v460, %v750
        %v752 = vpop.f32.mrb[0].mxu0
        %753 = vmatprep.mubr.f32.mxu0 0.0
        %754 = vmatmul.mubr.f32.gmra.mrb[0].mxu0 %v542
        %v755 = vpop.f32.mrb[0].mxu0
        %v756 = vadd.f32 %v460, %v755
        %v757 = vpop.f32.mrb[0].mxu0
        %758 = vmatprep.mubr.f32.mxu0 0.0
        %759 = vmatmul.mubr.f32.gmra.mrb[0].mxu0 %v545
        %v760 = vpop.f32.mrb[0].mxu0
        %v761 = vadd.f32 %v460, %v760
        %v762 = vpop.f32.mrb[0].mxu0
        %763 = vmatprep.mubr.f32.mxu0 0.0
        %764 = vmatmul.mubr.f32.gmra.mrb[0].mxu0 %v548
        %v765 = vpop.f32.mrb[0].mxu0
        %v766 = vadd.f32 %v460, %v765
        %v767 = vpop.f32.mrb[0].mxu0
        %768 = vmatprep.mubr.f32.mxu0 0.0
        %769 = vmatmul.mubr.f32.gmra.mrb[0].mxu0 %v551
        %v770 = vpop.f32.mrb[0].mxu0
        %v771 = vadd.f32 %v460, %v770
        %v772 = vpop.f32.mrb[0].mxu0
        %773 = vmatprep.mubr.f32.mxu0 0.0
        %774 = vmatmul.mubr.f32.gmra.mrb[0].mxu0 %v554
        %v775 = vpop.f32.mrb[0].mxu0
        %v776 = vadd.f32 %v460, %v775
        %v777 = vpop.f32.mrb[0].mxu0
        %778 = vmatprep.mubr.f32.mxu0 0.0
        %779 = vmatmul.mubr.f32.gmra.mrb[0].mxu0 %v557
        %v780 = vpop.f32.mrb[0].mxu0
        %v781 = vadd.f32 %v460, %v780
        %v782 = vpop.f32.mrb[0].mxu0
        %783 = vdwg.mxu0
        %s784 = scalar_lea.vmem [#allocation2], 24
        %785 = vst.msk [vmem:[%s784 + $0x1] sm:$0xff] %vm376, %v626
        %786 = vst.msk [vmem:[%s784 + $0x9] sm:$0xff] %vm376, %v631
        %787 = vst.msk [vmem:[%s784 + $0x19] sm:$0xff] %vm376, %v636
        %788 = vst.msk [vmem:[%s784 + $0x21] sm:$0xff] %vm376, %v641
        %789 = vst.msk [vmem:[%s784 + $0x31] sm:$0xff] %vm376, %v646
        %790 = vst.msk [vmem:[%s784 + $0x39] sm:$0xff] %vm376, %v651
        %791 = vst.msk [vmem:[%s784 + $0x49] sm:$0xff] %vm376, %v656
        %792 = vst.msk [vmem:[%s784 + $0x51] sm:$0xff] %vm376, %v661
        %793 = vst.msk [vmem:[%s784 + $0x61] sm:$0xff] %vm376, %v666
        %794 = vst.msk [vmem:[%s784 + $0x69] sm:$0xff] %vm376, %v671
        %795 = vst.msk [vmem:[%s784 + $0x79] sm:$0xff] %vm376, %v676
        %796 = vst.msk [vmem:[%s784 + $0x81] sm:$0xff] %vm376, %v681
        %797 = vst.msk [vmem:[%s784 + $0x91] sm:$0xff] %vm376, %v686
        %798 = vst.msk [vmem:[%s784 + $0x99] sm:$0xff] %vm376, %v691
        %799 = vst.msk [vmem:[%s784 + $0xa9] sm:$0xff] %vm376, %v696
        %800 = vst.msk [vmem:[%s784 + $0xb1] sm:$0xff] %vm376, %v701
        %801 = vst.msk [vmem:[%s784 + $0xc1] sm:$0xff] %vm376, %v706
        %802 = vst.msk [vmem:[%s784 + $0xc9] sm:$0xff] %vm376, %v711
        %803 = vst.msk [vmem:[%s784 + $0xd9] sm:$0xff] %vm376, %v716
        %804 = vst.msk [vmem:[%s784 + $0xe1] sm:$0xff] %vm376, %v721
        %805 = vst.msk [vmem:[%s784 + $0xf1] sm:$0xff] %vm376, %v726
        %806 = vst.msk [vmem:[%s784 + $0xf9] sm:$0xff] %vm376, %v731
        %807 = vst.msk [vmem:[%s784 + $0x109] sm:$0xff] %vm376, %v736
        %808 = vst.msk [vmem:[%s784 + $0x111] sm:$0xff] %vm376, %v741
        %809 = vst.msk [vmem:[%s784 + $0x121] sm:$0xff] %vm376, %v746
        %810 = vst.msk [vmem:[%s784 + $0x129] sm:$0xff] %vm376, %v751
        %811 = vst.msk [vmem:[%s784 + $0x139] sm:$0xff] %vm376, %v756
        %812 = vst.msk [vmem:[%s784 + $0x141] sm:$0xff] %vm376, %v761
        %813 = vst.msk [vmem:[%s784 + $0x151] sm:$0xff] %vm376, %v766
        %814 = vst.msk [vmem:[%s784 + $0x159] sm:$0xff] %vm376, %v771
        %815 = vst.msk [vmem:[%s784 + $0x169] sm:$0xff] %vm376, %v776
        %816 = vst.msk [vmem:[%s784 + $0x171] sm:$0xff] %vm376, %v781
        %v817 = vld [vmem:[#allocation2] sm:$0xff]
        %v818 = vld [vmem:[#allocation2 + $0x8] sm:$0xff]
        %v819 = vld [vmem:[#allocation2 + $0x18] sm:$0xff]
        %v820 = vld [vmem:[#allocation2 + $0x20] sm:$0xff]
        %v821 = vld [vmem:[#allocation2 + $0x30] sm:$0xff]
        %v822 = vld [vmem:[#allocation2 + $0x38] sm:$0xff]
        %v823 = vld [vmem:[#allocation2 + $0x48] sm:$0xff]
        %v824 = vld [vmem:[#allocation2 + $0x50] sm:$0xff]
        %v825 = vld [vmem:[#allocation2 + $0x60] sm:$0xff]
        %v826 = vld [vmem:[#allocation2 + $0x68] sm:$0xff]
        %v827 = vld [vmem:[#allocation2 + $0x78] sm:$0xff]
        %v828 = vld [vmem:[#allocation2 + $0x80] sm:$0xff]
        %v829 = vld [vmem:[#allocation2 + $0x90] sm:$0xff]
        %v830 = vld [vmem:[#allocation2 + $0x98] sm:$0xff]
        %v831 = vld [vmem:[#allocation2 + $0xa8] sm:$0xff]
        %v832 = vld [vmem:[#allocation2 + $0xb0] sm:$0xff]
        %v833 = vld [vmem:[#allocation2 + $0xc0] sm:$0xff]
        %v834 = vld [vmem:[#allocation2 + $0xc8] sm:$0xff]
        %v835 = vld [vmem:[#allocation2 + $0xd8] sm:$0xff]
        %v836 = vld [vmem:[#allocation2 + $0xe0] sm:$0xff]
        %v837 = vld [vmem:[#allocation2 + $0xf0] sm:$0xff]
        %v838 = vld [vmem:[#allocation2 + $0xf8] sm:$0xff]
        %v839 = vld [vmem:[#allocation2 + $0x108] sm:$0xff]
        %v840 = vld [vmem:[#allocation2 + $0x110] sm:$0xff]
        %v841 = vld [vmem:[#allocation2 + $0x120] sm:$0xff]
        %v842 = vld [vmem:[#allocation2 + $0x128] sm:$0xff]
        %v843 = vld [vmem:[#allocation2 + $0x138] sm:$0xff]
        %v844 = vld [vmem:[#allocation2 + $0x140] sm:$0xff]
        %v845 = vld [vmem:[#allocation2 + $0x150] sm:$0xff]
        %v846 = vld [vmem:[#allocation2 + $0x158] sm:$0xff]
        %v847 = vld [vmem:[#allocation2 + $0x168] sm:$0xff]
        %v848 = vld [vmem:[#allocation2 + $0x170] sm:$0xff]
        %849 = vst.msk [vmem:[#allocation3] sm:$0xff] %vm376, %v817
        %850 = vst.msk [vmem:[#allocation3 + $0x8] sm:$0xff] %vm376, %v818
        %851 = vst.msk [vmem:[#allocation3 + $0x10] sm:$0xff] %vm376, %v819
        %852 = vst.msk [vmem:[#allocation3 + $0x18] sm:$0xff] %vm376, %v820
        %853 = vst.msk [vmem:[#allocation3 + $0x20] sm:$0xff] %vm376, %v821
        %854 = vst.msk [vmem:[#allocation3 + $0x28] sm:$0xff] %vm376, %v822
        %855 = vst.msk [vmem:[#allocation3 + $0x30] sm:$0xff] %vm376, %v823
        %856 = vst.msk [vmem:[#allocation3 + $0x38] sm:$0xff] %vm376, %v824
        %857 = vst.msk [vmem:[#allocation3 + $0x40] sm:$0xff] %vm376, %v825
        %858 = vst.msk [vmem:[#allocation3 + $0x48] sm:$0xff] %vm376, %v826
        %859 = vst.msk [vmem:[#allocation3 + $0x50] sm:$0xff] %vm376, %v827
        %860 = vst.msk [vmem:[#allocation3 + $0x58] sm:$0xff] %vm376, %v828
        %861 = vst.msk [vmem:[#allocation3 + $0x60] sm:$0xff] %vm376, %v829
        %862 = vst.msk [vmem:[#allocation3 + $0x68] sm:$0xff] %vm376, %v830
        %863 = vst.msk [vmem:[#allocation3 + $0x70] sm:$0xff] %vm376, %v831
        %864 = vst.msk [vmem:[#allocation3 + $0x78] sm:$0xff] %vm376, %v832
        %865 = vst.msk [vmem:[#allocation3 + $0x80] sm:$0xff] %vm376, %v833
        %866 = vst.msk [vmem:[#allocation3 + $0x88] sm:$0xff] %vm376, %v834
        %867 = vst.msk [vmem:[#allocation3 + $0x90] sm:$0xff] %vm376, %v835
        %868 = vst.msk [vmem:[#allocation3 + $0x98] sm:$0xff] %vm376, %v836
        %869 = vst.msk [vmem:[#allocation3 + $0xa0] sm:$0xff] %vm376, %v837
        %870 = vst.msk [vmem:[#allocation3 + $0xa8] sm:$0xff] %vm376, %v838
        %871 = vst.msk [vmem:[#allocation3 + $0xb0] sm:$0xff] %vm376, %v839
        %872 = vst.msk [vmem:[#allocation3 + $0xb8] sm:$0xff] %vm376, %v840
        %873 = vst.msk [vmem:[#allocation3 + $0xc0] sm:$0xff] %vm376, %v841
        %874 = vst.msk [vmem:[#allocation3 + $0xc8] sm:$0xff] %vm376, %v842
        %875 = vst.msk [vmem:[#allocation3 + $0xd0] sm:$0xff] %vm376, %v843
        %876 = vst.msk [vmem:[#allocation3 + $0xd8] sm:$0xff] %vm376, %v844
        %877 = vst.msk [vmem:[#allocation3 + $0xe0] sm:$0xff] %vm376, %v845
        %878 = vst.msk [vmem:[#allocation3 + $0xe8] sm:$0xff] %vm376, %v846
        %879 = vst.msk [vmem:[#allocation3 + $0xf0] sm:$0xff] %vm376, %v847
        %880 = vst.msk [vmem:[#allocation3 + $0xf8] sm:$0xff] %vm376, %v848
        %v881 = vld [vmem:[#allocation2 + $0x1] sm:$0xff]
        %v882 = vld [vmem:[#allocation2 + $0x9] sm:$0xff]
        %v883 = vld [vmem:[#allocation2 + $0x19] sm:$0xff]
        %v884 = vld [vmem:[#allocation2 + $0x21] sm:$0xff]
        %v885 = vld [vmem:[#allocation2 + $0x31] sm:$0xff]
        %v886 = vld [vmem:[#allocation2 + $0x39] sm:$0xff]
        %v887 = vld [vmem:[#allocation2 + $0x49] sm:$0xff]
        %v888 = vld [vmem:[#allocation2 + $0x51] sm:$0xff]
        %v889 = vld [vmem:[#allocation2 + $0x61] sm:$0xff]
        %v890 = vld [vmem:[#allocation2 + $0x69] sm:$0xff]
        %v891 = vld [vmem:[#allocation2 + $0x79] sm:$0xff]
        %v892 = vld [vmem:[#allocation2 + $0x81] sm:$0xff]
        %v893 = vld [vmem:[#allocation2 + $0x91] sm:$0xff]
        %v894 = vld [vmem:[#allocation2 + $0x99] sm:$0xff]
        %v895 = vld [vmem:[#allocation2 + $0xa9] sm:$0xff]
        %v896 = vld [vmem:[#allocation2 + $0xb1] sm:$0xff]
        %v897 = vld [vmem:[#allocation2 + $0xc1] sm:$0xff]
        %v898 = vld [vmem:[#allocation2 + $0xc9] sm:$0xff]
        %v899 = vld [vmem:[#allocation2 + $0xd9] sm:$0xff]
        %v900 = vld [vmem:[#allocation2 + $0xe1] sm:$0xff]
        %v901 = vld [vmem:[#allocation2 + $0xf1] sm:$0xff]
        %v902 = vld [vmem:[#allocation2 + $0xf9] sm:$0xff]
        %v903 = vld [vmem:[#allocation2 + $0x109] sm:$0xff]
        %v904 = vld [vmem:[#allocation2 + $0x111] sm:$0xff]
        %v905 = vld [vmem:[#allocation2 + $0x121] sm:$0xff]
        %v906 = vld [vmem:[#allocation2 + $0x129] sm:$0xff]
        %v907 = vld [vmem:[#allocation2 + $0x139] sm:$0xff]
        %v908 = vld [vmem:[#allocation2 + $0x141] sm:$0xff]
        %v909 = vld [vmem:[#allocation2 + $0x151] sm:$0xff]
        %v910 = vld [vmem:[#allocation2 + $0x159] sm:$0xff]
        %v911 = vld [vmem:[#allocation2 + $0x169] sm:$0xff]
        %v912 = vld [vmem:[#allocation2 + $0x171] sm:$0xff]
        %945 = vrot.lane.b32.xlu0 %v881, 4
        %v946 = vpop.permute.xlu0 %945
        %947 = vrot.lane.b32.xlu0 %v882, 4
        %v948 = vpop.permute.xlu0 %947
        %949 = vrot.lane.b32.xlu0 %v883, 4
        %v950 = vpop.permute.xlu0 %949
        %951 = vrot.lane.b32.xlu0 %v884, 4
        %v952 = vpop.permute.xlu0 %951
        %953 = vrot.lane.b32.xlu0 %v885, 4
        %v954 = vpop.permute.xlu0 %953
        %955 = vrot.lane.b32.xlu0 %v886, 4
        %v956 = vpop.permute.xlu0 %955
        %957 = vrot.lane.b32.xlu0 %v887, 4
        %v958 = vpop.permute.xlu0 %957
        %959 = vrot.lane.b32.xlu0 %v888, 4
        %v960 = vpop.permute.xlu0 %959
        %961 = vrot.lane.b32.xlu0 %v889, 4
        %v962 = vpop.permute.xlu0 %961
        %963 = vrot.lane.b32.xlu0 %v890, 4
        %v964 = vpop.permute.xlu0 %963
        %965 = vrot.lane.b32.xlu0 %v891, 4
        %v966 = vpop.permute.xlu0 %965
        %967 = vrot.lane.b32.xlu0 %v892, 4
        %v968 = vpop.permute.xlu0 %967
        %969 = vrot.lane.b32.xlu0 %v893, 4
        %v970 = vpop.permute.xlu0 %969
        %971 = vrot.lane.b32.xlu0 %v894, 4
        %v972 = vpop.permute.xlu0 %971
        %973 = vrot.lane.b32.xlu0 %v895, 4
        %v974 = vpop.permute.xlu0 %973
        %975 = vrot.lane.b32.xlu0 %v896, 4
        %v976 = vpop.permute.xlu0 %975
        %977 = vrot.lane.b32.xlu0 %v897, 4
        %v978 = vpop.permute.xlu0 %977
        %979 = vrot.lane.b32.xlu0 %v898, 4
        %v980 = vpop.permute.xlu0 %979
        %981 = vrot.lane.b32.xlu0 %v899, 4
        %v982 = vpop.permute.xlu0 %981
        %983 = vrot.lane.b32.xlu0 %v900, 4
        %v984 = vpop.permute.xlu0 %983
        %985 = vrot.lane.b32.xlu0 %v901, 4
        %v986 = vpop.permute.xlu0 %985
        %987 = vrot.lane.b32.xlu0 %v902, 4
        %v988 = vpop.permute.xlu0 %987
        %989 = vrot.lane.b32.xlu0 %v903, 4
        %v990 = vpop.permute.xlu0 %989
        %991 = vrot.lane.b32.xlu0 %v904, 4
        %v992 = vpop.permute.xlu0 %991
        %993 = vrot.lane.b32.xlu0 %v905, 4
        %v994 = vpop.permute.xlu0 %993
        %995 = vrot.lane.b32.xlu0 %v906, 4
        %v996 = vpop.permute.xlu0 %995
        %997 = vrot.lane.b32.xlu0 %v907, 4
        %v998 = vpop.permute.xlu0 %997
        %999 = vrot.lane.b32.xlu0 %v908, 4
        %v1000 = vpop.permute.xlu0 %999
        %1001 = vrot.lane.b32.xlu0 %v909, 4
        %v1002 = vpop.permute.xlu0 %1001
        %1003 = vrot.lane.b32.xlu0 %v910, 4
        %v1004 = vpop.permute.xlu0 %1003
        %1005 = vrot.lane.b32.xlu0 %v911, 4
        %v1006 = vpop.permute.xlu0 %1005
        %1007 = vrot.lane.b32.xlu0 %v912, 4
        %v1008 = vpop.permute.xlu0 %1007
        %vm1041 = vcmask 64544
        %1042 = vst.msk [vmem:[#allocation3] sm:$0xff] %vm1041, %v946
        %1043 = vst.msk [vmem:[#allocation3 + $0x8] sm:$0xff] %vm1041, %v948
        %1044 = vst.msk [vmem:[#allocation3 + $0x10] sm:$0xff] %vm1041, %v950
        %1045 = vst.msk [vmem:[#allocation3 + $0x18] sm:$0xff] %vm1041, %v952
        %1046 = vst.msk [vmem:[#allocation3 + $0x20] sm:$0xff] %vm1041, %v954
        %1047 = vst.msk [vmem:[#allocation3 + $0x28] sm:$0xff] %vm1041, %v956
        %1048 = vst.msk [vmem:[#allocation3 + $0x30] sm:$0xff] %vm1041, %v958
        %1049 = vst.msk [vmem:[#allocation3 + $0x38] sm:$0xff] %vm1041, %v960
        %1050 = vst.msk [vmem:[#allocation3 + $0x40] sm:$0xff] %vm1041, %v962
        %1051 = vst.msk [vmem:[#allocation3 + $0x48] sm:$0xff] %vm1041, %v964
        %1052 = vst.msk [vmem:[#allocation3 + $0x50] sm:$0xff] %vm1041, %v966
        %1053 = vst.msk [vmem:[#allocation3 + $0x58] sm:$0xff] %vm1041, %v968
        %1054 = vst.msk [vmem:[#allocation3 + $0x60] sm:$0xff] %vm1041, %v970
        %1055 = vst.msk [vmem:[#allocation3 + $0x68] sm:$0xff] %vm1041, %v972
        %1056 = vst.msk [vmem:[#allocation3 + $0x70] sm:$0xff] %vm1041, %v974
        %1057 = vst.msk [vmem:[#allocation3 + $0x78] sm:$0xff] %vm1041, %v976
        %1058 = vst.msk [vmem:[#allocation3 + $0x80] sm:$0xff] %vm1041, %v978
        %1059 = vst.msk [vmem:[#allocation3 + $0x88] sm:$0xff] %vm1041, %v980
        %1060 = vst.msk [vmem:[#allocation3 + $0x90] sm:$0xff] %vm1041, %v982
        %1061 = vst.msk [vmem:[#allocation3 + $0x98] sm:$0xff] %vm1041, %v984
        %1062 = vst.msk [vmem:[#allocation3 + $0xa0] sm:$0xff] %vm1041, %v986
        %1063 = vst.msk [vmem:[#allocation3 + $0xa8] sm:$0xff] %vm1041, %v988
        %1064 = vst.msk [vmem:[#allocation3 + $0xb0] sm:$0xff] %vm1041, %v990
        %1065 = vst.msk [vmem:[#allocation3 + $0xb8] sm:$0xff] %vm1041, %v992
        %1066 = vst.msk [vmem:[#allocation3 + $0xc0] sm:$0xff] %vm1041, %v994
        %1067 = vst.msk [vmem:[#allocation3 + $0xc8] sm:$0xff] %vm1041, %v996
        %1068 = vst.msk [vmem:[#allocation3 + $0xd0] sm:$0xff] %vm1041, %v998
        %1069 = vst.msk [vmem:[#allocation3 + $0xd8] sm:$0xff] %vm1041, %v1000
        %1070 = vst.msk [vmem:[#allocation3 + $0xe0] sm:$0xff] %vm1041, %v1002
        %1071 = vst.msk [vmem:[#allocation3 + $0xe8] sm:$0xff] %vm1041, %v1004
        %1072 = vst.msk [vmem:[#allocation3 + $0xf0] sm:$0xff] %vm1041, %v1006
        %1073 = vst.msk [vmem:[#allocation3 + $0xf8] sm:$0xff] %vm1041, %v1008
        %v1074 = vld [vmem:[#allocation2 + $0x2] sm:$0xff]
        %v1075 = vld [vmem:[#allocation2 + $0xa] sm:$0xff]
        %v1076 = vld [vmem:[#allocation2 + $0x1a] sm:$0xff]
        %v1077 = vld [vmem:[#allocation2 + $0x22] sm:$0xff]
        %v1078 = vld [vmem:[#allocation2 + $0x32] sm:$0xff]
        %v1079 = vld [vmem:[#allocation2 + $0x3a] sm:$0xff]
        %v1080 = vld [vmem:[#allocation2 + $0x4a] sm:$0xff]
        %v1081 = vld [vmem:[#allocation2 + $0x52] sm:$0xff]
        %v1082 = vld [vmem:[#allocation2 + $0x62] sm:$0xff]
        %v1083 = vld [vmem:[#allocation2 + $0x6a] sm:$0xff]
        %v1084 = vld [vmem:[#allocation2 + $0x7a] sm:$0xff]
        %v1085 = vld [vmem:[#allocation2 + $0x82] sm:$0xff]
        %v1086 = vld [vmem:[#allocation2 + $0x92] sm:$0xff]
        %v1087 = vld [vmem:[#allocation2 + $0x9a] sm:$0xff]
        %v1088 = vld [vmem:[#allocation2 + $0xaa] sm:$0xff]
        %v1089 = vld [vmem:[#allocation2 + $0xb2] sm:$0xff]
        %v1090 = vld [vmem:[#allocation2 + $0xc2] sm:$0xff]
        %v1091 = vld [vmem:[#allocation2 + $0xca] sm:$0xff]
        %v1092 = vld [vmem:[#allocation2 + $0xda] sm:$0xff]
        %v1093 = vld [vmem:[#allocation2 + $0xe2] sm:$0xff]
        %v1094 = vld [vmem:[#allocation2 + $0xf2] sm:$0xff]
        %v1095 = vld [vmem:[#allocation2 + $0xfa] sm:$0xff]
        %v1096 = vld [vmem:[#allocation2 + $0x10a] sm:$0xff]
        %v1097 = vld [vmem:[#allocation2 + $0x112] sm:$0xff]
        %v1098 = vld [vmem:[#allocation2 + $0x122] sm:$0xff]
        %v1099 = vld [vmem:[#allocation2 + $0x12a] sm:$0xff]
        %v1100 = vld [vmem:[#allocation2 + $0x13a] sm:$0xff]
        %v1101 = vld [vmem:[#allocation2 + $0x142] sm:$0xff]
        %v1102 = vld [vmem:[#allocation2 + $0x152] sm:$0xff]
        %v1103 = vld [vmem:[#allocation2 + $0x15a] sm:$0xff]
        %v1104 = vld [vmem:[#allocation2 + $0x16a] sm:$0xff]
        %v1105 = vld [vmem:[#allocation2 + $0x172] sm:$0xff]
        %1138 = vrot.lane.b32.xlu0 %v1074, 8
        %v1139 = vpop.permute.xlu0 %1138
        %1140 = vrot.lane.b32.xlu0 %v1075, 8
        %v1141 = vpop.permute.xlu0 %1140
        %1142 = vrot.lane.b32.xlu0 %v1076, 8
        %v1143 = vpop.permute.xlu0 %1142
        %1144 = vrot.lane.b32.xlu0 %v1077, 8
        %v1145 = vpop.permute.xlu0 %1144
        %1146 = vrot.lane.b32.xlu0 %v1078, 8
        %v1147 = vpop.permute.xlu0 %1146
        %1148 = vrot.lane.b32.xlu0 %v1079, 8
        %v1149 = vpop.permute.xlu0 %1148
        %1150 = vrot.lane.b32.xlu0 %v1080, 8
        %v1151 = vpop.permute.xlu0 %1150
        %1152 = vrot.lane.b32.xlu0 %v1081, 8
        %v1153 = vpop.permute.xlu0 %1152
        %1154 = vrot.lane.b32.xlu0 %v1082, 8
        %v1155 = vpop.permute.xlu0 %1154
        %1156 = vrot.lane.b32.xlu0 %v1083, 8
        %v1157 = vpop.permute.xlu0 %1156
        %1158 = vrot.lane.b32.xlu0 %v1084, 8
        %v1159 = vpop.permute.xlu0 %1158
        %1160 = vrot.lane.b32.xlu0 %v1085, 8
        %v1161 = vpop.permute.xlu0 %1160
        %1162 = vrot.lane.b32.xlu0 %v1086, 8
        %v1163 = vpop.permute.xlu0 %1162
        %1164 = vrot.lane.b32.xlu0 %v1087, 8
        %v1165 = vpop.permute.xlu0 %1164
        %1166 = vrot.lane.b32.xlu0 %v1088, 8
        %v1167 = vpop.permute.xlu0 %1166
        %1168 = vrot.lane.b32.xlu0 %v1089, 8
        %v1169 = vpop.permute.xlu0 %1168
        %1170 = vrot.lane.b32.xlu0 %v1090, 8
        %v1171 = vpop.permute.xlu0 %1170
        %1172 = vrot.lane.b32.xlu0 %v1091, 8
        %v1173 = vpop.permute.xlu0 %1172
        %1174 = vrot.lane.b32.xlu0 %v1092, 8
        %v1175 = vpop.permute.xlu0 %1174
        %1176 = vrot.lane.b32.xlu0 %v1093, 8
        %v1177 = vpop.permute.xlu0 %1176
        %1178 = vrot.lane.b32.xlu0 %v1094, 8
        %v1179 = vpop.permute.xlu0 %1178
        %1180 = vrot.lane.b32.xlu0 %v1095, 8
        %v1181 = vpop.permute.xlu0 %1180
        %1182 = vrot.lane.b32.xlu0 %v1096, 8
        %v1183 = vpop.permute.xlu0 %1182
        %1184 = vrot.lane.b32.xlu0 %v1097, 8
        %v1185 = vpop.permute.xlu0 %1184
        %1186 = vrot.lane.b32.xlu0 %v1098, 8
        %v1187 = vpop.permute.xlu0 %1186
        %1188 = vrot.lane.b32.xlu0 %v1099, 8
        %v1189 = vpop.permute.xlu0 %1188
        %1190 = vrot.lane.b32.xlu0 %v1100, 8
        %v1191 = vpop.permute.xlu0 %1190
        %1192 = vrot.lane.b32.xlu0 %v1101, 8
        %v1193 = vpop.permute.xlu0 %1192
        %1194 = vrot.lane.b32.xlu0 %v1102, 8
        %v1195 = vpop.permute.xlu0 %1194
        %1196 = vrot.lane.b32.xlu0 %v1103, 8
        %v1197 = vpop.permute.xlu0 %1196
        %1198 = vrot.lane.b32.xlu0 %v1104, 8
        %v1199 = vpop.permute.xlu0 %1198
        %1200 = vrot.lane.b32.xlu0 %v1105, 8
        %v1201 = vpop.permute.xlu0 %1200
        %vm1234 = vcmask 97344
        %1235 = vst.msk [vmem:[#allocation3] sm:$0xff] %vm1234, %v1139
        %1236 = vst.msk [vmem:[#allocation3 + $0x8] sm:$0xff] %vm1234, %v1141
        %1237 = vst.msk [vmem:[#allocation3 + $0x10] sm:$0xff] %vm1234, %v1143
        %1238 = vst.msk [vmem:[#allocation3 + $0x18] sm:$0xff] %vm1234, %v1145
        %1239 = vst.msk [vmem:[#allocation3 + $0x20] sm:$0xff] %vm1234, %v1147
        %1240 = vst.msk [vmem:[#allocation3 + $0x28] sm:$0xff] %vm1234, %v1149
        %1241 = vst.msk [vmem:[#allocation3 + $0x30] sm:$0xff] %vm1234, %v1151
        %1242 = vst.msk [vmem:[#allocation3 + $0x38] sm:$0xff] %vm1234, %v1153
        %1243 = vst.msk [vmem:[#allocation3 + $0x40] sm:$0xff] %vm1234, %v1155
        %1244 = vst.msk [vmem:[#allocation3 + $0x48] sm:$0xff] %vm1234, %v1157
        %1245 = vst.msk [vmem:[#allocation3 + $0x50] sm:$0xff] %vm1234, %v1159
        %1246 = vst.msk [vmem:[#allocation3 + $0x58] sm:$0xff] %vm1234, %v1161
        %1247 = vst.msk [vmem:[#allocation3 + $0x60] sm:$0xff] %vm1234, %v1163
        %1248 = vst.msk [vmem:[#allocation3 + $0x68] sm:$0xff] %vm1234, %v1165
        %1249 = vst.msk [vmem:[#allocation3 + $0x70] sm:$0xff] %vm1234, %v1167
        %1250 = vst.msk [vmem:[#allocation3 + $0x78] sm:$0xff] %vm1234, %v1169
        %1251 = vst.msk [vmem:[#allocation3 + $0x80] sm:$0xff] %vm1234, %v1171
        %1252 = vst.msk [vmem:[#allocation3 + $0x88] sm:$0xff] %vm1234, %v1173
        %1253 = vst.msk [vmem:[#allocation3 + $0x90] sm:$0xff] %vm1234, %v1175
        %1254 = vst.msk [vmem:[#allocation3 + $0x98] sm:$0xff] %vm1234, %v1177
        %1255 = vst.msk [vmem:[#allocation3 + $0xa0] sm:$0xff] %vm1234, %v1179
        %1256 = vst.msk [vmem:[#allocation3 + $0xa8] sm:$0xff] %vm1234, %v1181
        %1257 = vst.msk [vmem:[#allocation3 + $0xb0] sm:$0xff] %vm1234, %v1183
        %1258 = vst.msk [vmem:[#allocation3 + $0xb8] sm:$0xff] %vm1234, %v1185
        %1259 = vst.msk [vmem:[#allocation3 + $0xc0] sm:$0xff] %vm1234, %v1187
        %1260 = vst.msk [vmem:[#allocation3 + $0xc8] sm:$0xff] %vm1234, %v1189
        %1261 = vst.msk [vmem:[#allocation3 + $0xd0] sm:$0xff] %vm1234, %v1191
        %1262 = vst.msk [vmem:[#allocation3 + $0xd8] sm:$0xff] %vm1234, %v1193
        %1263 = vst.msk [vmem:[#allocation3 + $0xe0] sm:$0xff] %vm1234, %v1195
        %1264 = vst.msk [vmem:[#allocation3 + $0xe8] sm:$0xff] %vm1234, %v1197
        %1265 = vst.msk [vmem:[#allocation3 + $0xf0] sm:$0xff] %vm1234, %v1199
        %1266 = vst.msk [vmem:[#allocation3 + $0xf8] sm:$0xff] %vm1234, %v1201
        %v1267 = vld [vmem:[%s784] sm:$0xff]
        %v1268 = vld [vmem:[%s784 + $0x8] sm:$0xff]
        %v1269 = vld [vmem:[%s784 + $0x18] sm:$0xff]
        %v1270 = vld [vmem:[%s784 + $0x20] sm:$0xff]
        %v1271 = vld [vmem:[%s784 + $0x30] sm:$0xff]
        %v1272 = vld [vmem:[%s784 + $0x38] sm:$0xff]
        %v1273 = vld [vmem:[%s784 + $0x48] sm:$0xff]
        %v1274 = vld [vmem:[%s784 + $0x50] sm:$0xff]
        %v1275 = vld [vmem:[%s784 + $0x60] sm:$0xff]
        %v1276 = vld [vmem:[%s784 + $0x68] sm:$0xff]
        %v1277 = vld [vmem:[%s784 + $0x78] sm:$0xff]
        %v1278 = vld [vmem:[%s784 + $0x80] sm:$0xff]
        %v1279 = vld [vmem:[%s784 + $0x90] sm:$0xff]
        %v1280 = vld [vmem:[%s784 + $0x98] sm:$0xff]
        %v1281 = vld [vmem:[%s784 + $0xa8] sm:$0xff]
        %v1282 = vld [vmem:[%s784 + $0xb0] sm:$0xff]
        %v1283 = vld [vmem:[%s784 + $0xc0] sm:$0xff]
        %v1284 = vld [vmem:[%s784 + $0xc8] sm:$0xff]
        %v1285 = vld [vmem:[%s784 + $0xd8] sm:$0xff]
        %v1286 = vld [vmem:[%s784 + $0xe0] sm:$0xff]
        %v1287 = vld [vmem:[%s784 + $0xf0] sm:$0xff]
        %v1288 = vld [vmem:[%s784 + $0xf8] sm:$0xff]
        %v1289 = vld [vmem:[%s784 + $0x108] sm:$0xff]
        %v1290 = vld [vmem:[%s784 + $0x110] sm:$0xff]
        %v1291 = vld [vmem:[%s784 + $0x120] sm:$0xff]
        %v1292 = vld [vmem:[%s784 + $0x128] sm:$0xff]
        %v1293 = vld [vmem:[%s784 + $0x138] sm:$0xff]
        %v1294 = vld [vmem:[%s784 + $0x140] sm:$0xff]
        %v1295 = vld [vmem:[%s784 + $0x150] sm:$0xff]
        %v1296 = vld [vmem:[%s784 + $0x158] sm:$0xff]
        %v1297 = vld [vmem:[%s784 + $0x168] sm:$0xff]
        %v1298 = vld [vmem:[%s784 + $0x170] sm:$0xff]
        %1331 = vrot.lane.b32.xlu0 %v1267, 12
        %v1332 = vpop.permute.xlu0 %1331
        %1333 = vrot.lane.b32.xlu0 %v1268, 12
        %v1334 = vpop.permute.xlu0 %1333
        %1335 = vrot.lane.b32.xlu0 %v1269, 12
        %v1336 = vpop.permute.xlu0 %1335
        %1337 = vrot.lane.b32.xlu0 %v1270, 12
        %v1338 = vpop.permute.xlu0 %1337
        %1339 = vrot.lane.b32.xlu0 %v1271, 12
        %v1340 = vpop.permute.xlu0 %1339
        %1341 = vrot.lane.b32.xlu0 %v1272, 12
        %v1342 = vpop.permute.xlu0 %1341
        %1343 = vrot.lane.b32.xlu0 %v1273, 12
        %v1344 = vpop.permute.xlu0 %1343
        %1345 = vrot.lane.b32.xlu0 %v1274, 12
        %v1346 = vpop.permute.xlu0 %1345
        %1347 = vrot.lane.b32.xlu0 %v1275, 12
        %v1348 = vpop.permute.xlu0 %1347
        %1349 = vrot.lane.b32.xlu0 %v1276, 12
        %v1350 = vpop.permute.xlu0 %1349
        %1351 = vrot.lane.b32.xlu0 %v1277, 12
        %v1352 = vpop.permute.xlu0 %1351
        %1353 = vrot.lane.b32.xlu0 %v1278, 12
        %v1354 = vpop.permute.xlu0 %1353
        %1355 = vrot.lane.b32.xlu0 %v1279, 12
        %v1356 = vpop.permute.xlu0 %1355
        %1357 = vrot.lane.b32.xlu0 %v1280, 12
        %v1358 = vpop.permute.xlu0 %1357
        %1359 = vrot.lane.b32.xlu0 %v1281, 12
        %v1360 = vpop.permute.xlu0 %1359
        %1361 = vrot.lane.b32.xlu0 %v1282, 12
        %v1362 = vpop.permute.xlu0 %1361
        %1363 = vrot.lane.b32.xlu0 %v1283, 12
        %v1364 = vpop.permute.xlu0 %1363
        %1365 = vrot.lane.b32.xlu0 %v1284, 12
        %v1366 = vpop.permute.xlu0 %1365
        %1367 = vrot.lane.b32.xlu0 %v1285, 12
        %v1368 = vpop.permute.xlu0 %1367
        %1369 = vrot.lane.b32.xlu0 %v1286, 12
        %v1370 = vpop.permute.xlu0 %1369
        %1371 = vrot.lane.b32.xlu0 %v1287, 12
        %v1372 = vpop.permute.xlu0 %1371
        %1373 = vrot.lane.b32.xlu0 %v1288, 12
        %v1374 = vpop.permute.xlu0 %1373
        %1375 = vrot.lane.b32.xlu0 %v1289, 12
        %v1376 = vpop.permute.xlu0 %1375
        %1377 = vrot.lane.b32.xlu0 %v1290, 12
        %v1378 = vpop.permute.xlu0 %1377
        %1379 = vrot.lane.b32.xlu0 %v1291, 12
        %v1380 = vpop.permute.xlu0 %1379
        %1381 = vrot.lane.b32.xlu0 %v1292, 12
        %v1382 = vpop.permute.xlu0 %1381
        %1383 = vrot.lane.b32.xlu0 %v1293, 12
        %v1384 = vpop.permute.xlu0 %1383
        %1385 = vrot.lane.b32.xlu0 %v1294, 12
        %v1386 = vpop.permute.xlu0 %1385
        %1387 = vrot.lane.b32.xlu0 %v1295, 12
        %v1388 = vpop.permute.xlu0 %1387
        %1389 = vrot.lane.b32.xlu0 %v1296, 12
        %v1390 = vpop.permute.xlu0 %1389
        %1391 = vrot.lane.b32.xlu0 %v1297, 12
        %v1392 = vpop.permute.xlu0 %1391
        %1393 = vrot.lane.b32.xlu0 %v1298, 12
        %v1394 = vpop.permute.xlu0 %1393
        %vm1427 = vcmask 130144
        %1428 = vst.msk [vmem:[#allocation3] sm:$0xff] %vm1427, %v1332
        %1429 = vst.msk [vmem:[#allocation3 + $0x8] sm:$0xff] %vm1427, %v1334
        %1430 = vst.msk [vmem:[#allocation3 + $0x10] sm:$0xff] %vm1427, %v1336
        %1431 = vst.msk [vmem:[#allocation3 + $0x18] sm:$0xff] %vm1427, %v1338
        %1432 = vst.msk [vmem:[#allocation3 + $0x20] sm:$0xff] %vm1427, %v1340
        %1433 = vst.msk [vmem:[#allocation3 + $0x28] sm:$0xff] %vm1427, %v1342
        %1434 = vst.msk [vmem:[#allocation3 + $0x30] sm:$0xff] %vm1427, %v1344
        %1435 = vst.msk [vmem:[#allocation3 + $0x38] sm:$0xff] %vm1427, %v1346
        %1436 = vst.msk [vmem:[#allocation3 + $0x40] sm:$0xff] %vm1427, %v1348
        %1437 = vst.msk [vmem:[#allocation3 + $0x48] sm:$0xff] %vm1427, %v1350
        %1438 = vst.msk [vmem:[#allocation3 + $0x50] sm:$0xff] %vm1427, %v1352
        %1439 = vst.msk [vmem:[#allocation3 + $0x58] sm:$0xff] %vm1427, %v1354
        %1440 = vst.msk [vmem:[#allocation3 + $0x60] sm:$0xff] %vm1427, %v1356
        %1441 = vst.msk [vmem:[#allocation3 + $0x68] sm:$0xff] %vm1427, %v1358
        %1442 = vst.msk [vmem:[#allocation3 + $0x70] sm:$0xff] %vm1427, %v1360
        %1443 = vst.msk [vmem:[#allocation3 + $0x78] sm:$0xff] %vm1427, %v1362
        %1444 = vst.msk [vmem:[#allocation3 + $0x80] sm:$0xff] %vm1427, %v1364
        %1445 = vst.msk [vmem:[#allocation3 + $0x88] sm:$0xff] %vm1427, %v1366
        %1446 = vst.msk [vmem:[#allocation3 + $0x90] sm:$0xff] %vm1427, %v1368
        %1447 = vst.msk [vmem:[#allocation3 + $0x98] sm:$0xff] %vm1427, %v1370
        %1448 = vst.msk [vmem:[#allocation3 + $0xa0] sm:$0xff] %vm1427, %v1372
        %1449 = vst.msk [vmem:[#allocation3 + $0xa8] sm:$0xff] %vm1427, %v1374
        %1450 = vst.msk [vmem:[#allocation3 + $0xb0] sm:$0xff] %vm1427, %v1376
        %1451 = vst.msk [vmem:[#allocation3 + $0xb8] sm:$0xff] %vm1427, %v1378
        %1452 = vst.msk [vmem:[#allocation3 + $0xc0] sm:$0xff] %vm1427, %v1380
        %1453 = vst.msk [vmem:[#allocation3 + $0xc8] sm:$0xff] %vm1427, %v1382
        %1454 = vst.msk [vmem:[#allocation3 + $0xd0] sm:$0xff] %vm1427, %v1384
        %1455 = vst.msk [vmem:[#allocation3 + $0xd8] sm:$0xff] %vm1427, %v1386
        %1456 = vst.msk [vmem:[#allocation3 + $0xe0] sm:$0xff] %vm1427, %v1388
        %1457 = vst.msk [vmem:[#allocation3 + $0xe8] sm:$0xff] %vm1427, %v1390
        %1458 = vst.msk [vmem:[#allocation3 + $0xf0] sm:$0xff] %vm1427, %v1392
        %1459 = vst.msk [vmem:[#allocation3 + $0xf8] sm:$0xff] %vm1427, %v1394
        %v1460 = vld [vmem:[%s784 + $0x1] sm:$0xff]
        %v1461 = vld [vmem:[%s784 + $0x9] sm:$0xff]
        %v1462 = vld [vmem:[%s784 + $0x19] sm:$0xff]
        %v1463 = vld [vmem:[%s784 + $0x21] sm:$0xff]
        %v1464 = vld [vmem:[%s784 + $0x31] sm:$0xff]
        %v1465 = vld [vmem:[%s784 + $0x39] sm:$0xff]
        %v1466 = vld [vmem:[%s784 + $0x49] sm:$0xff]
        %v1467 = vld [vmem:[%s784 + $0x51] sm:$0xff]
        %v1468 = vld [vmem:[%s784 + $0x61] sm:$0xff]
        %v1469 = vld [vmem:[%s784 + $0x69] sm:$0xff]
        %v1470 = vld [vmem:[%s784 + $0x79] sm:$0xff]
        %v1471 = vld [vmem:[%s784 + $0x81] sm:$0xff]
        %v1472 = vld [vmem:[%s784 + $0x91] sm:$0xff]
        %v1473 = vld [vmem:[%s784 + $0x99] sm:$0xff]
        %v1474 = vld [vmem:[%s784 + $0xa9] sm:$0xff]
        %v1475 = vld [vmem:[%s784 + $0xb1] sm:$0xff]
        %v1476 = vld [vmem:[%s784 + $0xc1] sm:$0xff]
        %v1477 = vld [vmem:[%s784 + $0xc9] sm:$0xff]
        %v1478 = vld [vmem:[%s784 + $0xd9] sm:$0xff]
        %v1479 = vld [vmem:[%s784 + $0xe1] sm:$0xff]
        %v1480 = vld [vmem:[%s784 + $0xf1] sm:$0xff]
        %v1481 = vld [vmem:[%s784 + $0xf9] sm:$0xff]
        %v1482 = vld [vmem:[%s784 + $0x109] sm:$0xff]
        %v1483 = vld [vmem:[%s784 + $0x111] sm:$0xff]
        %v1484 = vld [vmem:[%s784 + $0x121] sm:$0xff]
        %v1485 = vld [vmem:[%s784 + $0x129] sm:$0xff]
        %v1486 = vld [vmem:[%s784 + $0x139] sm:$0xff]
        %v1487 = vld [vmem:[%s784 + $0x141] sm:$0xff]
        %v1488 = vld [vmem:[%s784 + $0x151] sm:$0xff]
        %v1489 = vld [vmem:[%s784 + $0x159] sm:$0xff]
        %v1490 = vld [vmem:[%s784 + $0x169] sm:$0xff]
        %v1491 = vld [vmem:[%s784 + $0x171] sm:$0xff]
        %1524 = vrot.lane.b32.xlu0 %v1460, 16
        %v1525 = vpop.permute.xlu0 %1524
        %1526 = vrot.lane.b32.xlu0 %v1461, 16
        %v1527 = vpop.permute.xlu0 %1526
        %1528 = vrot.lane.b32.xlu0 %v1462, 16
        %v1529 = vpop.permute.xlu0 %1528
        %1530 = vrot.lane.b32.xlu0 %v1463, 16
        %v1531 = vpop.permute.xlu0 %1530
        %1532 = vrot.lane.b32.xlu0 %v1464, 16
        %v1533 = vpop.permute.xlu0 %1532
        %1534 = vrot.lane.b32.xlu0 %v1465, 16
        %v1535 = vpop.permute.xlu0 %1534
        %1536 = vrot.lane.b32.xlu0 %v1466, 16
        %v1537 = vpop.permute.xlu0 %1536
        %1538 = vrot.lane.b32.xlu0 %v1467, 16
        %v1539 = vpop.permute.xlu0 %1538
        %1540 = vrot.lane.b32.xlu0 %v1468, 16
        %v1541 = vpop.permute.xlu0 %1540
        %1542 = vrot.lane.b32.xlu0 %v1469, 16
        %v1543 = vpop.permute.xlu0 %1542
        %1544 = vrot.lane.b32.xlu0 %v1470, 16
        %v1545 = vpop.permute.xlu0 %1544
        %1546 = vrot.lane.b32.xlu0 %v1471, 16
        %v1547 = vpop.permute.xlu0 %1546
        %1548 = vrot.lane.b32.xlu0 %v1472, 16
        %v1549 = vpop.permute.xlu0 %1548
        %1550 = vrot.lane.b32.xlu0 %v1473, 16
        %v1551 = vpop.permute.xlu0 %1550
        %1552 = vrot.lane.b32.xlu0 %v1474, 16
        %v1553 = vpop.permute.xlu0 %1552
        %1554 = vrot.lane.b32.xlu0 %v1475, 16
        %v1555 = vpop.permute.xlu0 %1554
        %1556 = vrot.lane.b32.xlu0 %v1476, 16
        %v1557 = vpop.permute.xlu0 %1556
        %1558 = vrot.lane.b32.xlu0 %v1477, 16
        %v1559 = vpop.permute.xlu0 %1558
        %1560 = vrot.lane.b32.xlu0 %v1478, 16
        %v1561 = vpop.permute.xlu0 %1560
        %1562 = vrot.lane.b32.xlu0 %v1479, 16
        %v1563 = vpop.permute.xlu0 %1562
        %1564 = vrot.lane.b32.xlu0 %v1480, 16
        %v1565 = vpop.permute.xlu0 %1564
        %1566 = vrot.lane.b32.xlu0 %v1481, 16
        %v1567 = vpop.permute.xlu0 %1566
        %1568 = vrot.lane.b32.xlu0 %v1482, 16
        %v1569 = vpop.permute.xlu0 %1568
        %1570 = vrot.lane.b32.xlu0 %v1483, 16
        %v1571 = vpop.permute.xlu0 %1570
        %1572 = vrot.lane.b32.xlu0 %v1484, 16
        %v1573 = vpop.permute.xlu0 %1572
        %1574 = vrot.lane.b32.xlu0 %v1485, 16
        %v1575 = vpop.permute.xlu0 %1574
        %1576 = vrot.lane.b32.xlu0 %v1486, 16
        %v1577 = vpop.permute.xlu0 %1576
        %1578 = vrot.lane.b32.xlu0 %v1487, 16
        %v1579 = vpop.permute.xlu0 %1578
        %1580 = vrot.lane.b32.xlu0 %v1488, 16
        %v1581 = vpop.permute.xlu0 %1580
        %1582 = vrot.lane.b32.xlu0 %v1489, 16
        %v1583 = vpop.permute.xlu0 %1582
        %1584 = vrot.lane.b32.xlu0 %v1490, 16
        %v1585 = vpop.permute.xlu0 %1584
        %1586 = vrot.lane.b32.xlu0 %v1491, 16
        %v1587 = vpop.permute.xlu0 %1586
        %vm1620 = vcmask 162944
        %1621 = vst.msk [vmem:[#allocation3] sm:$0xff] %vm1620, %v1525
        %1622 = vst.msk [vmem:[#allocation3 + $0x8] sm:$0xff] %vm1620, %v1527
        %1623 = vst.msk [vmem:[#allocation3 + $0x10] sm:$0xff] %vm1620, %v1529
        %1624 = vst.msk [vmem:[#allocation3 + $0x18] sm:$0xff] %vm1620, %v1531
        %1625 = vst.msk [vmem:[#allocation3 + $0x20] sm:$0xff] %vm1620, %v1533
        %1626 = vst.msk [vmem:[#allocation3 + $0x28] sm:$0xff] %vm1620, %v1535
        %1627 = vst.msk [vmem:[#allocation3 + $0x30] sm:$0xff] %vm1620, %v1537
        %1628 = vst.msk [vmem:[#allocation3 + $0x38] sm:$0xff] %vm1620, %v1539
        %1629 = vst.msk [vmem:[#allocation3 + $0x40] sm:$0xff] %vm1620, %v1541
        %1630 = vst.msk [vmem:[#allocation3 + $0x48] sm:$0xff] %vm1620, %v1543
        %1631 = vst.msk [vmem:[#allocation3 + $0x50] sm:$0xff] %vm1620, %v1545
        %1632 = vst.msk [vmem:[#allocation3 + $0x58] sm:$0xff] %vm1620, %v1547
        %1633 = vst.msk [vmem:[#allocation3 + $0x60] sm:$0xff] %vm1620, %v1549
        %1634 = vst.msk [vmem:[#allocation3 + $0x68] sm:$0xff] %vm1620, %v1551
        %1635 = vst.msk [vmem:[#allocation3 + $0x70] sm:$0xff] %vm1620, %v1553
        %1636 = vst.msk [vmem:[#allocation3 + $0x78] sm:$0xff] %vm1620, %v1555
        %1637 = vst.msk [vmem:[#allocation3 + $0x80] sm:$0xff] %vm1620, %v1557
        %1638 = vst.msk [vmem:[#allocation3 + $0x88] sm:$0xff] %vm1620, %v1559
        %1639 = vst.msk [vmem:[#allocation3 + $0x90] sm:$0xff] %vm1620, %v1561
        %1640 = vst.msk [vmem:[#allocation3 + $0x98] sm:$0xff] %vm1620, %v1563
        %1641 = vst.msk [vmem:[#allocation3 + $0xa0] sm:$0xff] %vm1620, %v1565
        %1642 = vst.msk [vmem:[#allocation3 + $0xa8] sm:$0xff] %vm1620, %v1567
        %1643 = vst.msk [vmem:[#allocation3 + $0xb0] sm:$0xff] %vm1620, %v1569
        %1644 = vst.msk [vmem:[#allocation3 + $0xb8] sm:$0xff] %vm1620, %v1571
        %1645 = vst.msk [vmem:[#allocation3 + $0xc0] sm:$0xff] %vm1620, %v1573
        %1646 = vst.msk [vmem:[#allocation3 + $0xc8] sm:$0xff] %vm1620, %v1575
        %1647 = vst.msk [vmem:[#allocation3 + $0xd0] sm:$0xff] %vm1620, %v1577
        %1648 = vst.msk [vmem:[#allocation3 + $0xd8] sm:$0xff] %vm1620, %v1579
        %1649 = vst.msk [vmem:[#allocation3 + $0xe0] sm:$0xff] %vm1620, %v1581
        %1650 = vst.msk [vmem:[#allocation3 + $0xe8] sm:$0xff] %vm1620, %v1583
        %1651 = vst.msk [vmem:[#allocation3 + $0xf0] sm:$0xff] %vm1620, %v1585
        %1652 = vst.msk [vmem:[#allocation3 + $0xf8] sm:$0xff] %vm1620, %v1587
        %v1653 = vld [vmem:[%s784 + $0x2] sm:$0xff]
        %v1654 = vld [vmem:[%s784 + $0xa] sm:$0xff]
        %v1655 = vld [vmem:[%s784 + $0x1a] sm:$0xff]
        %v1656 = vld [vmem:[%s784 + $0x22] sm:$0xff]
        %v1657 = vld [vmem:[%s784 + $0x32] sm:$0xff]
        %v1658 = vld [vmem:[%s784 + $0x3a] sm:$0xff]
        %v1659 = vld [vmem:[%s784 + $0x4a] sm:$0xff]
        %v1660 = vld [vmem:[%s784 + $0x52] sm:$0xff]
        %v1661 = vld [vmem:[%s784 + $0x62] sm:$0xff]
        %v1662 = vld [vmem:[%s784 + $0x6a] sm:$0xff]
        %v1663 = vld [vmem:[%s784 + $0x7a] sm:$0xff]
        %v1664 = vld [vmem:[%s784 + $0x82] sm:$0xff]
        %v1665 = vld [vmem:[%s784 + $0x92] sm:$0xff]
        %v1666 = vld [vmem:[%s784 + $0x9a] sm:$0xff]
        %v1667 = vld [vmem:[%s784 + $0xaa] sm:$0xff]
        %v1668 = vld [vmem:[%s784 + $0xb2] sm:$0xff]
        %v1669 = vld [vmem:[%s784 + $0xc2] sm:$0xff]
        %v1670 = vld [vmem:[%s784 + $0xca] sm:$0xff]
        %v1671 = vld [vmem:[%s784 + $0xda] sm:$0xff]
        %v1672 = vld [vmem:[%s784 + $0xe2] sm:$0xff]
        %v1673 = vld [vmem:[%s784 + $0xf2] sm:$0xff]
        %v1674 = vld [vmem:[%s784 + $0xfa] sm:$0xff]
        %v1675 = vld [vmem:[%s784 + $0x10a] sm:$0xff]
        %v1676 = vld [vmem:[%s784 + $0x112] sm:$0xff]
        %v1677 = vld [vmem:[%s784 + $0x122] sm:$0xff]
        %v1678 = vld [vmem:[%s784 + $0x12a] sm:$0xff]
        %v1679 = vld [vmem:[%s784 + $0x13a] sm:$0xff]
        %v1680 = vld [vmem:[%s784 + $0x142] sm:$0xff]
        %v1681 = vld [vmem:[%s784 + $0x152] sm:$0xff]
        %v1682 = vld [vmem:[%s784 + $0x15a] sm:$0xff]
        %v1683 = vld [vmem:[%s784 + $0x16a] sm:$0xff]
        %v1684 = vld [vmem:[%s784 + $0x172] sm:$0xff]
        %1717 = vrot.lane.b32.xlu0 %v1653, 20
        %v1718 = vpop.permute.xlu0 %1717
        %1719 = vrot.lane.b32.xlu0 %v1654, 20
        %v1720 = vpop.permute.xlu0 %1719
        %1721 = vrot.lane.b32.xlu0 %v1655, 20
        %v1722 = vpop.permute.xlu0 %1721
        %1723 = vrot.lane.b32.xlu0 %v1656, 20
        %v1724 = vpop.permute.xlu0 %1723
        %1725 = vrot.lane.b32.xlu0 %v1657, 20
        %v1726 = vpop.permute.xlu0 %1725
        %1727 = vrot.lane.b32.xlu0 %v1658, 20
        %v1728 = vpop.permute.xlu0 %1727
        %1729 = vrot.lane.b32.xlu0 %v1659, 20
        %v1730 = vpop.permute.xlu0 %1729
        %1731 = vrot.lane.b32.xlu0 %v1660, 20
        %v1732 = vpop.permute.xlu0 %1731
        %1733 = vrot.lane.b32.xlu0 %v1661, 20
        %v1734 = vpop.permute.xlu0 %1733
        %1735 = vrot.lane.b32.xlu0 %v1662, 20
        %v1736 = vpop.permute.xlu0 %1735
        %1737 = vrot.lane.b32.xlu0 %v1663, 20
        %v1738 = vpop.permute.xlu0 %1737
        %1739 = vrot.lane.b32.xlu0 %v1664, 20
        %v1740 = vpop.permute.xlu0 %1739
        %1741 = vrot.lane.b32.xlu0 %v1665, 20
        %v1742 = vpop.permute.xlu0 %1741
        %1743 = vrot.lane.b32.xlu0 %v1666, 20
        %v1744 = vpop.permute.xlu0 %1743
        %1745 = vrot.lane.b32.xlu0 %v1667, 20
        %v1746 = vpop.permute.xlu0 %1745
        %1747 = vrot.lane.b32.xlu0 %v1668, 20
        %v1748 = vpop.permute.xlu0 %1747
        %1749 = vrot.lane.b32.xlu0 %v1669, 20
        %v1750 = vpop.permute.xlu0 %1749
        %1751 = vrot.lane.b32.xlu0 %v1670, 20
        %v1752 = vpop.permute.xlu0 %1751
        %1753 = vrot.lane.b32.xlu0 %v1671, 20
        %v1754 = vpop.permute.xlu0 %1753
        %1755 = vrot.lane.b32.xlu0 %v1672, 20
        %v1756 = vpop.permute.xlu0 %1755
        %1757 = vrot.lane.b32.xlu0 %v1673, 20
        %v1758 = vpop.permute.xlu0 %1757
        %1759 = vrot.lane.b32.xlu0 %v1674, 20
        %v1760 = vpop.permute.xlu0 %1759
        %1761 = vrot.lane.b32.xlu0 %v1675, 20
        %v1762 = vpop.permute.xlu0 %1761
        %1763 = vrot.lane.b32.xlu0 %v1676, 20
        %v1764 = vpop.permute.xlu0 %1763
        %1765 = vrot.lane.b32.xlu0 %v1677, 20
        %v1766 = vpop.permute.xlu0 %1765
        %1767 = vrot.lane.b32.xlu0 %v1678, 20
        %v1768 = vpop.permute.xlu0 %1767
        %1769 = vrot.lane.b32.xlu0 %v1679, 20
        %v1770 = vpop.permute.xlu0 %1769
        %1771 = vrot.lane.b32.xlu0 %v1680, 20
        %v1772 = vpop.permute.xlu0 %1771
        %1773 = vrot.lane.b32.xlu0 %v1681, 20
        %v1774 = vpop.permute.xlu0 %1773
        %1775 = vrot.lane.b32.xlu0 %v1682, 20
        %v1776 = vpop.permute.xlu0 %1775
        %1777 = vrot.lane.b32.xlu0 %v1683, 20
        %v1778 = vpop.permute.xlu0 %1777
        %1779 = vrot.lane.b32.xlu0 %v1684, 20
        %v1780 = vpop.permute.xlu0 %1779
        %vm1813 = vcmask 195744
        %1814 = vst.msk [vmem:[#allocation3] sm:$0xff] %vm1813, %v1718
        %1815 = vst.msk [vmem:[#allocation3 + $0x8] sm:$0xff] %vm1813, %v1720
        %1816 = vst.msk [vmem:[#allocation3 + $0x10] sm:$0xff] %vm1813, %v1722
        %1817 = vst.msk [vmem:[#allocation3 + $0x18] sm:$0xff] %vm1813, %v1724
        %1818 = vst.msk [vmem:[#allocation3 + $0x20] sm:$0xff] %vm1813, %v1726
        %1819 = vst.msk [vmem:[#allocation3 + $0x28] sm:$0xff] %vm1813, %v1728
        %1820 = vst.msk [vmem:[#allocation3 + $0x30] sm:$0xff] %vm1813, %v1730
        %1821 = vst.msk [vmem:[#allocation3 + $0x38] sm:$0xff] %vm1813, %v1732
        %1822 = vst.msk [vmem:[#allocation3 + $0x40] sm:$0xff] %vm1813, %v1734
        %1823 = vst.msk [vmem:[#allocation3 + $0x48] sm:$0xff] %vm1813, %v1736
        %1824 = vst.msk [vmem:[#allocation3 + $0x50] sm:$0xff] %vm1813, %v1738
        %1825 = vst.msk [vmem:[#allocation3 + $0x58] sm:$0xff] %vm1813, %v1740
        %1826 = vst.msk [vmem:[#allocation3 + $0x60] sm:$0xff] %vm1813, %v1742
        %1827 = vst.msk [vmem:[#allocation3 + $0x68] sm:$0xff] %vm1813, %v1744
        %1828 = vst.msk [vmem:[#allocation3 + $0x70] sm:$0xff] %vm1813, %v1746
        %1829 = vst.msk [vmem:[#allocation3 + $0x78] sm:$0xff] %vm1813, %v1748
        %1830 = vst.msk [vmem:[#allocation3 + $0x80] sm:$0xff] %vm1813, %v1750
        %1831 = vst.msk [vmem:[#allocation3 + $0x88] sm:$0xff] %vm1813, %v1752
        %1832 = vst.msk [vmem:[#allocation3 + $0x90] sm:$0xff] %vm1813, %v1754
        %1833 = vst.msk [vmem:[#allocation3 + $0x98] sm:$0xff] %vm1813, %v1756
        %1834 = vst.msk [vmem:[#allocation3 + $0xa0] sm:$0xff] %vm1813, %v1758
        %1835 = vst.msk [vmem:[#allocation3 + $0xa8] sm:$0xff] %vm1813, %v1760
        %1836 = vst.msk [vmem:[#allocation3 + $0xb0] sm:$0xff] %vm1813, %v1762
        %1837 = vst.msk [vmem:[#allocation3 + $0xb8] sm:$0xff] %vm1813, %v1764
        %1838 = vst.msk [vmem:[#allocation3 + $0xc0] sm:$0xff] %vm1813, %v1766
        %1839 = vst.msk [vmem:[#allocation3 + $0xc8] sm:$0xff] %vm1813, %v1768
        %1840 = vst.msk [vmem:[#allocation3 + $0xd0] sm:$0xff] %vm1813, %v1770
        %1841 = vst.msk [vmem:[#allocation3 + $0xd8] sm:$0xff] %vm1813, %v1772
        %1842 = vst.msk [vmem:[#allocation3 + $0xe0] sm:$0xff] %vm1813, %v1774
        %1843 = vst.msk [vmem:[#allocation3 + $0xe8] sm:$0xff] %vm1813, %v1776
        %1844 = vst.msk [vmem:[#allocation3 + $0xf0] sm:$0xff] %vm1813, %v1778
        %1845 = vst.msk [vmem:[#allocation3 + $0xf8] sm:$0xff] %vm1813, %v1780
        %s1846 = scalar_lea.vmem [#allocation2], 48
        %v1847 = vld [vmem:[%s1846] sm:$0xff]
        %v1848 = vld [vmem:[%s1846 + $0x8] sm:$0xff]
        %v1849 = vld [vmem:[%s1846 + $0x18] sm:$0xff]
        %v1850 = vld [vmem:[%s1846 + $0x20] sm:$0xff]
        %v1851 = vld [vmem:[%s1846 + $0x30] sm:$0xff]
        %v1852 = vld [vmem:[%s1846 + $0x38] sm:$0xff]
        %v1853 = vld [vmem:[%s1846 + $0x48] sm:$0xff]
        %v1854 = vld [vmem:[%s1846 + $0x50] sm:$0xff]
        %v1855 = vld [vmem:[%s1846 + $0x60] sm:$0xff]
        %v1856 = vld [vmem:[%s1846 + $0x68] sm:$0xff]
        %v1857 = vld [vmem:[%s1846 + $0x78] sm:$0xff]
        %v1858 = vld [vmem:[%s1846 + $0x80] sm:$0xff]
        %v1859 = vld [vmem:[%s1846 + $0x90] sm:$0xff]
        %v1860 = vld [vmem:[%s1846 + $0x98] sm:$0xff]
        %v1861 = vld [vmem:[%s1846 + $0xa8] sm:$0xff]
        %v1862 = vld [vmem:[%s1846 + $0xb0] sm:$0xff]
        %v1863 = vld [vmem:[%s1846 + $0xc0] sm:$0xff]
        %v1864 = vld [vmem:[%s1846 + $0xc8] sm:$0xff]
        %v1865 = vld [vmem:[%s1846 + $0xd8] sm:$0xff]
        %v1866 = vld [vmem:[%s1846 + $0xe0] sm:$0xff]
        %v1867 = vld [vmem:[%s1846 + $0xf0] sm:$0xff]
        %v1868 = vld [vmem:[%s1846 + $0xf8] sm:$0xff]
        %v1869 = vld [vmem:[%s1846 + $0x108] sm:$0xff]
        %v1870 = vld [vmem:[%s1846 + $0x110] sm:$0xff]
        %v1871 = vld [vmem:[%s1846 + $0x120] sm:$0xff]
        %v1872 = vld [vmem:[%s1846 + $0x128] sm:$0xff]
        %v1873 = vld [vmem:[%s1846 + $0x138] sm:$0xff]
        %v1874 = vld [vmem:[%s1846 + $0x140] sm:$0xff]
        %v1875 = vld [vmem:[%s1846 + $0x150] sm:$0xff]
        %v1876 = vld [vmem:[%s1846 + $0x158] sm:$0xff]
        %v1877 = vld [vmem:[%s1846 + $0x168] sm:$0xff]
        %v1878 = vld [vmem:[%s1846 + $0x170] sm:$0xff]
        %1911 = vrot.lane.b32.xlu0 %v1847, 24
        %v1912 = vpop.permute.xlu0 %1911
        %1913 = vrot.lane.b32.xlu0 %v1848, 24
        %v1914 = vpop.permute.xlu0 %1913
        %1915 = vrot.lane.b32.xlu0 %v1849, 24
        %v1916 = vpop.permute.xlu0 %1915
        %1917 = vrot.lane.b32.xlu0 %v1850, 24
        %v1918 = vpop.permute.xlu0 %1917
        %1919 = vrot.lane.b32.xlu0 %v1851, 24
        %v1920 = vpop.permute.xlu0 %1919
        %1921 = vrot.lane.b32.xlu0 %v1852, 24
        %v1922 = vpop.permute.xlu0 %1921
        %1923 = vrot.lane.b32.xlu0 %v1853, 24
        %v1924 = vpop.permute.xlu0 %1923
        %1925 = vrot.lane.b32.xlu0 %v1854, 24
        %v1926 = vpop.permute.xlu0 %1925
        %1927 = vrot.lane.b32.xlu0 %v1855, 24
        %v1928 = vpop.permute.xlu0 %1927
        %1929 = vrot.lane.b32.xlu0 %v1856, 24
        %v1930 = vpop.permute.xlu0 %1929
        %1931 = vrot.lane.b32.xlu0 %v1857, 24
        %v1932 = vpop.permute.xlu0 %1931
        %1933 = vrot.lane.b32.xlu0 %v1858, 24
        %v1934 = vpop.permute.xlu0 %1933
        %1935 = vrot.lane.b32.xlu0 %v1859, 24
        %v1936 = vpop.permute.xlu0 %1935
        %1937 = vrot.lane.b32.xlu0 %v1860, 24
        %v1938 = vpop.permute.xlu0 %1937
        %1939 = vrot.lane.b32.xlu0 %v1861, 24
        %v1940 = vpop.permute.xlu0 %1939
        %1941 = vrot.lane.b32.xlu0 %v1862, 24
        %v1942 = vpop.permute.xlu0 %1941
        %1943 = vrot.lane.b32.xlu0 %v1863, 24
        %v1944 = vpop.permute.xlu0 %1943
        %1945 = vrot.lane.b32.xlu0 %v1864, 24
        %v1946 = vpop.permute.xlu0 %1945
        %1947 = vrot.lane.b32.xlu0 %v1865, 24
        %v1948 = vpop.permute.xlu0 %1947
        %1949 = vrot.lane.b32.xlu0 %v1866, 24
        %v1950 = vpop.permute.xlu0 %1949
        %1951 = vrot.lane.b32.xlu0 %v1867, 24
        %v1952 = vpop.permute.xlu0 %1951
        %1953 = vrot.lane.b32.xlu0 %v1868, 24
        %v1954 = vpop.permute.xlu0 %1953
        %1955 = vrot.lane.b32.xlu0 %v1869, 24
        %v1956 = vpop.permute.xlu0 %1955
        %1957 = vrot.lane.b32.xlu0 %v1870, 24
        %v1958 = vpop.permute.xlu0 %1957
        %1959 = vrot.lane.b32.xlu0 %v1871, 24
        %v1960 = vpop.permute.xlu0 %1959
        %1961 = vrot.lane.b32.xlu0 %v1872, 24
        %v1962 = vpop.permute.xlu0 %1961
        %1963 = vrot.lane.b32.xlu0 %v1873, 24
        %v1964 = vpop.permute.xlu0 %1963
        %1965 = vrot.lane.b32.xlu0 %v1874, 24
        %v1966 = vpop.permute.xlu0 %1965
        %1967 = vrot.lane.b32.xlu0 %v1875, 24
        %v1968 = vpop.permute.xlu0 %1967
        %1969 = vrot.lane.b32.xlu0 %v1876, 24
        %v1970 = vpop.permute.xlu0 %1969
        %1971 = vrot.lane.b32.xlu0 %v1877, 24
        %v1972 = vpop.permute.xlu0 %1971
        %1973 = vrot.lane.b32.xlu0 %v1878, 24
        %v1974 = vpop.permute.xlu0 %1973
        %vm2007 = vcmask 228544
        %2008 = vst.msk [vmem:[#allocation3] sm:$0xff] %vm2007, %v1912
        %2009 = vst.msk [vmem:[#allocation3 + $0x8] sm:$0xff] %vm2007, %v1914
        %2010 = vst.msk [vmem:[#allocation3 + $0x10] sm:$0xff] %vm2007, %v1916
        %2011 = vst.msk [vmem:[#allocation3 + $0x18] sm:$0xff] %vm2007, %v1918
        %2012 = vst.msk [vmem:[#allocation3 + $0x20] sm:$0xff] %vm2007, %v1920
        %2013 = vst.msk [vmem:[#allocation3 + $0x28] sm:$0xff] %vm2007, %v1922
        %2014 = vst.msk [vmem:[#allocation3 + $0x30] sm:$0xff] %vm2007, %v1924
        %2015 = vst.msk [vmem:[#allocation3 + $0x38] sm:$0xff] %vm2007, %v1926
        %2016 = vst.msk [vmem:[#allocation3 + $0x40] sm:$0xff] %vm2007, %v1928
        %2017 = vst.msk [vmem:[#allocation3 + $0x48] sm:$0xff] %vm2007, %v1930
        %2018 = vst.msk [vmem:[#allocation3 + $0x50] sm:$0xff] %vm2007, %v1932
        %2019 = vst.msk [vmem:[#allocation3 + $0x58] sm:$0xff] %vm2007, %v1934
        %2020 = vst.msk [vmem:[#allocation3 + $0x60] sm:$0xff] %vm2007, %v1936
        %2021 = vst.msk [vmem:[#allocation3 + $0x68] sm:$0xff] %vm2007, %v1938
        %2022 = vst.msk [vmem:[#allocation3 + $0x70] sm:$0xff] %vm2007, %v1940
        %2023 = vst.msk [vmem:[#allocation3 + $0x78] sm:$0xff] %vm2007, %v1942
        %2024 = vst.msk [vmem:[#allocation3 + $0x80] sm:$0xff] %vm2007, %v1944
        %2025 = vst.msk [vmem:[#allocation3 + $0x88] sm:$0xff] %vm2007, %v1946
        %2026 = vst.msk [vmem:[#allocation3 + $0x90] sm:$0xff] %vm2007, %v1948
        %2027 = vst.msk [vmem:[#allocation3 + $0x98] sm:$0xff] %vm2007, %v1950
        %2028 = vst.msk [vmem:[#allocation3 + $0xa0] sm:$0xff] %vm2007, %v1952
        %2029 = vst.msk [vmem:[#allocation3 + $0xa8] sm:$0xff] %vm2007, %v1954
        %2030 = vst.msk [vmem:[#allocation3 + $0xb0] sm:$0xff] %vm2007, %v1956
        %2031 = vst.msk [vmem:[#allocation3 + $0xb8] sm:$0xff] %vm2007, %v1958
        %2032 = vst.msk [vmem:[#allocation3 + $0xc0] sm:$0xff] %vm2007, %v1960
        %2033 = vst.msk [vmem:[#allocation3 + $0xc8] sm:$0xff] %vm2007, %v1962
        %2034 = vst.msk [vmem:[#allocation3 + $0xd0] sm:$0xff] %vm2007, %v1964
        %2035 = vst.msk [vmem:[#allocation3 + $0xd8] sm:$0xff] %vm2007, %v1966
        %2036 = vst.msk [vmem:[#allocation3 + $0xe0] sm:$0xff] %vm2007, %v1968
        %2037 = vst.msk [vmem:[#allocation3 + $0xe8] sm:$0xff] %vm2007, %v1970
        %2038 = vst.msk [vmem:[#allocation3 + $0xf0] sm:$0xff] %vm2007, %v1972
        %2039 = vst.msk [vmem:[#allocation3 + $0xf8] sm:$0xff] %vm2007, %v1974
        %v2040 = vld [vmem:[%s1846 + $0x1] sm:$0xff]
        %v2041 = vld [vmem:[%s1846 + $0x9] sm:$0xff]
        %v2042 = vld [vmem:[%s1846 + $0x19] sm:$0xff]
        %v2043 = vld [vmem:[%s1846 + $0x21] sm:$0xff]
        %v2044 = vld [vmem:[%s1846 + $0x31] sm:$0xff]
        %v2045 = vld [vmem:[%s1846 + $0x39] sm:$0xff]
        %v2046 = vld [vmem:[%s1846 + $0x49] sm:$0xff]
        %v2047 = vld [vmem:[%s1846 + $0x51] sm:$0xff]
        %v2048 = vld [vmem:[%s1846 + $0x61] sm:$0xff]
        %v2049 = vld [vmem:[%s1846 + $0x69] sm:$0xff]
        %v2050 = vld [vmem:[%s1846 + $0x79] sm:$0xff]
        %v2051 = vld [vmem:[%s1846 + $0x81] sm:$0xff]
        %v2052 = vld [vmem:[%s1846 + $0x91] sm:$0xff]
        %v2053 = vld [vmem:[%s1846 + $0x99] sm:$0xff]
        %v2054 = vld [vmem:[%s1846 + $0xa9] sm:$0xff]
        %v2055 = vld [vmem:[%s1846 + $0xb1] sm:$0xff]
        %v2056 = vld [vmem:[%s1846 + $0xc1] sm:$0xff]
        %v2057 = vld [vmem:[%s1846 + $0xc9] sm:$0xff]
        %v2058 = vld [vmem:[%s1846 + $0xd9] sm:$0xff]
        %v2059 = vld [vmem:[%s1846 + $0xe1] sm:$0xff]
        %v2060 = vld [vmem:[%s1846 + $0xf1] sm:$0xff]
        %v2061 = vld [vmem:[%s1846 + $0xf9] sm:$0xff]
        %v2062 = vld [vmem:[%s1846 + $0x109] sm:$0xff]
        %v2063 = vld [vmem:[%s1846 + $0x111] sm:$0xff]
        %v2064 = vld [vmem:[%s1846 + $0x121] sm:$0xff]
        %v2065 = vld [vmem:[%s1846 + $0x129] sm:$0xff]
        %v2066 = vld [vmem:[%s1846 + $0x139] sm:$0xff]
        %v2067 = vld [vmem:[%s1846 + $0x141] sm:$0xff]
        %v2068 = vld [vmem:[%s1846 + $0x151] sm:$0xff]
        %v2069 = vld [vmem:[%s1846 + $0x159] sm:$0xff]
        %v2070 = vld [vmem:[%s1846 + $0x169] sm:$0xff]
        %v2071 = vld [vmem:[%s1846 + $0x171] sm:$0xff]
        %2104 = vrot.lane.b32.xlu0 %v2040, 28
        %v2105 = vpop.permute.xlu0 %2104
        %2106 = vrot.lane.b32.xlu0 %v2041, 28
        %v2107 = vpop.permute.xlu0 %2106
        %2108 = vrot.lane.b32.xlu0 %v2042, 28
        %v2109 = vpop.permute.xlu0 %2108
        %2110 = vrot.lane.b32.xlu0 %v2043, 28
        %v2111 = vpop.permute.xlu0 %2110
        %2112 = vrot.lane.b32.xlu0 %v2044, 28
        %v2113 = vpop.permute.xlu0 %2112
        %2114 = vrot.lane.b32.xlu0 %v2045, 28
        %v2115 = vpop.permute.xlu0 %2114
        %2116 = vrot.lane.b32.xlu0 %v2046, 28
        %v2117 = vpop.permute.xlu0 %2116
        %2118 = vrot.lane.b32.xlu0 %v2047, 28
        %v2119 = vpop.permute.xlu0 %2118
        %2120 = vrot.lane.b32.xlu0 %v2048, 28
        %v2121 = vpop.permute.xlu0 %2120
        %2122 = vrot.lane.b32.xlu0 %v2049, 28
        %v2123 = vpop.permute.xlu0 %2122
        %2124 = vrot.lane.b32.xlu0 %v2050, 28
        %v2125 = vpop.permute.xlu0 %2124
        %2126 = vrot.lane.b32.xlu0 %v2051, 28
        %v2127 = vpop.permute.xlu0 %2126
        %2128 = vrot.lane.b32.xlu0 %v2052, 28
        %v2129 = vpop.permute.xlu0 %2128
        %2130 = vrot.lane.b32.xlu0 %v2053, 28
        %v2131 = vpop.permute.xlu0 %2130
        %2132 = vrot.lane.b32.xlu0 %v2054, 28
        %v2133 = vpop.permute.xlu0 %2132
        %2134 = vrot.lane.b32.xlu0 %v2055, 28
        %v2135 = vpop.permute.xlu0 %2134
        %2136 = vrot.lane.b32.xlu0 %v2056, 28
        %v2137 = vpop.permute.xlu0 %2136
        %2138 = vrot.lane.b32.xlu0 %v2057, 28
        %v2139 = vpop.permute.xlu0 %2138
        %2140 = vrot.lane.b32.xlu0 %v2058, 28
        %v2141 = vpop.permute.xlu0 %2140
        %2142 = vrot.lane.b32.xlu0 %v2059, 28
        %v2143 = vpop.permute.xlu0 %2142
        %2144 = vrot.lane.b32.xlu0 %v2060, 28
        %v2145 = vpop.permute.xlu0 %2144
        %2146 = vrot.lane.b32.xlu0 %v2061, 28
        %v2147 = vpop.permute.xlu0 %2146
        %2148 = vrot.lane.b32.xlu0 %v2062, 28
        %v2149 = vpop.permute.xlu0 %2148
        %2150 = vrot.lane.b32.xlu0 %v2063, 28
        %v2151 = vpop.permute.xlu0 %2150
        %2152 = vrot.lane.b32.xlu0 %v2064, 28
        %v2153 = vpop.permute.xlu0 %2152
        %2154 = vrot.lane.b32.xlu0 %v2065, 28
        %v2155 = vpop.permute.xlu0 %2154
        %2156 = vrot.lane.b32.xlu0 %v2066, 28
        %v2157 = vpop.permute.xlu0 %2156
        %2158 = vrot.lane.b32.xlu0 %v2067, 28
        %v2159 = vpop.permute.xlu0 %2158
        %2160 = vrot.lane.b32.xlu0 %v2068, 28
        %v2161 = vpop.permute.xlu0 %2160
        %2162 = vrot.lane.b32.xlu0 %v2069, 28
        %v2163 = vpop.permute.xlu0 %2162
        %2164 = vrot.lane.b32.xlu0 %v2070, 28
        %v2165 = vpop.permute.xlu0 %2164
        %2166 = vrot.lane.b32.xlu0 %v2071, 28
        %v2167 = vpop.permute.xlu0 %2166
        %vm2200 = vcmask 261344
        %2201 = vst.msk [vmem:[#allocation3] sm:$0xff] %vm2200, %v2105
        %2202 = vst.msk [vmem:[#allocation3 + $0x8] sm:$0xff] %vm2200, %v2107
        %2203 = vst.msk [vmem:[#allocation3 + $0x10] sm:$0xff] %vm2200, %v2109
        %2204 = vst.msk [vmem:[#allocation3 + $0x18] sm:$0xff] %vm2200, %v2111
        %2205 = vst.msk [vmem:[#allocation3 + $0x20] sm:$0xff] %vm2200, %v2113
        %2206 = vst.msk [vmem:[#allocation3 + $0x28] sm:$0xff] %vm2200, %v2115
        %2207 = vst.msk [vmem:[#allocation3 + $0x30] sm:$0xff] %vm2200, %v2117
        %2208 = vst.msk [vmem:[#allocation3 + $0x38] sm:$0xff] %vm2200, %v2119
        %2209 = vst.msk [vmem:[#allocation3 + $0x40] sm:$0xff] %vm2200, %v2121
        %2210 = vst.msk [vmem:[#allocation3 + $0x48] sm:$0xff] %vm2200, %v2123
        %2211 = vst.msk [vmem:[#allocation3 + $0x50] sm:$0xff] %vm2200, %v2125
        %2212 = vst.msk [vmem:[#allocation3 + $0x58] sm:$0xff] %vm2200, %v2127
        %2213 = vst.msk [vmem:[#allocation3 + $0x60] sm:$0xff] %vm2200, %v2129
        %2214 = vst.msk [vmem:[#allocation3 + $0x68] sm:$0xff] %vm2200, %v2131
        %2215 = vst.msk [vmem:[#allocation3 + $0x70] sm:$0xff] %vm2200, %v2133
        %2216 = vst.msk [vmem:[#allocation3 + $0x78] sm:$0xff] %vm2200, %v2135
        %2217 = vst.msk [vmem:[#allocation3 + $0x80] sm:$0xff] %vm2200, %v2137
        %2218 = vst.msk [vmem:[#allocation3 + $0x88] sm:$0xff] %vm2200, %v2139
        %2219 = vst.msk [vmem:[#allocation3 + $0x90] sm:$0xff] %vm2200, %v2141
        %2220 = vst.msk [vmem:[#allocation3 + $0x98] sm:$0xff] %vm2200, %v2143
        %2221 = vst.msk [vmem:[#allocation3 + $0xa0] sm:$0xff] %vm2200, %v2145
        %2222 = vst.msk [vmem:[#allocation3 + $0xa8] sm:$0xff] %vm2200, %v2147
        %2223 = vst.msk [vmem:[#allocation3 + $0xb0] sm:$0xff] %vm2200, %v2149
        %2224 = vst.msk [vmem:[#allocation3 + $0xb8] sm:$0xff] %vm2200, %v2151
        %2225 = vst.msk [vmem:[#allocation3 + $0xc0] sm:$0xff] %vm2200, %v2153
        %2226 = vst.msk [vmem:[#allocation3 + $0xc8] sm:$0xff] %vm2200, %v2155
        %2227 = vst.msk [vmem:[#allocation3 + $0xd0] sm:$0xff] %vm2200, %v2157
        %2228 = vst.msk [vmem:[#allocation3 + $0xd8] sm:$0xff] %vm2200, %v2159
        %2229 = vst.msk [vmem:[#allocation3 + $0xe0] sm:$0xff] %vm2200, %v2161
        %2230 = vst.msk [vmem:[#allocation3 + $0xe8] sm:$0xff] %vm2200, %v2163
        %2231 = vst.msk [vmem:[#allocation3 + $0xf0] sm:$0xff] %vm2200, %v2165
        %2232 = vst.msk [vmem:[#allocation3 + $0xf8] sm:$0xff] %vm2200, %v2167
        %v2233 = vld [vmem:[%s1846 + $0x2] sm:$0xff]
        %v2234 = vld [vmem:[%s1846 + $0xa] sm:$0xff]
        %v2235 = vld [vmem:[%s1846 + $0x1a] sm:$0xff]
        %v2236 = vld [vmem:[%s1846 + $0x22] sm:$0xff]
        %v2237 = vld [vmem:[%s1846 + $0x32] sm:$0xff]
        %v2238 = vld [vmem:[%s1846 + $0x3a] sm:$0xff]
        %v2239 = vld [vmem:[%s1846 + $0x4a] sm:$0xff]
        %v2240 = vld [vmem:[%s1846 + $0x52] sm:$0xff]
        %v2241 = vld [vmem:[%s1846 + $0x62] sm:$0xff]
        %v2242 = vld [vmem:[%s1846 + $0x6a] sm:$0xff]
        %v2243 = vld [vmem:[%s1846 + $0x7a] sm:$0xff]
        %v2244 = vld [vmem:[%s1846 + $0x82] sm:$0xff]
        %v2245 = vld [vmem:[%s1846 + $0x92] sm:$0xff]
        %v2246 = vld [vmem:[%s1846 + $0x9a] sm:$0xff]
        %v2247 = vld [vmem:[%s1846 + $0xaa] sm:$0xff]
        %v2248 = vld [vmem:[%s1846 + $0xb2] sm:$0xff]
        %v2249 = vld [vmem:[%s1846 + $0xc2] sm:$0xff]
        %v2250 = vld [vmem:[%s1846 + $0xca] sm:$0xff]
        %v2251 = vld [vmem:[%s1846 + $0xda] sm:$0xff]
        %v2252 = vld [vmem:[%s1846 + $0xe2] sm:$0xff]
        %v2253 = vld [vmem:[%s1846 + $0xf2] sm:$0xff]
        %v2254 = vld [vmem:[%s1846 + $0xfa] sm:$0xff]
        %v2255 = vld [vmem:[%s1846 + $0x10a] sm:$0xff]
        %v2256 = vld [vmem:[%s1846 + $0x112] sm:$0xff]
        %v2257 = vld [vmem:[%s1846 + $0x122] sm:$0xff]
        %v2258 = vld [vmem:[%s1846 + $0x12a] sm:$0xff]
        %v2259 = vld [vmem:[%s1846 + $0x13a] sm:$0xff]
        %v2260 = vld [vmem:[%s1846 + $0x142] sm:$0xff]
        %v2261 = vld [vmem:[%s1846 + $0x152] sm:$0xff]
        %v2262 = vld [vmem:[%s1846 + $0x15a] sm:$0xff]
        %v2263 = vld [vmem:[%s1846 + $0x16a] sm:$0xff]
        %v2264 = vld [vmem:[%s1846 + $0x172] sm:$0xff]
        %2297 = vrot.lane.b32.xlu0 %v2233, 32
        %v2298 = vpop.permute.xlu0 %2297
        %2299 = vrot.lane.b32.xlu0 %v2234, 32
        %v2300 = vpop.permute.xlu0 %2299
        %2301 = vrot.lane.b32.xlu0 %v2235, 32
        %v2302 = vpop.permute.xlu0 %2301
        %2303 = vrot.lane.b32.xlu0 %v2236, 32
        %v2304 = vpop.permute.xlu0 %2303
        %2305 = vrot.lane.b32.xlu0 %v2237, 32
        %v2306 = vpop.permute.xlu0 %2305
        %2307 = vrot.lane.b32.xlu0 %v2238, 32
        %v2308 = vpop.permute.xlu0 %2307
        %2309 = vrot.lane.b32.xlu0 %v2239, 32
        %v2310 = vpop.permute.xlu0 %2309
        %2311 = vrot.lane.b32.xlu0 %v2240, 32
        %v2312 = vpop.permute.xlu0 %2311
        %2313 = vrot.lane.b32.xlu0 %v2241, 32
        %v2314 = vpop.permute.xlu0 %2313
        %2315 = vrot.lane.b32.xlu0 %v2242, 32
        %v2316 = vpop.permute.xlu0 %2315
        %2317 = vrot.lane.b32.xlu0 %v2243, 32
        %v2318 = vpop.permute.xlu0 %2317
        %2319 = vrot.lane.b32.xlu0 %v2244, 32
        %v2320 = vpop.permute.xlu0 %2319
        %2321 = vrot.lane.b32.xlu0 %v2245, 32
        %v2322 = vpop.permute.xlu0 %2321
        %2323 = vrot.lane.b32.xlu0 %v2246, 32
        %v2324 = vpop.permute.xlu0 %2323
        %2325 = vrot.lane.b32.xlu0 %v2247, 32
        %v2326 = vpop.permute.xlu0 %2325
        %2327 = vrot.lane.b32.xlu0 %v2248, 32
        %v2328 = vpop.permute.xlu0 %2327
        %2329 = vrot.lane.b32.xlu0 %v2249, 32
        %v2330 = vpop.permute.xlu0 %2329
        %2331 = vrot.lane.b32.xlu0 %v2250, 32
        %v2332 = vpop.permute.xlu0 %2331
        %2333 = vrot.lane.b32.xlu0 %v2251, 32
        %v2334 = vpop.permute.xlu0 %2333
        %2335 = vrot.lane.b32.xlu0 %v2252, 32
        %v2336 = vpop.permute.xlu0 %2335
        %2337 = vrot.lane.b32.xlu0 %v2253, 32
        %v2338 = vpop.permute.xlu0 %2337
        %2339 = vrot.lane.b32.xlu0 %v2254, 32
        %v2340 = vpop.permute.xlu0 %2339
        %2341 = vrot.lane.b32.xlu0 %v2255, 32
        %v2342 = vpop.permute.xlu0 %2341
        %2343 = vrot.lane.b32.xlu0 %v2256, 32
        %v2344 = vpop.permute.xlu0 %2343
        %2345 = vrot.lane.b32.xlu0 %v2257, 32
        %v2346 = vpop.permute.xlu0 %2345
        %2347 = vrot.lane.b32.xlu0 %v2258, 32
        %v2348 = vpop.permute.xlu0 %2347
        %2349 = vrot.lane.b32.xlu0 %v2259, 32
        %v2350 = vpop.permute.xlu0 %2349
        %2351 = vrot.lane.b32.xlu0 %v2260, 32
        %v2352 = vpop.permute.xlu0 %2351
        %2353 = vrot.lane.b32.xlu0 %v2261, 32
        %v2354 = vpop.permute.xlu0 %2353
        %2355 = vrot.lane.b32.xlu0 %v2262, 32
        %v2356 = vpop.permute.xlu0 %2355
        %2357 = vrot.lane.b32.xlu0 %v2263, 32
        %v2358 = vpop.permute.xlu0 %2357
        %2359 = vrot.lane.b32.xlu0 %v2264, 32
        %v2360 = vpop.permute.xlu0 %2359
        %vm2393 = vcmask 294144
        %2394 = vst.msk [vmem:[#allocation3] sm:$0xff] %vm2393, %v2298
        %2395 = vst.msk [vmem:[#allocation3 + $0x8] sm:$0xff] %vm2393, %v2300
        %2396 = vst.msk [vmem:[#allocation3 + $0x10] sm:$0xff] %vm2393, %v2302
        %2397 = vst.msk [vmem:[#allocation3 + $0x18] sm:$0xff] %vm2393, %v2304
        %2398 = vst.msk [vmem:[#allocation3 + $0x20] sm:$0xff] %vm2393, %v2306
        %2399 = vst.msk [vmem:[#allocation3 + $0x28] sm:$0xff] %vm2393, %v2308
        %2400 = vst.msk [vmem:[#allocation3 + $0x30] sm:$0xff] %vm2393, %v2310
        %2401 = vst.msk [vmem:[#allocation3 + $0x38] sm:$0xff] %vm2393, %v2312
        %2402 = vst.msk [vmem:[#allocation3 + $0x40] sm:$0xff] %vm2393, %v2314
        %2403 = vst.msk [vmem:[#allocation3 + $0x48] sm:$0xff] %vm2393, %v2316
        %2404 = vst.msk [vmem:[#allocation3 + $0x50] sm:$0xff] %vm2393, %v2318
        %2405 = vst.msk [vmem:[#allocation3 + $0x58] sm:$0xff] %vm2393, %v2320
        %2406 = vst.msk [vmem:[#allocation3 + $0x60] sm:$0xff] %vm2393, %v2322
        %2407 = vst.msk [vmem:[#allocation3 + $0x68] sm:$0xff] %vm2393, %v2324
        %2408 = vst.msk [vmem:[#allocation3 + $0x70] sm:$0xff] %vm2393, %v2326
        %2409 = vst.msk [vmem:[#allocation3 + $0x78] sm:$0xff] %vm2393, %v2328
        %2410 = vst.msk [vmem:[#allocation3 + $0x80] sm:$0xff] %vm2393, %v2330
        %2411 = vst.msk [vmem:[#allocation3 + $0x88] sm:$0xff] %vm2393, %v2332
        %2412 = vst.msk [vmem:[#allocation3 + $0x90] sm:$0xff] %vm2393, %v2334
        %2413 = vst.msk [vmem:[#allocation3 + $0x98] sm:$0xff] %vm2393, %v2336
        %2414 = vst.msk [vmem:[#allocation3 + $0xa0] sm:$0xff] %vm2393, %v2338
        %2415 = vst.msk [vmem:[#allocation3 + $0xa8] sm:$0xff] %vm2393, %v2340
        %2416 = vst.msk [vmem:[#allocation3 + $0xb0] sm:$0xff] %vm2393, %v2342
        %2417 = vst.msk [vmem:[#allocation3 + $0xb8] sm:$0xff] %vm2393, %v2344
        %2418 = vst.msk [vmem:[#allocation3 + $0xc0] sm:$0xff] %vm2393, %v2346
        %2419 = vst.msk [vmem:[#allocation3 + $0xc8] sm:$0xff] %vm2393, %v2348
        %2420 = vst.msk [vmem:[#allocation3 + $0xd0] sm:$0xff] %vm2393, %v2350
        %2421 = vst.msk [vmem:[#allocation3 + $0xd8] sm:$0xff] %vm2393, %v2352
        %2422 = vst.msk [vmem:[#allocation3 + $0xe0] sm:$0xff] %vm2393, %v2354
        %2423 = vst.msk [vmem:[#allocation3 + $0xe8] sm:$0xff] %vm2393, %v2356
        %2424 = vst.msk [vmem:[#allocation3 + $0xf0] sm:$0xff] %vm2393, %v2358
        %2425 = vst.msk [vmem:[#allocation3 + $0xf8] sm:$0xff] %vm2393, %v2360
        %v2426 = vld [vmem:[#allocation3] sm:$0xff]
        %v2427 = vld [vmem:[#allocation3 + $0x8] sm:$0xff]
        %v2428 = vld [vmem:[#allocation3 + $0x10] sm:$0xff]
        %v2429 = vld [vmem:[#allocation3 + $0x18] sm:$0xff]
        %v2430 = vld [vmem:[#allocation3 + $0x20] sm:$0xff]
        %v2431 = vld [vmem:[#allocation3 + $0x28] sm:$0xff]
        %v2432 = vld [vmem:[#allocation3 + $0x30] sm:$0xff]
        %v2433 = vld [vmem:[#allocation3 + $0x38] sm:$0xff]
        %v2434 = vld [vmem:[#allocation3 + $0x40] sm:$0xff]
        %v2435 = vld [vmem:[#allocation3 + $0x48] sm:$0xff]
        %v2436 = vld [vmem:[#allocation3 + $0x50] sm:$0xff]
        %v2437 = vld [vmem:[#allocation3 + $0x58] sm:$0xff]
        %v2438 = vld [vmem:[#allocation3 + $0x60] sm:$0xff]
        %v2439 = vld [vmem:[#allocation3 + $0x68] sm:$0xff]
        %v2440 = vld [vmem:[#allocation3 + $0x70] sm:$0xff]
        %v2441 = vld [vmem:[#allocation3 + $0x78] sm:$0xff]
        %v2442 = vld [vmem:[#allocation3 + $0x80] sm:$0xff]
        %v2443 = vld [vmem:[#allocation3 + $0x88] sm:$0xff]
        %v2444 = vld [vmem:[#allocation3 + $0x90] sm:$0xff]
        %v2445 = vld [vmem:[#allocation3 + $0x98] sm:$0xff]
        %v2446 = vld [vmem:[#allocation3 + $0xa0] sm:$0xff]
        %v2447 = vld [vmem:[#allocation3 + $0xa8] sm:$0xff]
        %v2448 = vld [vmem:[#allocation3 + $0xb0] sm:$0xff]
        %v2449 = vld [vmem:[#allocation3 + $0xb8] sm:$0xff]
        %v2450 = vld [vmem:[#allocation3 + $0xc0] sm:$0xff]
        %v2451 = vld [vmem:[#allocation3 + $0xc8] sm:$0xff]
        %v2452 = vld [vmem:[#allocation3 + $0xd0] sm:$0xff]
        %v2453 = vld [vmem:[#allocation3 + $0xd8] sm:$0xff]
        %v2454 = vld [vmem:[#allocation3 + $0xe0] sm:$0xff]
        %v2455 = vld [vmem:[#allocation3 + $0xe8] sm:$0xff]
        %v2456 = vld [vmem:[#allocation3 + $0xf0] sm:$0xff]
        %v2457 = vld [vmem:[#allocation3 + $0xf8] sm:$0xff]
        %v2458 = vld [vmem:[#allocation10] sm:$0xff]
        %v2459 = vld [vmem:[#allocation10 + $0x8] sm:$0xff]
        %v2460 = vld [vmem:[#allocation10 + $0x10] sm:$0xff]
        %v2461 = vld [vmem:[#allocation10 + $0x18] sm:$0xff]
        %v2462 = vld [vmem:[#allocation10 + $0x20] sm:$0xf]
        %v2463 = vld [vmem:[#allocation12] sm:$0x1]
        %v2465 = vlaneseq
        %v2466 = vshrl.u32 %v2465, 7
        %v2467 = vsub.s32 0, %v2466
        %v2468 = vrot.slane %v2463, %v2467
        %vm2470 = vcmask 293888
        %v2472 = vsel %vm2470, %v2426, 0
        %v2475 = vsel %vm2470, %v2427, 0
        %v2478 = vsel %vm2470, %v2428, 0
        %v2481 = vsel %vm2470, %v2429, 0
        %v2484 = vsel %vm2470, %v2430, 0
        %v2487 = vsel %vm2470, %v2431, 0
        %v2490 = vsel %vm2470, %v2432, 0
        %v2493 = vsel %vm2470, %v2433, 0
        %v2496 = vsel %vm2470, %v2434, 0
        %v2499 = vsel %vm2470, %v2435, 0
        %v2502 = vsel %vm2470, %v2436, 0
        %v2505 = vsel %vm2470, %v2437, 0
        %v2508 = vsel %vm2470, %v2438, 0
        %v2511 = vsel %vm2470, %v2439, 0
        %v2514 = vsel %vm2470, %v2440, 0
        %v2517 = vsel %vm2470, %v2441, 0
        %v2520 = vsel %vm2470, %v2442, 0
        %v2523 = vsel %vm2470, %v2443, 0
        %v2526 = vsel %vm2470, %v2444, 0
        %v2529 = vsel %vm2470, %v2445, 0
        %v2532 = vsel %vm2470, %v2446, 0
        %v2535 = vsel %vm2470, %v2447, 0
        %v2538 = vsel %vm2470, %v2448, 0
        %v2541 = vsel %vm2470, %v2449, 0
        %v2544 = vsel %vm2470, %v2450, 0
        %v2547 = vsel %vm2470, %v2451, 0
        %v2550 = vsel %vm2470, %v2452, 0
        %v2553 = vsel %vm2470, %v2453, 0
        %v2556 = vsel %vm2470, %v2454, 0
        %v2559 = vsel %vm2470, %v2455, 0
        %v2562 = vsel %vm2470, %v2456, 0
        %v2565 = vsel %vm2470, %v2457, 0
        %vm2567 = vcmask 1043456
        %v2569 = vsel %vm2567, %v2462, 0
        %2571 = vmatprep.subr.mxu0 0.0
        %2572 = vmatpush1.msra.mxu0 %v2458
        %2573 = vmatprep.subr.mxu0 0.0
        %2574 = vmatpush1.msra.mxu0 %v2459
        %2575 = vmatprep.subr.mxu0 0.0
        %2576 = vmatpush1.msra.mxu0 %v2460
        %2577 = vmatprep.subr.mxu0 0.0
        %2578 = vmatpush1.msra.mxu0 %v2461
        %2579 = vmatprep.subr.mxu0 0.0
        %2580 = vmatpush1.msra.mxu0 %v2569
        %2581 = vmatprep.subr.mxu0 0.0
        %2582 = vmatpush1.msra.mxu0 0.0
        %2583 = vmatprep.subr.mxu0 0.0
        %2584 = vmatpush1.msra.mxu0 0.0
        %2585 = vmatprep.subr.mxu0 0.0
        %2586 = vmatpush1.msra.mxu0 0.0
        %2587 = vmatprep.subr.mxu0 0.0
        %2588 = vmatpush1.msra.mxu0 0.0
        %2589 = vmatprep.subr.mxu0 0.0
        %2590 = vmatpush1.msra.mxu0 0.0
        %2591 = vmatprep.subr.mxu0 0.0
        %2592 = vmatpush1.msra.mxu0 0.0
        %2593 = vmatprep.subr.mxu0 0.0
        %2594 = vmatpush1.msra.mxu0 0.0
        %2595 = vmatprep.subr.mxu0 0.0
        %2596 = vmatpush1.msra.mxu0 0.0
        %2597 = vmatprep.subr.mxu0 0.0
        %2598 = vmatpush1.msra.mxu0 0.0
        %2599 = vmatprep.subr.mxu0 0.0
        %2600 = vmatpush1.msra.mxu0 0.0
        %2601 = vmatprep.subr.mxu0 0.0
        %2602 = vmatpush1.msra.mxu0 0.0
        %2603 = vmatprep.subr.mxu0 0.0
        %2604 = vmatpush1.msra.mxu0 0.0
        %2605 = vmatprep.subr.mxu0 0.0
        %2606 = vmatpush1.msra.mxu0 0.0
        %2607 = vmatprep.subr.mxu0 0.0
        %2608 = vmatpush1.msra.mxu0 0.0
        %2609 = vmatprep.subr.mxu0 0.0
        %2610 = vmatpush1.msra.mxu0 0.0
        %2611 = vmatprep.subr.mxu0 0.0
        %2612 = vmatpush1.msra.mxu0 0.0
        %2613 = vmatprep.subr.mxu0 0.0
        %2614 = vmatpush1.msra.mxu0 0.0
        %2615 = vmatprep.subr.mxu0 0.0
        %2616 = vmatpush1.msra.mxu0 0.0
        %2617 = vmatprep.subr.mxu0 0.0
        %2618 = vmatpush1.msra.mxu0 0.0
        %2619 = vmatprep.subr.mxu0 0.0
        %2620 = vmatpush1.msra.mxu0 0.0
        %2621 = vmatprep.subr.mxu0 0.0
        %2622 = vmatpush1.msra.mxu0 0.0
        %2623 = vmatprep.subr.mxu0 0.0
        %2624 = vmatpush1.msra.mxu0 0.0
        %2625 = vmatprep.subr.mxu0 0.0
        %2626 = vmatpush1.msra.mxu0 0.0
        %2627 = vmatprep.subr.mxu0 0.0
        %2628 = vmatpush1.msra.mxu0 0.0
        %2629 = vmatprep.subr.mxu0 0.0
        %2630 = vmatpush1.msra.mxu0 0.0
        %2631 = vmatprep.subr.mxu0 0.0
        %2632 = vmatpush1.msra.mxu0 0.0
        %2633 = vmatprep.subr.mxu0 0.0
        %2634 = vmatpush1.msra.mxu0 0.0
        %2635 = vmatprep.mubr.f32.mxu0 0.0
        %2636 = vmatmul.mubr.f32.gmra.mrb[0].mxu0 %v2472
        %v2637 = vpop.f32.mrb[0].mxu0
        %v2638 = vadd.f32 %v2468, %v2637
        %v2639 = vpop.f32.mrb[0].mxu0
        %2640 = vmatprep.mubr.f32.mxu0 0.0
        %2641 = vmatmul.mubr.f32.gmra.mrb[0].mxu0 %v2475
        %v2642 = vpop.f32.mrb[0].mxu0
        %v2643 = vadd.f32 %v2468, %v2642
        %v2644 = vpop.f32.mrb[0].mxu0
        %2645 = vmatprep.mubr.f32.mxu0 0.0
        %2646 = vmatmul.mubr.f32.gmra.mrb[0].mxu0 %v2478
        %v2647 = vpop.f32.mrb[0].mxu0
        %v2648 = vadd.f32 %v2468, %v2647
        %v2649 = vpop.f32.mrb[0].mxu0
        %2650 = vmatprep.mubr.f32.mxu0 0.0
        %2651 = vmatmul.mubr.f32.gmra.mrb[0].mxu0 %v2481
        %v2652 = vpop.f32.mrb[0].mxu0
        %v2653 = vadd.f32 %v2468, %v2652
        %v2654 = vpop.f32.mrb[0].mxu0
        %2655 = vmatprep.mubr.f32.mxu0 0.0
        %2656 = vmatmul.mubr.f32.gmra.mrb[0].mxu0 %v2484
        %v2657 = vpop.f32.mrb[0].mxu0
        %v2658 = vadd.f32 %v2468, %v2657
        %v2659 = vpop.f32.mrb[0].mxu0
        %2660 = vmatprep.mubr.f32.mxu0 0.0
        %2661 = vmatmul.mubr.f32.gmra.mrb[0].mxu0 %v2487
        %v2662 = vpop.f32.mrb[0].mxu0
        %v2663 = vadd.f32 %v2468, %v2662
        %v2664 = vpop.f32.mrb[0].mxu0
        %2665 = vmatprep.mubr.f32.mxu0 0.0
        %2666 = vmatmul.mubr.f32.gmra.mrb[0].mxu0 %v2490
        %v2667 = vpop.f32.mrb[0].mxu0
        %v2668 = vadd.f32 %v2468, %v2667
        %v2669 = vpop.f32.mrb[0].mxu0
        %2670 = vmatprep.mubr.f32.mxu0 0.0
        %2671 = vmatmul.mubr.f32.gmra.mrb[0].mxu0 %v2493
        %v2672 = vpop.f32.mrb[0].mxu0
        %v2673 = vadd.f32 %v2468, %v2672
        %v2674 = vpop.f32.mrb[0].mxu0
        %2675 = vmatprep.mubr.f32.mxu0 0.0
        %2676 = vmatmul.mubr.f32.gmra.mrb[0].mxu0 %v2496
        %v2677 = vpop.f32.mrb[0].mxu0
        %v2678 = vadd.f32 %v2468, %v2677
        %v2679 = vpop.f32.mrb[0].mxu0
        %2680 = vmatprep.mubr.f32.mxu0 0.0
        %2681 = vmatmul.mubr.f32.gmra.mrb[0].mxu0 %v2499
        %v2682 = vpop.f32.mrb[0].mxu0
        %v2683 = vadd.f32 %v2468, %v2682
        %v2684 = vpop.f32.mrb[0].mxu0
        %2685 = vmatprep.mubr.f32.mxu0 0.0
        %2686 = vmatmul.mubr.f32.gmra.mrb[0].mxu0 %v2502
        %v2687 = vpop.f32.mrb[0].mxu0
        %v2688 = vadd.f32 %v2468, %v2687
        %v2689 = vpop.f32.mrb[0].mxu0
        %2690 = vmatprep.mubr.f32.mxu0 0.0
        %2691 = vmatmul.mubr.f32.gmra.mrb[0].mxu0 %v2505
        %v2692 = vpop.f32.mrb[0].mxu0
        %v2693 = vadd.f32 %v2468, %v2692
        %v2694 = vpop.f32.mrb[0].mxu0
        %2695 = vmatprep.mubr.f32.mxu0 0.0
        %2696 = vmatmul.mubr.f32.gmra.mrb[0].mxu0 %v2508
        %v2697 = vpop.f32.mrb[0].mxu0
        %v2698 = vadd.f32 %v2468, %v2697
        %v2699 = vpop.f32.mrb[0].mxu0
        %2700 = vmatprep.mubr.f32.mxu0 0.0
        %2701 = vmatmul.mubr.f32.gmra.mrb[0].mxu0 %v2511
        %v2702 = vpop.f32.mrb[0].mxu0
        %v2703 = vadd.f32 %v2468, %v2702
        %v2704 = vpop.f32.mrb[0].mxu0
        %2705 = vmatprep.mubr.f32.mxu0 0.0
        %2706 = vmatmul.mubr.f32.gmra.mrb[0].mxu0 %v2514
        %v2707 = vpop.f32.mrb[0].mxu0
        %v2708 = vadd.f32 %v2468, %v2707
        %v2709 = vpop.f32.mrb[0].mxu0
        %2710 = vmatprep.mubr.f32.mxu0 0.0
        %2711 = vmatmul.mubr.f32.gmra.mrb[0].mxu0 %v2517
        %v2712 = vpop.f32.mrb[0].mxu0
        %v2713 = vadd.f32 %v2468, %v2712
        %v2714 = vpop.f32.mrb[0].mxu0
        %2715 = vmatprep.mubr.f32.mxu0 0.0
        %2716 = vmatmul.mubr.f32.gmra.mrb[0].mxu0 %v2520
        %v2717 = vpop.f32.mrb[0].mxu0
        %v2718 = vadd.f32 %v2468, %v2717
        %v2719 = vpop.f32.mrb[0].mxu0
        %2720 = vmatprep.mubr.f32.mxu0 0.0
        %2721 = vmatmul.mubr.f32.gmra.mrb[0].mxu0 %v2523
        %v2722 = vpop.f32.mrb[0].mxu0
        %v2723 = vadd.f32 %v2468, %v2722
        %v2724 = vpop.f32.mrb[0].mxu0
        %2725 = vmatprep.mubr.f32.mxu0 0.0
        %2726 = vmatmul.mubr.f32.gmra.mrb[0].mxu0 %v2526
        %v2727 = vpop.f32.mrb[0].mxu0
        %v2728 = vadd.f32 %v2468, %v2727
        %v2729 = vpop.f32.mrb[0].mxu0
        %2730 = vmatprep.mubr.f32.mxu0 0.0
        %2731 = vmatmul.mubr.f32.gmra.mrb[0].mxu0 %v2529
        %v2732 = vpop.f32.mrb[0].mxu0
        %v2733 = vadd.f32 %v2468, %v2732
        %v2734 = vpop.f32.mrb[0].mxu0
        %2735 = vmatprep.mubr.f32.mxu0 0.0
        %2736 = vmatmul.mubr.f32.gmra.mrb[0].mxu0 %v2532
        %v2737 = vpop.f32.mrb[0].mxu0
        %v2738 = vadd.f32 %v2468, %v2737
        %v2739 = vpop.f32.mrb[0].mxu0
        %2740 = vmatprep.mubr.f32.mxu0 0.0
        %2741 = vmatmul.mubr.f32.gmra.mrb[0].mxu0 %v2535
        %v2742 = vpop.f32.mrb[0].mxu0
        %v2743 = vadd.f32 %v2468, %v2742
        %v2744 = vpop.f32.mrb[0].mxu0
        %2745 = vmatprep.mubr.f32.mxu0 0.0
        %2746 = vmatmul.mubr.f32.gmra.mrb[0].mxu0 %v2538
        %v2747 = vpop.f32.mrb[0].mxu0
        %v2748 = vadd.f32 %v2468, %v2747
        %v2749 = vpop.f32.mrb[0].mxu0
        %2750 = vmatprep.mubr.f32.mxu0 0.0
        %2751 = vmatmul.mubr.f32.gmra.mrb[0].mxu0 %v2541
        %v2752 = vpop.f32.mrb[0].mxu0
        %v2753 = vadd.f32 %v2468, %v2752
        %v2754 = vpop.f32.mrb[0].mxu0
        %2755 = vmatprep.mubr.f32.mxu0 0.0
        %2756 = vmatmul.mubr.f32.gmra.mrb[0].mxu0 %v2544
        %v2757 = vpop.f32.mrb[0].mxu0
        %v2758 = vadd.f32 %v2468, %v2757
        %v2759 = vpop.f32.mrb[0].mxu0
        %2760 = vmatprep.mubr.f32.mxu0 0.0
        %2761 = vmatmul.mubr.f32.gmra.mrb[0].mxu0 %v2547
        %v2762 = vpop.f32.mrb[0].mxu0
        %v2763 = vadd.f32 %v2468, %v2762
        %v2764 = vpop.f32.mrb[0].mxu0
        %2765 = vmatprep.mubr.f32.mxu0 0.0
        %2766 = vmatmul.mubr.f32.gmra.mrb[0].mxu0 %v2550
        %v2767 = vpop.f32.mrb[0].mxu0
        %v2768 = vadd.f32 %v2468, %v2767
        %v2769 = vpop.f32.mrb[0].mxu0
        %2770 = vmatprep.mubr.f32.mxu0 0.0
        %2771 = vmatmul.mubr.f32.gmra.mrb[0].mxu0 %v2553
        %v2772 = vpop.f32.mrb[0].mxu0
        %v2773 = vadd.f32 %v2468, %v2772
        %v2774 = vpop.f32.mrb[0].mxu0
        %2775 = vmatprep.mubr.f32.mxu0 0.0
        %2776 = vmatmul.mubr.f32.gmra.mrb[0].mxu0 %v2556
        %v2777 = vpop.f32.mrb[0].mxu0
        %v2778 = vadd.f32 %v2468, %v2777
        %v2779 = vpop.f32.mrb[0].mxu0
        %2780 = vmatprep.mubr.f32.mxu0 0.0
        %2781 = vmatmul.mubr.f32.gmra.mrb[0].mxu0 %v2559
        %v2782 = vpop.f32.mrb[0].mxu0
        %v2783 = vadd.f32 %v2468, %v2782
        %v2784 = vpop.f32.mrb[0].mxu0
        %2785 = vmatprep.mubr.f32.mxu0 0.0
        %2786 = vmatmul.mubr.f32.gmra.mrb[0].mxu0 %v2562
        %v2787 = vpop.f32.mrb[0].mxu0
        %v2788 = vadd.f32 %v2468, %v2787
        %v2789 = vpop.f32.mrb[0].mxu0
        %2790 = vmatprep.mubr.f32.mxu0 0.0
        %2791 = vmatmul.mubr.f32.gmra.mrb[0].mxu0 %v2565
        %v2792 = vpop.f32.mrb[0].mxu0
        %v2793 = vadd.f32 %v2468, %v2792
        %v2794 = vpop.f32.mrb[0].mxu0
        %2795 = vdwg.mxu0
        %v2796 = vmax.f32 %v2638, 0.0
        %v2797 = vmax.f32 %v2643, 0.0
        %v2798 = vmax.f32 %v2648, 0.0
        %v2799 = vmax.f32 %v2653, 0.0
        %v2800 = vmax.f32 %v2658, 0.0
        %v2801 = vmax.f32 %v2663, 0.0
        %v2802 = vmax.f32 %v2668, 0.0
        %v2803 = vmax.f32 %v2673, 0.0
        %v2804 = vmax.f32 %v2678, 0.0
        %v2805 = vmax.f32 %v2683, 0.0
        %v2806 = vmax.f32 %v2688, 0.0
        %v2807 = vmax.f32 %v2693, 0.0
        %v2808 = vmax.f32 %v2698, 0.0
        %v2809 = vmax.f32 %v2703, 0.0
        %v2810 = vmax.f32 %v2708, 0.0
        %v2811 = vmax.f32 %v2713, 0.0
        %v2812 = vmax.f32 %v2718, 0.0
        %v2813 = vmax.f32 %v2723, 0.0
        %v2814 = vmax.f32 %v2728, 0.0
        %v2815 = vmax.f32 %v2733, 0.0
        %v2816 = vmax.f32 %v2738, 0.0
        %v2817 = vmax.f32 %v2743, 0.0
        %v2818 = vmax.f32 %v2748, 0.0
        %v2819 = vmax.f32 %v2753, 0.0
        %v2820 = vmax.f32 %v2758, 0.0
        %v2821 = vmax.f32 %v2763, 0.0
        %v2822 = vmax.f32 %v2768, 0.0
        %v2823 = vmax.f32 %v2773, 0.0
        %v2824 = vmax.f32 %v2778, 0.0
        %v2825 = vmax.f32 %v2783, 0.0
        %v2826 = vmax.f32 %v2788, 0.0
        %v2827 = vmax.f32 %v2793, 0.0
        %2828 = vst.msk [vmem:[%s784 + $0x1] sm:$0xff] %vm376, %v2796
        %2829 = vst.msk [vmem:[%s784 + $0x9] sm:$0xff] %vm376, %v2797
        %2830 = vst.msk [vmem:[%s784 + $0x19] sm:$0xff] %vm376, %v2798
        %2831 = vst.msk [vmem:[%s784 + $0x21] sm:$0xff] %vm376, %v2799
        %2832 = vst.msk [vmem:[%s784 + $0x31] sm:$0xff] %vm376, %v2800
        %2833 = vst.msk [vmem:[%s784 + $0x39] sm:$0xff] %vm376, %v2801
        %2834 = vst.msk [vmem:[%s784 + $0x49] sm:$0xff] %vm376, %v2802
        %2835 = vst.msk [vmem:[%s784 + $0x51] sm:$0xff] %vm376, %v2803
        %2836 = vst.msk [vmem:[%s784 + $0x61] sm:$0xff] %vm376, %v2804
        %2837 = vst.msk [vmem:[%s784 + $0x69] sm:$0xff] %vm376, %v2805
        %2838 = vst.msk [vmem:[%s784 + $0x79] sm:$0xff] %vm376, %v2806
        %2839 = vst.msk [vmem:[%s784 + $0x81] sm:$0xff] %vm376, %v2807
        %2840 = vst.msk [vmem:[%s784 + $0x91] sm:$0xff] %vm376, %v2808
        %2841 = vst.msk [vmem:[%s784 + $0x99] sm:$0xff] %vm376, %v2809
        %2842 = vst.msk [vmem:[%s784 + $0xa9] sm:$0xff] %vm376, %v2810
        %2843 = vst.msk [vmem:[%s784 + $0xb1] sm:$0xff] %vm376, %v2811
        %2844 = vst.msk [vmem:[%s784 + $0xc1] sm:$0xff] %vm376, %v2812
        %2845 = vst.msk [vmem:[%s784 + $0xc9] sm:$0xff] %vm376, %v2813
        %2846 = vst.msk [vmem:[%s784 + $0xd9] sm:$0xff] %vm376, %v2814
        %2847 = vst.msk [vmem:[%s784 + $0xe1] sm:$0xff] %vm376, %v2815
        %2848 = vst.msk [vmem:[%s784 + $0xf1] sm:$0xff] %vm376, %v2816
        %2849 = vst.msk [vmem:[%s784 + $0xf9] sm:$0xff] %vm376, %v2817
        %2850 = vst.msk [vmem:[%s784 + $0x109] sm:$0xff] %vm376, %v2818
        %2851 = vst.msk [vmem:[%s784 + $0x111] sm:$0xff] %vm376, %v2819
        %2852 = vst.msk [vmem:[%s784 + $0x121] sm:$0xff] %vm376, %v2820
        %2853 = vst.msk [vmem:[%s784 + $0x129] sm:$0xff] %vm376, %v2821
        %2854 = vst.msk [vmem:[%s784 + $0x139] sm:$0xff] %vm376, %v2822
        %2855 = vst.msk [vmem:[%s784 + $0x141] sm:$0xff] %vm376, %v2823
        %2856 = vst.msk [vmem:[%s784 + $0x151] sm:$0xff] %vm376, %v2824
        %2857 = vst.msk [vmem:[%s784 + $0x159] sm:$0xff] %vm376, %v2825
        %2858 = vst.msk [vmem:[%s784 + $0x169] sm:$0xff] %vm376, %v2826
        %2859 = vst.msk [vmem:[%s784 + $0x171] sm:$0xff] %vm376, %v2827
        %v2860 = vld [vmem:[#allocation2] sm:$0xff]
        %v2861 = vld [vmem:[#allocation2 + $0x8] sm:$0xff]
        %v2862 = vld [vmem:[#allocation2 + $0x18] sm:$0xff]
        %v2863 = vld [vmem:[#allocation2 + $0x20] sm:$0xff]
        %v2864 = vld [vmem:[#allocation2 + $0x30] sm:$0xff]
        %v2865 = vld [vmem:[#allocation2 + $0x38] sm:$0xff]
        %v2866 = vld [vmem:[#allocation2 + $0x48] sm:$0xff]
        %v2867 = vld [vmem:[#allocation2 + $0x50] sm:$0xff]
        %v2868 = vld [vmem:[#allocation2 + $0x60] sm:$0xff]
        %v2869 = vld [vmem:[#allocation2 + $0x68] sm:$0xff]
        %v2870 = vld [vmem:[#allocation2 + $0x78] sm:$0xff]
        %v2871 = vld [vmem:[#allocation2 + $0x80] sm:$0xff]
        %v2872 = vld [vmem:[#allocation2 + $0x90] sm:$0xff]
        %v2873 = vld [vmem:[#allocation2 + $0x98] sm:$0xff]
        %v2874 = vld [vmem:[#allocation2 + $0xa8] sm:$0xff]
        %v2875 = vld [vmem:[#allocation2 + $0xb0] sm:$0xff]
        %v2876 = vld [vmem:[#allocation2 + $0xc0] sm:$0xff]
        %v2877 = vld [vmem:[#allocation2 + $0xc8] sm:$0xff]
        %v2878 = vld [vmem:[#allocation2 + $0xd8] sm:$0xff]
        %v2879 = vld [vmem:[#allocation2 + $0xe0] sm:$0xff]
        %v2880 = vld [vmem:[#allocation2 + $0xf0] sm:$0xff]
        %v2881 = vld [vmem:[#allocation2 + $0xf8] sm:$0xff]
        %v2882 = vld [vmem:[#allocation2 + $0x108] sm:$0xff]
        %v2883 = vld [vmem:[#allocation2 + $0x110] sm:$0xff]
        %v2884 = vld [vmem:[#allocation2 + $0x120] sm:$0xff]
        %v2885 = vld [vmem:[#allocation2 + $0x128] sm:$0xff]
        %v2886 = vld [vmem:[#allocation2 + $0x138] sm:$0xff]
        %v2887 = vld [vmem:[#allocation2 + $0x140] sm:$0xff]
        %v2888 = vld [vmem:[#allocation2 + $0x150] sm:$0xff]
        %v2889 = vld [vmem:[#allocation2 + $0x158] sm:$0xff]
        %v2890 = vld [vmem:[#allocation2 + $0x168] sm:$0xff]
        %v2891 = vld [vmem:[#allocation2 + $0x170] sm:$0xff]
        %2892 = vst.msk [vmem:[#allocation3] sm:$0xff] %vm376, %v2860
        %2893 = vst.msk [vmem:[#allocation3 + $0x8] sm:$0xff] %vm376, %v2861
        %2894 = vst.msk [vmem:[#allocation3 + $0x10] sm:$0xff] %vm376, %v2862
        %2895 = vst.msk [vmem:[#allocation3 + $0x18] sm:$0xff] %vm376, %v2863
        %2896 = vst.msk [vmem:[#allocation3 + $0x20] sm:$0xff] %vm376, %v2864
        %2897 = vst.msk [vmem:[#allocation3 + $0x28] sm:$0xff] %vm376, %v2865
        %2898 = vst.msk [vmem:[#allocation3 + $0x30] sm:$0xff] %vm376, %v2866
        %2899 = vst.msk [vmem:[#allocation3 + $0x38] sm:$0xff] %vm376, %v2867
        %2900 = vst.msk [vmem:[#allocation3 + $0x40] sm:$0xff] %vm376, %v2868
        %2901 = vst.msk [vmem:[#allocation3 + $0x48] sm:$0xff] %vm376, %v2869
        %2902 = vst.msk [vmem:[#allocation3 + $0x50] sm:$0xff] %vm376, %v2870
        %2903 = vst.msk [vmem:[#allocation3 + $0x58] sm:$0xff] %vm376, %v2871
        %2904 = vst.msk [vmem:[#allocation3 + $0x60] sm:$0xff] %vm376, %v2872
        %2905 = vst.msk [vmem:[#allocation3 + $0x68] sm:$0xff] %vm376, %v2873
        %2906 = vst.msk [vmem:[#allocation3 + $0x70] sm:$0xff] %vm376, %v2874
        %2907 = vst.msk [vmem:[#allocation3 + $0x78] sm:$0xff] %vm376, %v2875
        %2908 = vst.msk [vmem:[#allocation3 + $0x80] sm:$0xff] %vm376, %v2876
        %2909 = vst.msk [vmem:[#allocation3 + $0x88] sm:$0xff] %vm376, %v2877
        %2910 = vst.msk [vmem:[#allocation3 + $0x90] sm:$0xff] %vm376, %v2878
        %2911 = vst.msk [vmem:[#allocation3 + $0x98] sm:$0xff] %vm376, %v2879
        %2912 = vst.msk [vmem:[#allocation3 + $0xa0] sm:$0xff] %vm376, %v2880
        %2913 = vst.msk [vmem:[#allocation3 + $0xa8] sm:$0xff] %vm376, %v2881
        %2914 = vst.msk [vmem:[#allocation3 + $0xb0] sm:$0xff] %vm376, %v2882
        %2915 = vst.msk [vmem:[#allocation3 + $0xb8] sm:$0xff] %vm376, %v2883
        %2916 = vst.msk [vmem:[#allocation3 + $0xc0] sm:$0xff] %vm376, %v2884
        %2917 = vst.msk [vmem:[#allocation3 + $0xc8] sm:$0xff] %vm376, %v2885
        %2918 = vst.msk [vmem:[#allocation3 + $0xd0] sm:$0xff] %vm376, %v2886
        %2919 = vst.msk [vmem:[#allocation3 + $0xd8] sm:$0xff] %vm376, %v2887
        %2920 = vst.msk [vmem:[#allocation3 + $0xe0] sm:$0xff] %vm376, %v2888
        %2921 = vst.msk [vmem:[#allocation3 + $0xe8] sm:$0xff] %vm376, %v2889
        %2922 = vst.msk [vmem:[#allocation3 + $0xf0] sm:$0xff] %vm376, %v2890
        %2923 = vst.msk [vmem:[#allocation3 + $0xf8] sm:$0xff] %vm376, %v2891
        %v2924 = vld [vmem:[#allocation2 + $0x1] sm:$0xff]
        %v2925 = vld [vmem:[#allocation2 + $0x9] sm:$0xff]
        %v2926 = vld [vmem:[#allocation2 + $0x19] sm:$0xff]
        %v2927 = vld [vmem:[#allocation2 + $0x21] sm:$0xff]
        %v2928 = vld [vmem:[#allocation2 + $0x31] sm:$0xff]
        %v2929 = vld [vmem:[#allocation2 + $0x39] sm:$0xff]
        %v2930 = vld [vmem:[#allocation2 + $0x49] sm:$0xff]
        %v2931 = vld [vmem:[#allocation2 + $0x51] sm:$0xff]
        %v2932 = vld [vmem:[#allocation2 + $0x61] sm:$0xff]
        %v2933 = vld [vmem:[#allocation2 + $0x69] sm:$0xff]
        %v2934 = vld [vmem:[#allocation2 + $0x79] sm:$0xff]
        %v2935 = vld [vmem:[#allocation2 + $0x81] sm:$0xff]
        %v2936 = vld [vmem:[#allocation2 + $0x91] sm:$0xff]
        %v2937 = vld [vmem:[#allocation2 + $0x99] sm:$0xff]
        %v2938 = vld [vmem:[#allocation2 + $0xa9] sm:$0xff]
        %v2939 = vld [vmem:[#allocation2 + $0xb1] sm:$0xff]
        %v2940 = vld [vmem:[#allocation2 + $0xc1] sm:$0xff]
        %v2941 = vld [vmem:[#allocation2 + $0xc9] sm:$0xff]
        %v2942 = vld [vmem:[#allocation2 + $0xd9] sm:$0xff]
        %v2943 = vld [vmem:[#allocation2 + $0xe1] sm:$0xff]
        %v2944 = vld [vmem:[#allocation2 + $0xf1] sm:$0xff]
        %v2945 = vld [vmem:[#allocation2 + $0xf9] sm:$0xff]
        %v2946 = vld [vmem:[#allocation2 + $0x109] sm:$0xff]
        %v2947 = vld [vmem:[#allocation2 + $0x111] sm:$0xff]
        %v2948 = vld [vmem:[#allocation2 + $0x121] sm:$0xff]
        %v2949 = vld [vmem:[#allocation2 + $0x129] sm:$0xff]
        %v2950 = vld [vmem:[#allocation2 + $0x139] sm:$0xff]
        %v2951 = vld [vmem:[#allocation2 + $0x141] sm:$0xff]
        %v2952 = vld [vmem:[#allocation2 + $0x151] sm:$0xff]
        %v2953 = vld [vmem:[#allocation2 + $0x159] sm:$0xff]
        %v2954 = vld [vmem:[#allocation2 + $0x169] sm:$0xff]
        %v2955 = vld [vmem:[#allocation2 + $0x171] sm:$0xff]
        %2988 = vrot.lane.b32.xlu0 %v2924, 4
        %v2989 = vpop.permute.xlu0 %2988
        %2990 = vrot.lane.b32.xlu0 %v2925, 4
        %v2991 = vpop.permute.xlu0 %2990
        %2992 = vrot.lane.b32.xlu0 %v2926, 4
        %v2993 = vpop.permute.xlu0 %2992
        %2994 = vrot.lane.b32.xlu0 %v2927, 4
        %v2995 = vpop.permute.xlu0 %2994
        %2996 = vrot.lane.b32.xlu0 %v2928, 4
        %v2997 = vpop.permute.xlu0 %2996
        %2998 = vrot.lane.b32.xlu0 %v2929, 4
        %v2999 = vpop.permute.xlu0 %2998
        %3000 = vrot.lane.b32.xlu0 %v2930, 4
        %v3001 = vpop.permute.xlu0 %3000
        %3002 = vrot.lane.b32.xlu0 %v2931, 4
        %v3003 = vpop.permute.xlu0 %3002
        %3004 = vrot.lane.b32.xlu0 %v2932, 4
        %v3005 = vpop.permute.xlu0 %3004
        %3006 = vrot.lane.b32.xlu0 %v2933, 4
        %v3007 = vpop.permute.xlu0 %3006
        %3008 = vrot.lane.b32.xlu0 %v2934, 4
        %v3009 = vpop.permute.xlu0 %3008
        %3010 = vrot.lane.b32.xlu0 %v2935, 4
        %v3011 = vpop.permute.xlu0 %3010
        %3012 = vrot.lane.b32.xlu0 %v2936, 4
        %v3013 = vpop.permute.xlu0 %3012
        %3014 = vrot.lane.b32.xlu0 %v2937, 4
        %v3015 = vpop.permute.xlu0 %3014
        %3016 = vrot.lane.b32.xlu0 %v2938, 4
        %v3017 = vpop.permute.xlu0 %3016
        %3018 = vrot.lane.b32.xlu0 %v2939, 4
        %v3019 = vpop.permute.xlu0 %3018
        %3020 = vrot.lane.b32.xlu0 %v2940, 4
        %v3021 = vpop.permute.xlu0 %3020
        %3022 = vrot.lane.b32.xlu0 %v2941, 4
        %v3023 = vpop.permute.xlu0 %3022
        %3024 = vrot.lane.b32.xlu0 %v2942, 4
        %v3025 = vpop.permute.xlu0 %3024
        %3026 = vrot.lane.b32.xlu0 %v2943, 4
        %v3027 = vpop.permute.xlu0 %3026
        %3028 = vrot.lane.b32.xlu0 %v2944, 4
        %v3029 = vpop.permute.xlu0 %3028
        %3030 = vrot.lane.b32.xlu0 %v2945, 4
        %v3031 = vpop.permute.xlu0 %3030
        %3032 = vrot.lane.b32.xlu0 %v2946, 4
        %v3033 = vpop.permute.xlu0 %3032
        %3034 = vrot.lane.b32.xlu0 %v2947, 4
        %v3035 = vpop.permute.xlu0 %3034
        %3036 = vrot.lane.b32.xlu0 %v2948, 4
        %v3037 = vpop.permute.xlu0 %3036
        %3038 = vrot.lane.b32.xlu0 %v2949, 4
        %v3039 = vpop.permute.xlu0 %3038
        %3040 = vrot.lane.b32.xlu0 %v2950, 4
        %v3041 = vpop.permute.xlu0 %3040
        %3042 = vrot.lane.b32.xlu0 %v2951, 4
        %v3043 = vpop.permute.xlu0 %3042
        %3044 = vrot.lane.b32.xlu0 %v2952, 4
        %v3045 = vpop.permute.xlu0 %3044
        %3046 = vrot.lane.b32.xlu0 %v2953, 4
        %v3047 = vpop.permute.xlu0 %3046
        %3048 = vrot.lane.b32.xlu0 %v2954, 4
        %v3049 = vpop.permute.xlu0 %3048
        %3050 = vrot.lane.b32.xlu0 %v2955, 4
        %v3051 = vpop.permute.xlu0 %3050
        %3084 = vst.msk [vmem:[#allocation3] sm:$0xff] %vm1041, %v2989
        %3085 = vst.msk [vmem:[#allocation3 + $0x8] sm:$0xff] %vm1041, %v2991
        %3086 = vst.msk [vmem:[#allocation3 + $0x10] sm:$0xff] %vm1041, %v2993
        %3087 = vst.msk [vmem:[#allocation3 + $0x18] sm:$0xff] %vm1041, %v2995
        %3088 = vst.msk [vmem:[#allocation3 + $0x20] sm:$0xff] %vm1041, %v2997
        %3089 = vst.msk [vmem:[#allocation3 + $0x28] sm:$0xff] %vm1041, %v2999
        %3090 = vst.msk [vmem:[#allocation3 + $0x30] sm:$0xff] %vm1041, %v3001
        %3091 = vst.msk [vmem:[#allocation3 + $0x38] sm:$0xff] %vm1041, %v3003
        %3092 = vst.msk [vmem:[#allocation3 + $0x40] sm:$0xff] %vm1041, %v3005
        %3093 = vst.msk [vmem:[#allocation3 + $0x48] sm:$0xff] %vm1041, %v3007
        %3094 = vst.msk [vmem:[#allocation3 + $0x50] sm:$0xff] %vm1041, %v3009
        %3095 = vst.msk [vmem:[#allocation3 + $0x58] sm:$0xff] %vm1041, %v3011
        %3096 = vst.msk [vmem:[#allocation3 + $0x60] sm:$0xff] %vm1041, %v3013
        %3097 = vst.msk [vmem:[#allocation3 + $0x68] sm:$0xff] %vm1041, %v3015
        %3098 = vst.msk [vmem:[#allocation3 + $0x70] sm:$0xff] %vm1041, %v3017
        %3099 = vst.msk [vmem:[#allocation3 + $0x78] sm:$0xff] %vm1041, %v3019
        %3100 = vst.msk [vmem:[#allocation3 + $0x80] sm:$0xff] %vm1041, %v3021
        %3101 = vst.msk [vmem:[#allocation3 + $0x88] sm:$0xff] %vm1041, %v3023
        %3102 = vst.msk [vmem:[#allocation3 + $0x90] sm:$0xff] %vm1041, %v3025
        %3103 = vst.msk [vmem:[#allocation3 + $0x98] sm:$0xff] %vm1041, %v3027
        %3104 = vst.msk [vmem:[#allocation3 + $0xa0] sm:$0xff] %vm1041, %v3029
        %3105 = vst.msk [vmem:[#allocation3 + $0xa8] sm:$0xff] %vm1041, %v3031
        %3106 = vst.msk [vmem:[#allocation3 + $0xb0] sm:$0xff] %vm1041, %v3033
        %3107 = vst.msk [vmem:[#allocation3 + $0xb8] sm:$0xff] %vm1041, %v3035
        %3108 = vst.msk [vmem:[#allocation3 + $0xc0] sm:$0xff] %vm1041, %v3037
        %3109 = vst.msk [vmem:[#allocation3 + $0xc8] sm:$0xff] %vm1041, %v3039
        %3110 = vst.msk [vmem:[#allocation3 + $0xd0] sm:$0xff] %vm1041, %v3041
        %3111 = vst.msk [vmem:[#allocation3 + $0xd8] sm:$0xff] %vm1041, %v3043
        %3112 = vst.msk [vmem:[#allocation3 + $0xe0] sm:$0xff] %vm1041, %v3045
        %3113 = vst.msk [vmem:[#allocation3 + $0xe8] sm:$0xff] %vm1041, %v3047
        %3114 = vst.msk [vmem:[#allocation3 + $0xf0] sm:$0xff] %vm1041, %v3049
        %3115 = vst.msk [vmem:[#allocation3 + $0xf8] sm:$0xff] %vm1041, %v3051
        %v3116 = vld [vmem:[#allocation2 + $0x2] sm:$0xff]
        %v3117 = vld [vmem:[#allocation2 + $0xa] sm:$0xff]
        %v3118 = vld [vmem:[#allocation2 + $0x1a] sm:$0xff]
        %v3119 = vld [vmem:[#allocation2 + $0x22] sm:$0xff]
        %v3120 = vld [vmem:[#allocation2 + $0x32] sm:$0xff]
        %v3121 = vld [vmem:[#allocation2 + $0x3a] sm:$0xff]
        %v3122 = vld [vmem:[#allocation2 + $0x4a] sm:$0xff]
        %v3123 = vld [vmem:[#allocation2 + $0x52] sm:$0xff]
        %v3124 = vld [vmem:[#allocation2 + $0x62] sm:$0xff]
        %v3125 = vld [vmem:[#allocation2 + $0x6a] sm:$0xff]
        %v3126 = vld [vmem:[#allocation2 + $0x7a] sm:$0xff]
        %v3127 = vld [vmem:[#allocation2 + $0x82] sm:$0xff]
        %v3128 = vld [vmem:[#allocation2 + $0x92] sm:$0xff]
        %v3129 = vld [vmem:[#allocation2 + $0x9a] sm:$0xff]
        %v3130 = vld [vmem:[#allocation2 + $0xaa] sm:$0xff]
        %v3131 = vld [vmem:[#allocation2 + $0xb2] sm:$0xff]
        %v3132 = vld [vmem:[#allocation2 + $0xc2] sm:$0xff]
        %v3133 = vld [vmem:[#allocation2 + $0xca] sm:$0xff]
        %v3134 = vld [vmem:[#allocation2 + $0xda] sm:$0xff]
        %v3135 = vld [vmem:[#allocation2 + $0xe2] sm:$0xff]
        %v3136 = vld [vmem:[#allocation2 + $0xf2] sm:$0xff]
        %v3137 = vld [vmem:[#allocation2 + $0xfa] sm:$0xff]
        %v3138 = vld [vmem:[#allocation2 + $0x10a] sm:$0xff]
        %v3139 = vld [vmem:[#allocation2 + $0x112] sm:$0xff]
        %v3140 = vld [vmem:[#allocation2 + $0x122] sm:$0xff]
        %v3141 = vld [vmem:[#allocation2 + $0x12a] sm:$0xff]
        %v3142 = vld [vmem:[#allocation2 + $0x13a] sm:$0xff]
        %v3143 = vld [vmem:[#allocation2 + $0x142] sm:$0xff]
        %v3144 = vld [vmem:[#allocation2 + $0x152] sm:$0xff]
        %v3145 = vld [vmem:[#allocation2 + $0x15a] sm:$0xff]
        %v3146 = vld [vmem:[#allocation2 + $0x16a] sm:$0xff]
        %v3147 = vld [vmem:[#allocation2 + $0x172] sm:$0xff]
        %3180 = vrot.lane.b32.xlu0 %v3116, 8
        %v3181 = vpop.permute.xlu0 %3180
        %3182 = vrot.lane.b32.xlu0 %v3117, 8
        %v3183 = vpop.permute.xlu0 %3182
        %3184 = vrot.lane.b32.xlu0 %v3118, 8
        %v3185 = vpop.permute.xlu0 %3184
        %3186 = vrot.lane.b32.xlu0 %v3119, 8
        %v3187 = vpop.permute.xlu0 %3186
        %3188 = vrot.lane.b32.xlu0 %v3120, 8
        %v3189 = vpop.permute.xlu0 %3188
        %3190 = vrot.lane.b32.xlu0 %v3121, 8
        %v3191 = vpop.permute.xlu0 %3190
        %3192 = vrot.lane.b32.xlu0 %v3122, 8
        %v3193 = vpop.permute.xlu0 %3192
        %3194 = vrot.lane.b32.xlu0 %v3123, 8
        %v3195 = vpop.permute.xlu0 %3194
        %3196 = vrot.lane.b32.xlu0 %v3124, 8
        %v3197 = vpop.permute.xlu0 %3196
        %3198 = vrot.lane.b32.xlu0 %v3125, 8
        %v3199 = vpop.permute.xlu0 %3198
        %3200 = vrot.lane.b32.xlu0 %v3126, 8
        %v3201 = vpop.permute.xlu0 %3200
        %3202 = vrot.lane.b32.xlu0 %v3127, 8
        %v3203 = vpop.permute.xlu0 %3202
        %3204 = vrot.lane.b32.xlu0 %v3128, 8
        %v3205 = vpop.permute.xlu0 %3204
        %3206 = vrot.lane.b32.xlu0 %v3129, 8
        %v3207 = vpop.permute.xlu0 %3206
        %3208 = vrot.lane.b32.xlu0 %v3130, 8
        %v3209 = vpop.permute.xlu0 %3208
        %3210 = vrot.lane.b32.xlu0 %v3131, 8
        %v3211 = vpop.permute.xlu0 %3210
        %3212 = vrot.lane.b32.xlu0 %v3132, 8
        %v3213 = vpop.permute.xlu0 %3212
        %3214 = vrot.lane.b32.xlu0 %v3133, 8
        %v3215 = vpop.permute.xlu0 %3214
        %3216 = vrot.lane.b32.xlu0 %v3134, 8
        %v3217 = vpop.permute.xlu0 %3216
        %3218 = vrot.lane.b32.xlu0 %v3135, 8
        %v3219 = vpop.permute.xlu0 %3218
        %3220 = vrot.lane.b32.xlu0 %v3136, 8
        %v3221 = vpop.permute.xlu0 %3220
        %3222 = vrot.lane.b32.xlu0 %v3137, 8
        %v3223 = vpop.permute.xlu0 %3222
        %3224 = vrot.lane.b32.xlu0 %v3138, 8
        %v3225 = vpop.permute.xlu0 %3224
        %3226 = vrot.lane.b32.xlu0 %v3139, 8
        %v3227 = vpop.permute.xlu0 %3226
        %3228 = vrot.lane.b32.xlu0 %v3140, 8
        %v3229 = vpop.permute.xlu0 %3228
        %3230 = vrot.lane.b32.xlu0 %v3141, 8
        %v3231 = vpop.permute.xlu0 %3230
        %3232 = vrot.lane.b32.xlu0 %v3142, 8
        %v3233 = vpop.permute.xlu0 %3232
        %3234 = vrot.lane.b32.xlu0 %v3143, 8
        %v3235 = vpop.permute.xlu0 %3234
        %3236 = vrot.lane.b32.xlu0 %v3144, 8
        %v3237 = vpop.permute.xlu0 %3236
        %3238 = vrot.lane.b32.xlu0 %v3145, 8
        %v3239 = vpop.permute.xlu0 %3238
        %3240 = vrot.lane.b32.xlu0 %v3146, 8
        %v3241 = vpop.permute.xlu0 %3240
        %3242 = vrot.lane.b32.xlu0 %v3147, 8
        %v3243 = vpop.permute.xlu0 %3242
        %3276 = vst.msk [vmem:[#allocation3] sm:$0xff] %vm1234, %v3181
        %3277 = vst.msk [vmem:[#allocation3 + $0x8] sm:$0xff] %vm1234, %v3183
        %3278 = vst.msk [vmem:[#allocation3 + $0x10] sm:$0xff] %vm1234, %v3185
        %3279 = vst.msk [vmem:[#allocation3 + $0x18] sm:$0xff] %vm1234, %v3187
        %3280 = vst.msk [vmem:[#allocation3 + $0x20] sm:$0xff] %vm1234, %v3189
        %3281 = vst.msk [vmem:[#allocation3 + $0x28] sm:$0xff] %vm1234, %v3191
        %3282 = vst.msk [vmem:[#allocation3 + $0x30] sm:$0xff] %vm1234, %v3193
        %3283 = vst.msk [vmem:[#allocation3 + $0x38] sm:$0xff] %vm1234, %v3195
        %3284 = vst.msk [vmem:[#allocation3 + $0x40] sm:$0xff] %vm1234, %v3197
        %3285 = vst.msk [vmem:[#allocation3 + $0x48] sm:$0xff] %vm1234, %v3199
        %3286 = vst.msk [vmem:[#allocation3 + $0x50] sm:$0xff] %vm1234, %v3201
        %3287 = vst.msk [vmem:[#allocation3 + $0x58] sm:$0xff] %vm1234, %v3203
        %3288 = vst.msk [vmem:[#allocation3 + $0x60] sm:$0xff] %vm1234, %v3205
        %3289 = vst.msk [vmem:[#allocation3 + $0x68] sm:$0xff] %vm1234, %v3207
        %3290 = vst.msk [vmem:[#allocation3 + $0x70] sm:$0xff] %vm1234, %v3209
        %3291 = vst.msk [vmem:[#allocation3 + $0x78] sm:$0xff] %vm1234, %v3211
        %3292 = vst.msk [vmem:[#allocation3 + $0x80] sm:$0xff] %vm1234, %v3213
        %3293 = vst.msk [vmem:[#allocation3 + $0x88] sm:$0xff] %vm1234, %v3215
        %3294 = vst.msk [vmem:[#allocation3 + $0x90] sm:$0xff] %vm1234, %v3217
        %3295 = vst.msk [vmem:[#allocation3 + $0x98] sm:$0xff] %vm1234, %v3219
        %3296 = vst.msk [vmem:[#allocation3 + $0xa0] sm:$0xff] %vm1234, %v3221
        %3297 = vst.msk [vmem:[#allocation3 + $0xa8] sm:$0xff] %vm1234, %v3223
        %3298 = vst.msk [vmem:[#allocation3 + $0xb0] sm:$0xff] %vm1234, %v3225
        %3299 = vst.msk [vmem:[#allocation3 + $0xb8] sm:$0xff] %vm1234, %v3227
        %3300 = vst.msk [vmem:[#allocation3 + $0xc0] sm:$0xff] %vm1234, %v3229
        %3301 = vst.msk [vmem:[#allocation3 + $0xc8] sm:$0xff] %vm1234, %v3231
        %3302 = vst.msk [vmem:[#allocation3 + $0xd0] sm:$0xff] %vm1234, %v3233
        %3303 = vst.msk [vmem:[#allocation3 + $0xd8] sm:$0xff] %vm1234, %v3235
        %3304 = vst.msk [vmem:[#allocation3 + $0xe0] sm:$0xff] %vm1234, %v3237
        %3305 = vst.msk [vmem:[#allocation3 + $0xe8] sm:$0xff] %vm1234, %v3239
        %3306 = vst.msk [vmem:[#allocation3 + $0xf0] sm:$0xff] %vm1234, %v3241
        %3307 = vst.msk [vmem:[#allocation3 + $0xf8] sm:$0xff] %vm1234, %v3243
        %v3308 = vld [vmem:[%s784] sm:$0xff]
        %v3309 = vld [vmem:[%s784 + $0x8] sm:$0xff]
        %v3310 = vld [vmem:[%s784 + $0x18] sm:$0xff]
        %v3311 = vld [vmem:[%s784 + $0x20] sm:$0xff]
        %v3312 = vld [vmem:[%s784 + $0x30] sm:$0xff]
        %v3313 = vld [vmem:[%s784 + $0x38] sm:$0xff]
        %v3314 = vld [vmem:[%s784 + $0x48] sm:$0xff]
        %v3315 = vld [vmem:[%s784 + $0x50] sm:$0xff]
        %v3316 = vld [vmem:[%s784 + $0x60] sm:$0xff]
        %v3317 = vld [vmem:[%s784 + $0x68] sm:$0xff]
        %v3318 = vld [vmem:[%s784 + $0x78] sm:$0xff]
        %v3319 = vld [vmem:[%s784 + $0x80] sm:$0xff]
        %v3320 = vld [vmem:[%s784 + $0x90] sm:$0xff]
        %v3321 = vld [vmem:[%s784 + $0x98] sm:$0xff]
        %v3322 = vld [vmem:[%s784 + $0xa8] sm:$0xff]
        %v3323 = vld [vmem:[%s784 + $0xb0] sm:$0xff]
        %v3324 = vld [vmem:[%s784 + $0xc0] sm:$0xff]
        %v3325 = vld [vmem:[%s784 + $0xc8] sm:$0xff]
        %v3326 = vld [vmem:[%s784 + $0xd8] sm:$0xff]
        %v3327 = vld [vmem:[%s784 + $0xe0] sm:$0xff]
        %v3328 = vld [vmem:[%s784 + $0xf0] sm:$0xff]
        %v3329 = vld [vmem:[%s784 + $0xf8] sm:$0xff]
        %v3330 = vld [vmem:[%s784 + $0x108] sm:$0xff]
        %v3331 = vld [vmem:[%s784 + $0x110] sm:$0xff]
        %v3332 = vld [vmem:[%s784 + $0x120] sm:$0xff]
        %v3333 = vld [vmem:[%s784 + $0x128] sm:$0xff]
        %v3334 = vld [vmem:[%s784 + $0x138] sm:$0xff]
        %v3335 = vld [vmem:[%s784 + $0x140] sm:$0xff]
        %v3336 = vld [vmem:[%s784 + $0x150] sm:$0xff]
        %v3337 = vld [vmem:[%s784 + $0x158] sm:$0xff]
        %v3338 = vld [vmem:[%s784 + $0x168] sm:$0xff]
        %v3339 = vld [vmem:[%s784 + $0x170] sm:$0xff]
        %3372 = vrot.lane.b32.xlu0 %v3308, 12
        %v3373 = vpop.permute.xlu0 %3372
        %3374 = vrot.lane.b32.xlu0 %v3309, 12
        %v3375 = vpop.permute.xlu0 %3374
        %3376 = vrot.lane.b32.xlu0 %v3310, 12
        %v3377 = vpop.permute.xlu0 %3376
        %3378 = vrot.lane.b32.xlu0 %v3311, 12
        %v3379 = vpop.permute.xlu0 %3378
        %3380 = vrot.lane.b32.xlu0 %v3312, 12
        %v3381 = vpop.permute.xlu0 %3380
        %3382 = vrot.lane.b32.xlu0 %v3313, 12
        %v3383 = vpop.permute.xlu0 %3382
        %3384 = vrot.lane.b32.xlu0 %v3314, 12
        %v3385 = vpop.permute.xlu0 %3384
        %3386 = vrot.lane.b32.xlu0 %v3315, 12
        %v3387 = vpop.permute.xlu0 %3386
        %3388 = vrot.lane.b32.xlu0 %v3316, 12
        %v3389 = vpop.permute.xlu0 %3388
        %3390 = vrot.lane.b32.xlu0 %v3317, 12
        %v3391 = vpop.permute.xlu0 %3390
        %3392 = vrot.lane.b32.xlu0 %v3318, 12
        %v3393 = vpop.permute.xlu0 %3392
        %3394 = vrot.lane.b32.xlu0 %v3319, 12
        %v3395 = vpop.permute.xlu0 %3394
        %3396 = vrot.lane.b32.xlu0 %v3320, 12
        %v3397 = vpop.permute.xlu0 %3396
        %3398 = vrot.lane.b32.xlu0 %v3321, 12
        %v3399 = vpop.permute.xlu0 %3398
        %3400 = vrot.lane.b32.xlu0 %v3322, 12
        %v3401 = vpop.permute.xlu0 %3400
        %3402 = vrot.lane.b32.xlu0 %v3323, 12
        %v3403 = vpop.permute.xlu0 %3402
        %3404 = vrot.lane.b32.xlu0 %v3324, 12
        %v3405 = vpop.permute.xlu0 %3404
        %3406 = vrot.lane.b32.xlu0 %v3325, 12
        %v3407 = vpop.permute.xlu0 %3406
        %3408 = vrot.lane.b32.xlu0 %v3326, 12
        %v3409 = vpop.permute.xlu0 %3408
        %3410 = vrot.lane.b32.xlu0 %v3327, 12
        %v3411 = vpop.permute.xlu0 %3410
        %3412 = vrot.lane.b32.xlu0 %v3328, 12
        %v3413 = vpop.permute.xlu0 %3412
        %3414 = vrot.lane.b32.xlu0 %v3329, 12
        %v3415 = vpop.permute.xlu0 %3414
        %3416 = vrot.lane.b32.xlu0 %v3330, 12
        %v3417 = vpop.permute.xlu0 %3416
        %3418 = vrot.lane.b32.xlu0 %v3331, 12
        %v3419 = vpop.permute.xlu0 %3418
        %3420 = vrot.lane.b32.xlu0 %v3332, 12
        %v3421 = vpop.permute.xlu0 %3420
        %3422 = vrot.lane.b32.xlu0 %v3333, 12
        %v3423 = vpop.permute.xlu0 %3422
        %3424 = vrot.lane.b32.xlu0 %v3334, 12
        %v3425 = vpop.permute.xlu0 %3424
        %3426 = vrot.lane.b32.xlu0 %v3335, 12
        %v3427 = vpop.permute.xlu0 %3426
        %3428 = vrot.lane.b32.xlu0 %v3336, 12
        %v3429 = vpop.permute.xlu0 %3428
        %3430 = vrot.lane.b32.xlu0 %v3337, 12
        %v3431 = vpop.permute.xlu0 %3430
        %3432 = vrot.lane.b32.xlu0 %v3338, 12
        %v3433 = vpop.permute.xlu0 %3432
        %3434 = vrot.lane.b32.xlu0 %v3339, 12
        %v3435 = vpop.permute.xlu0 %3434
        %3468 = vst.msk [vmem:[#allocation3] sm:$0xff] %vm1427, %v3373
        %3469 = vst.msk [vmem:[#allocation3 + $0x8] sm:$0xff] %vm1427, %v3375
        %3470 = vst.msk [vmem:[#allocation3 + $0x10] sm:$0xff] %vm1427, %v3377
        %3471 = vst.msk [vmem:[#allocation3 + $0x18] sm:$0xff] %vm1427, %v3379
        %3472 = vst.msk [vmem:[#allocation3 + $0x20] sm:$0xff] %vm1427, %v3381
        %3473 = vst.msk [vmem:[#allocation3 + $0x28] sm:$0xff] %vm1427, %v3383
        %3474 = vst.msk [vmem:[#allocation3 + $0x30] sm:$0xff] %vm1427, %v3385
        %3475 = vst.msk [vmem:[#allocation3 + $0x38] sm:$0xff] %vm1427, %v3387
        %3476 = vst.msk [vmem:[#allocation3 + $0x40] sm:$0xff] %vm1427, %v3389
        %3477 = vst.msk [vmem:[#allocation3 + $0x48] sm:$0xff] %vm1427, %v3391
        %3478 = vst.msk [vmem:[#allocation3 + $0x50] sm:$0xff] %vm1427, %v3393
        %3479 = vst.msk [vmem:[#allocation3 + $0x58] sm:$0xff] %vm1427, %v3395
        %3480 = vst.msk [vmem:[#allocation3 + $0x60] sm:$0xff] %vm1427, %v3397
        %3481 = vst.msk [vmem:[#allocation3 + $0x68] sm:$0xff] %vm1427, %v3399
        %3482 = vst.msk [vmem:[#allocation3 + $0x70] sm:$0xff] %vm1427, %v3401
        %3483 = vst.msk [vmem:[#allocation3 + $0x78] sm:$0xff] %vm1427, %v3403
        %3484 = vst.msk [vmem:[#allocation3 + $0x80] sm:$0xff] %vm1427, %v3405
        %3485 = vst.msk [vmem:[#allocation3 + $0x88] sm:$0xff] %vm1427, %v3407
        %3486 = vst.msk [vmem:[#allocation3 + $0x90] sm:$0xff] %vm1427, %v3409
        %3487 = vst.msk [vmem:[#allocation3 + $0x98] sm:$0xff] %vm1427, %v3411
        %3488 = vst.msk [vmem:[#allocation3 + $0xa0] sm:$0xff] %vm1427, %v3413
        %3489 = vst.msk [vmem:[#allocation3 + $0xa8] sm:$0xff] %vm1427, %v3415
        %3490 = vst.msk [vmem:[#allocation3 + $0xb0] sm:$0xff] %vm1427, %v3417
        %3491 = vst.msk [vmem:[#allocation3 + $0xb8] sm:$0xff] %vm1427, %v3419
        %3492 = vst.msk [vmem:[#allocation3 + $0xc0] sm:$0xff] %vm1427, %v3421
        %3493 = vst.msk [vmem:[#allocation3 + $0xc8] sm:$0xff] %vm1427, %v3423
        %3494 = vst.msk [vmem:[#allocation3 + $0xd0] sm:$0xff] %vm1427, %v3425
        %3495 = vst.msk [vmem:[#allocation3 + $0xd8] sm:$0xff] %vm1427, %v3427
        %3496 = vst.msk [vmem:[#allocation3 + $0xe0] sm:$0xff] %vm1427, %v3429
        %3497 = vst.msk [vmem:[#allocation3 + $0xe8] sm:$0xff] %vm1427, %v3431
        %3498 = vst.msk [vmem:[#allocation3 + $0xf0] sm:$0xff] %vm1427, %v3433
        %3499 = vst.msk [vmem:[#allocation3 + $0xf8] sm:$0xff] %vm1427, %v3435
        %v3500 = vld [vmem:[%s784 + $0x1] sm:$0xff]
        %v3501 = vld [vmem:[%s784 + $0x9] sm:$0xff]
        %v3502 = vld [vmem:[%s784 + $0x19] sm:$0xff]
        %v3503 = vld [vmem:[%s784 + $0x21] sm:$0xff]
        %v3504 = vld [vmem:[%s784 + $0x31] sm:$0xff]
        %v3505 = vld [vmem:[%s784 + $0x39] sm:$0xff]
        %v3506 = vld [vmem:[%s784 + $0x49] sm:$0xff]
        %v3507 = vld [vmem:[%s784 + $0x51] sm:$0xff]
        %v3508 = vld [vmem:[%s784 + $0x61] sm:$0xff]
        %v3509 = vld [vmem:[%s784 + $0x69] sm:$0xff]
        %v3510 = vld [vmem:[%s784 + $0x79] sm:$0xff]
        %v3511 = vld [vmem:[%s784 + $0x81] sm:$0xff]
        %v3512 = vld [vmem:[%s784 + $0x91] sm:$0xff]
        %v3513 = vld [vmem:[%s784 + $0x99] sm:$0xff]
        %v3514 = vld [vmem:[%s784 + $0xa9] sm:$0xff]
        %v3515 = vld [vmem:[%s784 + $0xb1] sm:$0xff]
        %v3516 = vld [vmem:[%s784 + $0xc1] sm:$0xff]
        %v3517 = vld [vmem:[%s784 + $0xc9] sm:$0xff]
        %v3518 = vld [vmem:[%s784 + $0xd9] sm:$0xff]
        %v3519 = vld [vmem:[%s784 + $0xe1] sm:$0xff]
        %v3520 = vld [vmem:[%s784 + $0xf1] sm:$0xff]
        %v3521 = vld [vmem:[%s784 + $0xf9] sm:$0xff]
        %v3522 = vld [vmem:[%s784 + $0x109] sm:$0xff]
        %v3523 = vld [vmem:[%s784 + $0x111] sm:$0xff]
        %v3524 = vld [vmem:[%s784 + $0x121] sm:$0xff]
        %v3525 = vld [vmem:[%s784 + $0x129] sm:$0xff]
        %v3526 = vld [vmem:[%s784 + $0x139] sm:$0xff]
        %v3527 = vld [vmem:[%s784 + $0x141] sm:$0xff]
        %v3528 = vld [vmem:[%s784 + $0x151] sm:$0xff]
        %v3529 = vld [vmem:[%s784 + $0x159] sm:$0xff]
        %v3530 = vld [vmem:[%s784 + $0x169] sm:$0xff]
        %v3531 = vld [vmem:[%s784 + $0x171] sm:$0xff]
        %3564 = vrot.lane.b32.xlu0 %v3500, 16
        %v3565 = vpop.permute.xlu0 %3564
        %3566 = vrot.lane.b32.xlu0 %v3501, 16
        %v3567 = vpop.permute.xlu0 %3566
        %3568 = vrot.lane.b32.xlu0 %v3502, 16
        %v3569 = vpop.permute.xlu0 %3568
        %3570 = vrot.lane.b32.xlu0 %v3503, 16
        %v3571 = vpop.permute.xlu0 %3570
        %3572 = vrot.lane.b32.xlu0 %v3504, 16
        %v3573 = vpop.permute.xlu0 %3572
        %3574 = vrot.lane.b32.xlu0 %v3505, 16
        %v3575 = vpop.permute.xlu0 %3574
        %3576 = vrot.lane.b32.xlu0 %v3506, 16
        %v3577 = vpop.permute.xlu0 %3576
        %3578 = vrot.lane.b32.xlu0 %v3507, 16
        %v3579 = vpop.permute.xlu0 %3578
        %3580 = vrot.lane.b32.xlu0 %v3508, 16
        %v3581 = vpop.permute.xlu0 %3580
        %3582 = vrot.lane.b32.xlu0 %v3509, 16
        %v3583 = vpop.permute.xlu0 %3582
        %3584 = vrot.lane.b32.xlu0 %v3510, 16
        %v3585 = vpop.permute.xlu0 %3584
        %3586 = vrot.lane.b32.xlu0 %v3511, 16
        %v3587 = vpop.permute.xlu0 %3586
        %3588 = vrot.lane.b32.xlu0 %v3512, 16
        %v3589 = vpop.permute.xlu0 %3588
        %3590 = vrot.lane.b32.xlu0 %v3513, 16
        %v3591 = vpop.permute.xlu0 %3590
        %3592 = vrot.lane.b32.xlu0 %v3514, 16
        %v3593 = vpop.permute.xlu0 %3592
        %3594 = vrot.lane.b32.xlu0 %v3515, 16
        %v3595 = vpop.permute.xlu0 %3594
        %3596 = vrot.lane.b32.xlu0 %v3516, 16
        %v3597 = vpop.permute.xlu0 %3596
        %3598 = vrot.lane.b32.xlu0 %v3517, 16
        %v3599 = vpop.permute.xlu0 %3598
        %3600 = vrot.lane.b32.xlu0 %v3518, 16
        %v3601 = vpop.permute.xlu0 %3600
        %3602 = vrot.lane.b32.xlu0 %v3519, 16
        %v3603 = vpop.permute.xlu0 %3602
        %3604 = vrot.lane.b32.xlu0 %v3520, 16
        %v3605 = vpop.permute.xlu0 %3604
        %3606 = vrot.lane.b32.xlu0 %v3521, 16
        %v3607 = vpop.permute.xlu0 %3606
        %3608 = vrot.lane.b32.xlu0 %v3522, 16
        %v3609 = vpop.permute.xlu0 %3608
        %3610 = vrot.lane.b32.xlu0 %v3523, 16
        %v3611 = vpop.permute.xlu0 %3610
        %3612 = vrot.lane.b32.xlu0 %v3524, 16
        %v3613 = vpop.permute.xlu0 %3612
        %3614 = vrot.lane.b32.xlu0 %v3525, 16
        %v3615 = vpop.permute.xlu0 %3614
        %3616 = vrot.lane.b32.xlu0 %v3526, 16
        %v3617 = vpop.permute.xlu0 %3616
        %3618 = vrot.lane.b32.xlu0 %v3527, 16
        %v3619 = vpop.permute.xlu0 %3618
        %3620 = vrot.lane.b32.xlu0 %v3528, 16
        %v3621 = vpop.permute.xlu0 %3620
        %3622 = vrot.lane.b32.xlu0 %v3529, 16
        %v3623 = vpop.permute.xlu0 %3622
        %3624 = vrot.lane.b32.xlu0 %v3530, 16
        %v3625 = vpop.permute.xlu0 %3624
        %3626 = vrot.lane.b32.xlu0 %v3531, 16
        %v3627 = vpop.permute.xlu0 %3626
        %3660 = vst.msk [vmem:[#allocation3] sm:$0xff] %vm1620, %v3565
        %3661 = vst.msk [vmem:[#allocation3 + $0x8] sm:$0xff] %vm1620, %v3567
        %3662 = vst.msk [vmem:[#allocation3 + $0x10] sm:$0xff] %vm1620, %v3569
        %3663 = vst.msk [vmem:[#allocation3 + $0x18] sm:$0xff] %vm1620, %v3571
        %3664 = vst.msk [vmem:[#allocation3 + $0x20] sm:$0xff] %vm1620, %v3573
        %3665 = vst.msk [vmem:[#allocation3 + $0x28] sm:$0xff] %vm1620, %v3575
        %3666 = vst.msk [vmem:[#allocation3 + $0x30] sm:$0xff] %vm1620, %v3577
        %3667 = vst.msk [vmem:[#allocation3 + $0x38] sm:$0xff] %vm1620, %v3579
        %3668 = vst.msk [vmem:[#allocation3 + $0x40] sm:$0xff] %vm1620, %v3581
        %3669 = vst.msk [vmem:[#allocation3 + $0x48] sm:$0xff] %vm1620, %v3583
        %3670 = vst.msk [vmem:[#allocation3 + $0x50] sm:$0xff] %vm1620, %v3585
        %3671 = vst.msk [vmem:[#allocation3 + $0x58] sm:$0xff] %vm1620, %v3587
        %3672 = vst.msk [vmem:[#allocation3 + $0x60] sm:$0xff] %vm1620, %v3589
        %3673 = vst.msk [vmem:[#allocation3 + $0x68] sm:$0xff] %vm1620, %v3591
        %3674 = vst.msk [vmem:[#allocation3 + $0x70] sm:$0xff] %vm1620, %v3593
        %3675 = vst.msk [vmem:[#allocation3 + $0x78] sm:$0xff] %vm1620, %v3595
        %3676 = vst.msk [vmem:[#allocation3 + $0x80] sm:$0xff] %vm1620, %v3597
        %3677 = vst.msk [vmem:[#allocation3 + $0x88] sm:$0xff] %vm1620, %v3599
        %3678 = vst.msk [vmem:[#allocation3 + $0x90] sm:$0xff] %vm1620, %v3601
        %3679 = vst.msk [vmem:[#allocation3 + $0x98] sm:$0xff] %vm1620, %v3603
        %3680 = vst.msk [vmem:[#allocation3 + $0xa0] sm:$0xff] %vm1620, %v3605
        %3681 = vst.msk [vmem:[#allocation3 + $0xa8] sm:$0xff] %vm1620, %v3607
        %3682 = vst.msk [vmem:[#allocation3 + $0xb0] sm:$0xff] %vm1620, %v3609
        %3683 = vst.msk [vmem:[#allocation3 + $0xb8] sm:$0xff] %vm1620, %v3611
        %3684 = vst.msk [vmem:[#allocation3 + $0xc0] sm:$0xff] %vm1620, %v3613
        %3685 = vst.msk [vmem:[#allocation3 + $0xc8] sm:$0xff] %vm1620, %v3615
        %3686 = vst.msk [vmem:[#allocation3 + $0xd0] sm:$0xff] %vm1620, %v3617
        %3687 = vst.msk [vmem:[#allocation3 + $0xd8] sm:$0xff] %vm1620, %v3619
        %3688 = vst.msk [vmem:[#allocation3 + $0xe0] sm:$0xff] %vm1620, %v3621
        %3689 = vst.msk [vmem:[#allocation3 + $0xe8] sm:$0xff] %vm1620, %v3623
        %3690 = vst.msk [vmem:[#allocation3 + $0xf0] sm:$0xff] %vm1620, %v3625
        %3691 = vst.msk [vmem:[#allocation3 + $0xf8] sm:$0xff] %vm1620, %v3627
        %v3692 = vld [vmem:[%s784 + $0x2] sm:$0xff]
        %v3693 = vld [vmem:[%s784 + $0xa] sm:$0xff]
        %v3694 = vld [vmem:[%s784 + $0x1a] sm:$0xff]
        %v3695 = vld [vmem:[%s784 + $0x22] sm:$0xff]
        %v3696 = vld [vmem:[%s784 + $0x32] sm:$0xff]
        %v3697 = vld [vmem:[%s784 + $0x3a] sm:$0xff]
        %v3698 = vld [vmem:[%s784 + $0x4a] sm:$0xff]
        %v3699 = vld [vmem:[%s784 + $0x52] sm:$0xff]
        %v3700 = vld [vmem:[%s784 + $0x62] sm:$0xff]
        %v3701 = vld [vmem:[%s784 + $0x6a] sm:$0xff]
        %v3702 = vld [vmem:[%s784 + $0x7a] sm:$0xff]
        %v3703 = vld [vmem:[%s784 + $0x82] sm:$0xff]
        %v3704 = vld [vmem:[%s784 + $0x92] sm:$0xff]
        %v3705 = vld [vmem:[%s784 + $0x9a] sm:$0xff]
        %v3706 = vld [vmem:[%s784 + $0xaa] sm:$0xff]
        %v3707 = vld [vmem:[%s784 + $0xb2] sm:$0xff]
        %v3708 = vld [vmem:[%s784 + $0xc2] sm:$0xff]
        %v3709 = vld [vmem:[%s784 + $0xca] sm:$0xff]
        %v3710 = vld [vmem:[%s784 + $0xda] sm:$0xff]
        %v3711 = vld [vmem:[%s784 + $0xe2] sm:$0xff]
        %v3712 = vld [vmem:[%s784 + $0xf2] sm:$0xff]
        %v3713 = vld [vmem:[%s784 + $0xfa] sm:$0xff]
        %v3714 = vld [vmem:[%s784 + $0x10a] sm:$0xff]
        %v3715 = vld [vmem:[%s784 + $0x112] sm:$0xff]
        %v3716 = vld [vmem:[%s784 + $0x122] sm:$0xff]
        %v3717 = vld [vmem:[%s784 + $0x12a] sm:$0xff]
        %v3718 = vld [vmem:[%s784 + $0x13a] sm:$0xff]
        %v3719 = vld [vmem:[%s784 + $0x142] sm:$0xff]
        %v3720 = vld [vmem:[%s784 + $0x152] sm:$0xff]
        %v3721 = vld [vmem:[%s784 + $0x15a] sm:$0xff]
        %v3722 = vld [vmem:[%s784 + $0x16a] sm:$0xff]
        %v3723 = vld [vmem:[%s784 + $0x172] sm:$0xff]
        %3756 = vrot.lane.b32.xlu0 %v3692, 20
        %v3757 = vpop.permute.xlu0 %3756
        %3758 = vrot.lane.b32.xlu0 %v3693, 20
        %v3759 = vpop.permute.xlu0 %3758
        %3760 = vrot.lane.b32.xlu0 %v3694, 20
        %v3761 = vpop.permute.xlu0 %3760
        %3762 = vrot.lane.b32.xlu0 %v3695, 20
        %v3763 = vpop.permute.xlu0 %3762
        %3764 = vrot.lane.b32.xlu0 %v3696, 20
        %v3765 = vpop.permute.xlu0 %3764
        %3766 = vrot.lane.b32.xlu0 %v3697, 20
        %v3767 = vpop.permute.xlu0 %3766
        %3768 = vrot.lane.b32.xlu0 %v3698, 20
        %v3769 = vpop.permute.xlu0 %3768
        %3770 = vrot.lane.b32.xlu0 %v3699, 20
        %v3771 = vpop.permute.xlu0 %3770
        %3772 = vrot.lane.b32.xlu0 %v3700, 20
        %v3773 = vpop.permute.xlu0 %3772
        %3774 = vrot.lane.b32.xlu0 %v3701, 20
        %v3775 = vpop.permute.xlu0 %3774
        %3776 = vrot.lane.b32.xlu0 %v3702, 20
        %v3777 = vpop.permute.xlu0 %3776
        %3778 = vrot.lane.b32.xlu0 %v3703, 20
        %v3779 = vpop.permute.xlu0 %3778
        %3780 = vrot.lane.b32.xlu0 %v3704, 20
        %v3781 = vpop.permute.xlu0 %3780
        %3782 = vrot.lane.b32.xlu0 %v3705, 20
        %v3783 = vpop.permute.xlu0 %3782
        %3784 = vrot.lane.b32.xlu0 %v3706, 20
        %v3785 = vpop.permute.xlu0 %3784
        %3786 = vrot.lane.b32.xlu0 %v3707, 20
        %v3787 = vpop.permute.xlu0 %3786
        %3788 = vrot.lane.b32.xlu0 %v3708, 20
        %v3789 = vpop.permute.xlu0 %3788
        %3790 = vrot.lane.b32.xlu0 %v3709, 20
        %v3791 = vpop.permute.xlu0 %3790
        %3792 = vrot.lane.b32.xlu0 %v3710, 20
        %v3793 = vpop.permute.xlu0 %3792
        %3794 = vrot.lane.b32.xlu0 %v3711, 20
        %v3795 = vpop.permute.xlu0 %3794
        %3796 = vrot.lane.b32.xlu0 %v3712, 20
        %v3797 = vpop.permute.xlu0 %3796
        %3798 = vrot.lane.b32.xlu0 %v3713, 20
        %v3799 = vpop.permute.xlu0 %3798
        %3800 = vrot.lane.b32.xlu0 %v3714, 20
        %v3801 = vpop.permute.xlu0 %3800
        %3802 = vrot.lane.b32.xlu0 %v3715, 20
        %v3803 = vpop.permute.xlu0 %3802
        %3804 = vrot.lane.b32.xlu0 %v3716, 20
        %v3805 = vpop.permute.xlu0 %3804
        %3806 = vrot.lane.b32.xlu0 %v3717, 20
        %v3807 = vpop.permute.xlu0 %3806
        %3808 = vrot.lane.b32.xlu0 %v3718, 20
        %v3809 = vpop.permute.xlu0 %3808
        %3810 = vrot.lane.b32.xlu0 %v3719, 20
        %v3811 = vpop.permute.xlu0 %3810
        %3812 = vrot.lane.b32.xlu0 %v3720, 20
        %v3813 = vpop.permute.xlu0 %3812
        %3814 = vrot.lane.b32.xlu0 %v3721, 20
        %v3815 = vpop.permute.xlu0 %3814
        %3816 = vrot.lane.b32.xlu0 %v3722, 20
        %v3817 = vpop.permute.xlu0 %3816
        %3818 = vrot.lane.b32.xlu0 %v3723, 20
        %v3819 = vpop.permute.xlu0 %3818
        %3852 = vst.msk [vmem:[#allocation3] sm:$0xff] %vm1813, %v3757
        %3853 = vst.msk [vmem:[#allocation3 + $0x8] sm:$0xff] %vm1813, %v3759
        %3854 = vst.msk [vmem:[#allocation3 + $0x10] sm:$0xff] %vm1813, %v3761
        %3855 = vst.msk [vmem:[#allocation3 + $0x18] sm:$0xff] %vm1813, %v3763
        %3856 = vst.msk [vmem:[#allocation3 + $0x20] sm:$0xff] %vm1813, %v3765
        %3857 = vst.msk [vmem:[#allocation3 + $0x28] sm:$0xff] %vm1813, %v3767
        %3858 = vst.msk [vmem:[#allocation3 + $0x30] sm:$0xff] %vm1813, %v3769
        %3859 = vst.msk [vmem:[#allocation3 + $0x38] sm:$0xff] %vm1813, %v3771
        %3860 = vst.msk [vmem:[#allocation3 + $0x40] sm:$0xff] %vm1813, %v3773
        %3861 = vst.msk [vmem:[#allocation3 + $0x48] sm:$0xff] %vm1813, %v3775
        %3862 = vst.msk [vmem:[#allocation3 + $0x50] sm:$0xff] %vm1813, %v3777
        %3863 = vst.msk [vmem:[#allocation3 + $0x58] sm:$0xff] %vm1813, %v3779
        %3864 = vst.msk [vmem:[#allocation3 + $0x60] sm:$0xff] %vm1813, %v3781
        %3865 = vst.msk [vmem:[#allocation3 + $0x68] sm:$0xff] %vm1813, %v3783
        %3866 = vst.msk [vmem:[#allocation3 + $0x70] sm:$0xff] %vm1813, %v3785
        %3867 = vst.msk [vmem:[#allocation3 + $0x78] sm:$0xff] %vm1813, %v3787
        %3868 = vst.msk [vmem:[#allocation3 + $0x80] sm:$0xff] %vm1813, %v3789
        %3869 = vst.msk [vmem:[#allocation3 + $0x88] sm:$0xff] %vm1813, %v3791
        %3870 = vst.msk [vmem:[#allocation3 + $0x90] sm:$0xff] %vm1813, %v3793
        %3871 = vst.msk [vmem:[#allocation3 + $0x98] sm:$0xff] %vm1813, %v3795
        %3872 = vst.msk [vmem:[#allocation3 + $0xa0] sm:$0xff] %vm1813, %v3797
        %3873 = vst.msk [vmem:[#allocation3 + $0xa8] sm:$0xff] %vm1813, %v3799
        %3874 = vst.msk [vmem:[#allocation3 + $0xb0] sm:$0xff] %vm1813, %v3801
        %3875 = vst.msk [vmem:[#allocation3 + $0xb8] sm:$0xff] %vm1813, %v3803
        %3876 = vst.msk [vmem:[#allocation3 + $0xc0] sm:$0xff] %vm1813, %v3805
        %3877 = vst.msk [vmem:[#allocation3 + $0xc8] sm:$0xff] %vm1813, %v3807
        %3878 = vst.msk [vmem:[#allocation3 + $0xd0] sm:$0xff] %vm1813, %v3809
        %3879 = vst.msk [vmem:[#allocation3 + $0xd8] sm:$0xff] %vm1813, %v3811
        %3880 = vst.msk [vmem:[#allocation3 + $0xe0] sm:$0xff] %vm1813, %v3813
        %3881 = vst.msk [vmem:[#allocation3 + $0xe8] sm:$0xff] %vm1813, %v3815
        %3882 = vst.msk [vmem:[#allocation3 + $0xf0] sm:$0xff] %vm1813, %v3817
        %3883 = vst.msk [vmem:[#allocation3 + $0xf8] sm:$0xff] %vm1813, %v3819
        %v3884 = vld [vmem:[%s1846] sm:$0xff]
        %v3885 = vld [vmem:[%s1846 + $0x8] sm:$0xff]
        %v3886 = vld [vmem:[%s1846 + $0x18] sm:$0xff]
        %v3887 = vld [vmem:[%s1846 + $0x20] sm:$0xff]
        %v3888 = vld [vmem:[%s1846 + $0x30] sm:$0xff]
        %v3889 = vld [vmem:[%s1846 + $0x38] sm:$0xff]
        %v3890 = vld [vmem:[%s1846 + $0x48] sm:$0xff]
        %v3891 = vld [vmem:[%s1846 + $0x50] sm:$0xff]
        %v3892 = vld [vmem:[%s1846 + $0x60] sm:$0xff]
        %v3893 = vld [vmem:[%s1846 + $0x68] sm:$0xff]
        %v3894 = vld [vmem:[%s1846 + $0x78] sm:$0xff]
        %v3895 = vld [vmem:[%s1846 + $0x80] sm:$0xff]
        %v3896 = vld [vmem:[%s1846 + $0x90] sm:$0xff]
        %v3897 = vld [vmem:[%s1846 + $0x98] sm:$0xff]
        %v3898 = vld [vmem:[%s1846 + $0xa8] sm:$0xff]
        %v3899 = vld [vmem:[%s1846 + $0xb0] sm:$0xff]
        %v3900 = vld [vmem:[%s1846 + $0xc0] sm:$0xff]
        %v3901 = vld [vmem:[%s1846 + $0xc8] sm:$0xff]
        %v3902 = vld [vmem:[%s1846 + $0xd8] sm:$0xff]
        %v3903 = vld [vmem:[%s1846 + $0xe0] sm:$0xff]
        %v3904 = vld [vmem:[%s1846 + $0xf0] sm:$0xff]
        %v3905 = vld [vmem:[%s1846 + $0xf8] sm:$0xff]
        %v3906 = vld [vmem:[%s1846 + $0x108] sm:$0xff]
        %v3907 = vld [vmem:[%s1846 + $0x110] sm:$0xff]
        %v3908 = vld [vmem:[%s1846 + $0x120] sm:$0xff]
        %v3909 = vld [vmem:[%s1846 + $0x128] sm:$0xff]
        %v3910 = vld [vmem:[%s1846 + $0x138] sm:$0xff]
        %v3911 = vld [vmem:[%s1846 + $0x140] sm:$0xff]
        %v3912 = vld [vmem:[%s1846 + $0x150] sm:$0xff]
        %v3913 = vld [vmem:[%s1846 + $0x158] sm:$0xff]
        %v3914 = vld [vmem:[%s1846 + $0x168] sm:$0xff]
        %v3915 = vld [vmem:[%s1846 + $0x170] sm:$0xff]
        %3948 = vrot.lane.b32.xlu0 %v3884, 24
        %v3949 = vpop.permute.xlu0 %3948
        %3950 = vrot.lane.b32.xlu0 %v3885, 24
        %v3951 = vpop.permute.xlu0 %3950
        %3952 = vrot.lane.b32.xlu0 %v3886, 24
        %v3953 = vpop.permute.xlu0 %3952
        %3954 = vrot.lane.b32.xlu0 %v3887, 24
        %v3955 = vpop.permute.xlu0 %3954
        %3956 = vrot.lane.b32.xlu0 %v3888, 24
        %v3957 = vpop.permute.xlu0 %3956
        %3958 = vrot.lane.b32.xlu0 %v3889, 24
        %v3959 = vpop.permute.xlu0 %3958
        %3960 = vrot.lane.b32.xlu0 %v3890, 24
        %v3961 = vpop.permute.xlu0 %3960
        %3962 = vrot.lane.b32.xlu0 %v3891, 24
        %v3963 = vpop.permute.xlu0 %3962
        %3964 = vrot.lane.b32.xlu0 %v3892, 24
        %v3965 = vpop.permute.xlu0 %3964
        %3966 = vrot.lane.b32.xlu0 %v3893, 24
        %v3967 = vpop.permute.xlu0 %3966
        %3968 = vrot.lane.b32.xlu0 %v3894, 24
        %v3969 = vpop.permute.xlu0 %3968
        %3970 = vrot.lane.b32.xlu0 %v3895, 24
        %v3971 = vpop.permute.xlu0 %3970
        %3972 = vrot.lane.b32.xlu0 %v3896, 24
        %v3973 = vpop.permute.xlu0 %3972
        %3974 = vrot.lane.b32.xlu0 %v3897, 24
        %v3975 = vpop.permute.xlu0 %3974
        %3976 = vrot.lane.b32.xlu0 %v3898, 24
        %v3977 = vpop.permute.xlu0 %3976
        %3978 = vrot.lane.b32.xlu0 %v3899, 24
        %v3979 = vpop.permute.xlu0 %3978
        %3980 = vrot.lane.b32.xlu0 %v3900, 24
        %v3981 = vpop.permute.xlu0 %3980
        %3982 = vrot.lane.b32.xlu0 %v3901, 24
        %v3983 = vpop.permute.xlu0 %3982
        %3984 = vrot.lane.b32.xlu0 %v3902, 24
        %v3985 = vpop.permute.xlu0 %3984
        %3986 = vrot.lane.b32.xlu0 %v3903, 24
        %v3987 = vpop.permute.xlu0 %3986
        %3988 = vrot.lane.b32.xlu0 %v3904, 24
        %v3989 = vpop.permute.xlu0 %3988
        %3990 = vrot.lane.b32.xlu0 %v3905, 24
        %v3991 = vpop.permute.xlu0 %3990
        %3992 = vrot.lane.b32.xlu0 %v3906, 24
        %v3993 = vpop.permute.xlu0 %3992
        %3994 = vrot.lane.b32.xlu0 %v3907, 24
        %v3995 = vpop.permute.xlu0 %3994
        %3996 = vrot.lane.b32.xlu0 %v3908, 24
        %v3997 = vpop.permute.xlu0 %3996
        %3998 = vrot.lane.b32.xlu0 %v3909, 24
        %v3999 = vpop.permute.xlu0 %3998
        %4000 = vrot.lane.b32.xlu0 %v3910, 24
        %v4001 = vpop.permute.xlu0 %4000
        %4002 = vrot.lane.b32.xlu0 %v3911, 24
        %v4003 = vpop.permute.xlu0 %4002
        %4004 = vrot.lane.b32.xlu0 %v3912, 24
        %v4005 = vpop.permute.xlu0 %4004
        %4006 = vrot.lane.b32.xlu0 %v3913, 24
        %v4007 = vpop.permute.xlu0 %4006
        %4008 = vrot.lane.b32.xlu0 %v3914, 24
        %v4009 = vpop.permute.xlu0 %4008
        %4010 = vrot.lane.b32.xlu0 %v3915, 24
        %v4011 = vpop.permute.xlu0 %4010
        %4044 = vst.msk [vmem:[#allocation3] sm:$0xff] %vm2007, %v3949
        %4045 = vst.msk [vmem:[#allocation3 + $0x8] sm:$0xff] %vm2007, %v3951
        %4046 = vst.msk [vmem:[#allocation3 + $0x10] sm:$0xff] %vm2007, %v3953
        %4047 = vst.msk [vmem:[#allocation3 + $0x18] sm:$0xff] %vm2007, %v3955
        %4048 = vst.msk [vmem:[#allocation3 + $0x20] sm:$0xff] %vm2007, %v3957
        %4049 = vst.msk [vmem:[#allocation3 + $0x28] sm:$0xff] %vm2007, %v3959
        %4050 = vst.msk [vmem:[#allocation3 + $0x30] sm:$0xff] %vm2007, %v3961
        %4051 = vst.msk [vmem:[#allocation3 + $0x38] sm:$0xff] %vm2007, %v3963
        %4052 = vst.msk [vmem:[#allocation3 + $0x40] sm:$0xff] %vm2007, %v3965
        %4053 = vst.msk [vmem:[#allocation3 + $0x48] sm:$0xff] %vm2007, %v3967
        %4054 = vst.msk [vmem:[#allocation3 + $0x50] sm:$0xff] %vm2007, %v3969
        %4055 = vst.msk [vmem:[#allocation3 + $0x58] sm:$0xff] %vm2007, %v3971
        %4056 = vst.msk [vmem:[#allocation3 + $0x60] sm:$0xff] %vm2007, %v3973
        %4057 = vst.msk [vmem:[#allocation3 + $0x68] sm:$0xff] %vm2007, %v3975
        %4058 = vst.msk [vmem:[#allocation3 + $0x70] sm:$0xff] %vm2007, %v3977
        %4059 = vst.msk [vmem:[#allocation3 + $0x78] sm:$0xff] %vm2007, %v3979
        %4060 = vst.msk [vmem:[#allocation3 + $0x80] sm:$0xff] %vm2007, %v3981
        %4061 = vst.msk [vmem:[#allocation3 + $0x88] sm:$0xff] %vm2007, %v3983
        %4062 = vst.msk [vmem:[#allocation3 + $0x90] sm:$0xff] %vm2007, %v3985
        %4063 = vst.msk [vmem:[#allocation3 + $0x98] sm:$0xff] %vm2007, %v3987
        %4064 = vst.msk [vmem:[#allocation3 + $0xa0] sm:$0xff] %vm2007, %v3989
        %4065 = vst.msk [vmem:[#allocation3 + $0xa8] sm:$0xff] %vm2007, %v3991
        %4066 = vst.msk [vmem:[#allocation3 + $0xb0] sm:$0xff] %vm2007, %v3993
        %4067 = vst.msk [vmem:[#allocation3 + $0xb8] sm:$0xff] %vm2007, %v3995
        %4068 = vst.msk [vmem:[#allocation3 + $0xc0] sm:$0xff] %vm2007, %v3997
        %4069 = vst.msk [vmem:[#allocation3 + $0xc8] sm:$0xff] %vm2007, %v3999
        %4070 = vst.msk [vmem:[#allocation3 + $0xd0] sm:$0xff] %vm2007, %v4001
        %4071 = vst.msk [vmem:[#allocation3 + $0xd8] sm:$0xff] %vm2007, %v4003
        %4072 = vst.msk [vmem:[#allocation3 + $0xe0] sm:$0xff] %vm2007, %v4005
        %4073 = vst.msk [vmem:[#allocation3 + $0xe8] sm:$0xff] %vm2007, %v4007
        %4074 = vst.msk [vmem:[#allocation3 + $0xf0] sm:$0xff] %vm2007, %v4009
        %4075 = vst.msk [vmem:[#allocation3 + $0xf8] sm:$0xff] %vm2007, %v4011
        %v4076 = vld [vmem:[%s1846 + $0x1] sm:$0xff]
        %v4077 = vld [vmem:[%s1846 + $0x9] sm:$0xff]
        %v4078 = vld [vmem:[%s1846 + $0x19] sm:$0xff]
        %v4079 = vld [vmem:[%s1846 + $0x21] sm:$0xff]
        %v4080 = vld [vmem:[%s1846 + $0x31] sm:$0xff]
        %v4081 = vld [vmem:[%s1846 + $0x39] sm:$0xff]
        %v4082 = vld [vmem:[%s1846 + $0x49] sm:$0xff]
        %v4083 = vld [vmem:[%s1846 + $0x51] sm:$0xff]
        %v4084 = vld [vmem:[%s1846 + $0x61] sm:$0xff]
        %v4085 = vld [vmem:[%s1846 + $0x69] sm:$0xff]
        %v4086 = vld [vmem:[%s1846 + $0x79] sm:$0xff]
        %v4087 = vld [vmem:[%s1846 + $0x81] sm:$0xff]
        %v4088 = vld [vmem:[%s1846 + $0x91] sm:$0xff]
        %v4089 = vld [vmem:[%s1846 + $0x99] sm:$0xff]
        %v4090 = vld [vmem:[%s1846 + $0xa9] sm:$0xff]
        %v4091 = vld [vmem:[%s1846 + $0xb1] sm:$0xff]
        %v4092 = vld [vmem:[%s1846 + $0xc1] sm:$0xff]
        %v4093 = vld [vmem:[%s1846 + $0xc9] sm:$0xff]
        %v4094 = vld [vmem:[%s1846 + $0xd9] sm:$0xff]
        %v4095 = vld [vmem:[%s1846 + $0xe1] sm:$0xff]
        %v4096 = vld [vmem:[%s1846 + $0xf1] sm:$0xff]
        %v4097 = vld [vmem:[%s1846 + $0xf9] sm:$0xff]
        %v4098 = vld [vmem:[%s1846 + $0x109] sm:$0xff]
        %v4099 = vld [vmem:[%s1846 + $0x111] sm:$0xff]
        %v4100 = vld [vmem:[%s1846 + $0x121] sm:$0xff]
        %v4101 = vld [vmem:[%s1846 + $0x129] sm:$0xff]
        %v4102 = vld [vmem:[%s1846 + $0x139] sm:$0xff]
        %v4103 = vld [vmem:[%s1846 + $0x141] sm:$0xff]
        %v4104 = vld [vmem:[%s1846 + $0x151] sm:$0xff]
        %v4105 = vld [vmem:[%s1846 + $0x159] sm:$0xff]
        %v4106 = vld [vmem:[%s1846 + $0x169] sm:$0xff]
        %v4107 = vld [vmem:[%s1846 + $0x171] sm:$0xff]
        %4140 = vrot.lane.b32.xlu0 %v4076, 28
        %v4141 = vpop.permute.xlu0 %4140
        %4142 = vrot.lane.b32.xlu0 %v4077, 28
        %v4143 = vpop.permute.xlu0 %4142
        %4144 = vrot.lane.b32.xlu0 %v4078, 28
        %v4145 = vpop.permute.xlu0 %4144
        %4146 = vrot.lane.b32.xlu0 %v4079, 28
        %v4147 = vpop.permute.xlu0 %4146
        %4148 = vrot.lane.b32.xlu0 %v4080, 28
        %v4149 = vpop.permute.xlu0 %4148
        %4150 = vrot.lane.b32.xlu0 %v4081, 28
        %v4151 = vpop.permute.xlu0 %4150
        %4152 = vrot.lane.b32.xlu0 %v4082, 28
        %v4153 = vpop.permute.xlu0 %4152
        %4154 = vrot.lane.b32.xlu0 %v4083, 28
        %v4155 = vpop.permute.xlu0 %4154
        %4156 = vrot.lane.b32.xlu0 %v4084, 28
        %v4157 = vpop.permute.xlu0 %4156
        %4158 = vrot.lane.b32.xlu0 %v4085, 28
        %v4159 = vpop.permute.xlu0 %4158
        %4160 = vrot.lane.b32.xlu0 %v4086, 28
        %v4161 = vpop.permute.xlu0 %4160
        %4162 = vrot.lane.b32.xlu0 %v4087, 28
        %v4163 = vpop.permute.xlu0 %4162
        %4164 = vrot.lane.b32.xlu0 %v4088, 28
        %v4165 = vpop.permute.xlu0 %4164
        %4166 = vrot.lane.b32.xlu0 %v4089, 28
        %v4167 = vpop.permute.xlu0 %4166
        %4168 = vrot.lane.b32.xlu0 %v4090, 28
        %v4169 = vpop.permute.xlu0 %4168
        %4170 = vrot.lane.b32.xlu0 %v4091, 28
        %v4171 = vpop.permute.xlu0 %4170
        %4172 = vrot.lane.b32.xlu0 %v4092, 28
        %v4173 = vpop.permute.xlu0 %4172
        %4174 = vrot.lane.b32.xlu0 %v4093, 28
        %v4175 = vpop.permute.xlu0 %4174
        %4176 = vrot.lane.b32.xlu0 %v4094, 28
        %v4177 = vpop.permute.xlu0 %4176
        %4178 = vrot.lane.b32.xlu0 %v4095, 28
        %v4179 = vpop.permute.xlu0 %4178
        %4180 = vrot.lane.b32.xlu0 %v4096, 28
        %v4181 = vpop.permute.xlu0 %4180
        %4182 = vrot.lane.b32.xlu0 %v4097, 28
        %v4183 = vpop.permute.xlu0 %4182
        %4184 = vrot.lane.b32.xlu0 %v4098, 28
        %v4185 = vpop.permute.xlu0 %4184
        %4186 = vrot.lane.b32.xlu0 %v4099, 28
        %v4187 = vpop.permute.xlu0 %4186
        %4188 = vrot.lane.b32.xlu0 %v4100, 28
        %v4189 = vpop.permute.xlu0 %4188
        %4190 = vrot.lane.b32.xlu0 %v4101, 28
        %v4191 = vpop.permute.xlu0 %4190
        %4192 = vrot.lane.b32.xlu0 %v4102, 28
        %v4193 = vpop.permute.xlu0 %4192
        %4194 = vrot.lane.b32.xlu0 %v4103, 28
        %v4195 = vpop.permute.xlu0 %4194
        %4196 = vrot.lane.b32.xlu0 %v4104, 28
        %v4197 = vpop.permute.xlu0 %4196
        %4198 = vrot.lane.b32.xlu0 %v4105, 28
        %v4199 = vpop.permute.xlu0 %4198
        %4200 = vrot.lane.b32.xlu0 %v4106, 28
        %v4201 = vpop.permute.xlu0 %4200
        %4202 = vrot.lane.b32.xlu0 %v4107, 28
        %v4203 = vpop.permute.xlu0 %4202
        %4236 = vst.msk [vmem:[#allocation3] sm:$0xff] %vm2200, %v4141
        %4237 = vst.msk [vmem:[#allocation3 + $0x8] sm:$0xff] %vm2200, %v4143
        %4238 = vst.msk [vmem:[#allocation3 + $0x10] sm:$0xff] %vm2200, %v4145
        %4239 = vst.msk [vmem:[#allocation3 + $0x18] sm:$0xff] %vm2200, %v4147
        %4240 = vst.msk [vmem:[#allocation3 + $0x20] sm:$0xff] %vm2200, %v4149
        %4241 = vst.msk [vmem:[#allocation3 + $0x28] sm:$0xff] %vm2200, %v4151
        %4242 = vst.msk [vmem:[#allocation3 + $0x30] sm:$0xff] %vm2200, %v4153
        %4243 = vst.msk [vmem:[#allocation3 + $0x38] sm:$0xff] %vm2200, %v4155
        %4244 = vst.msk [vmem:[#allocation3 + $0x40] sm:$0xff] %vm2200, %v4157
        %4245 = vst.msk [vmem:[#allocation3 + $0x48] sm:$0xff] %vm2200, %v4159
        %4246 = vst.msk [vmem:[#allocation3 + $0x50] sm:$0xff] %vm2200, %v4161
        %4247 = vst.msk [vmem:[#allocation3 + $0x58] sm:$0xff] %vm2200, %v4163
        %4248 = vst.msk [vmem:[#allocation3 + $0x60] sm:$0xff] %vm2200, %v4165
        %4249 = vst.msk [vmem:[#allocation3 + $0x68] sm:$0xff] %vm2200, %v4167
        %4250 = vst.msk [vmem:[#allocation3 + $0x70] sm:$0xff] %vm2200, %v4169
        %4251 = vst.msk [vmem:[#allocation3 + $0x78] sm:$0xff] %vm2200, %v4171
        %4252 = vst.msk [vmem:[#allocation3 + $0x80] sm:$0xff] %vm2200, %v4173
        %4253 = vst.msk [vmem:[#allocation3 + $0x88] sm:$0xff] %vm2200, %v4175
        %4254 = vst.msk [vmem:[#allocation3 + $0x90] sm:$0xff] %vm2200, %v4177
        %4255 = vst.msk [vmem:[#allocation3 + $0x98] sm:$0xff] %vm2200, %v4179
        %4256 = vst.msk [vmem:[#allocation3 + $0xa0] sm:$0xff] %vm2200, %v4181
        %4257 = vst.msk [vmem:[#allocation3 + $0xa8] sm:$0xff] %vm2200, %v4183
        %4258 = vst.msk [vmem:[#allocation3 + $0xb0] sm:$0xff] %vm2200, %v4185
        %4259 = vst.msk [vmem:[#allocation3 + $0xb8] sm:$0xff] %vm2200, %v4187
        %4260 = vst.msk [vmem:[#allocation3 + $0xc0] sm:$0xff] %vm2200, %v4189
        %4261 = vst.msk [vmem:[#allocation3 + $0xc8] sm:$0xff] %vm2200, %v4191
        %4262 = vst.msk [vmem:[#allocation3 + $0xd0] sm:$0xff] %vm2200, %v4193
        %4263 = vst.msk [vmem:[#allocation3 + $0xd8] sm:$0xff] %vm2200, %v4195
        %4264 = vst.msk [vmem:[#allocation3 + $0xe0] sm:$0xff] %vm2200, %v4197
        %4265 = vst.msk [vmem:[#allocation3 + $0xe8] sm:$0xff] %vm2200, %v4199
        %4266 = vst.msk [vmem:[#allocation3 + $0xf0] sm:$0xff] %vm2200, %v4201
        %4267 = vst.msk [vmem:[#allocation3 + $0xf8] sm:$0xff] %vm2200, %v4203
        %v4268 = vld [vmem:[%s1846 + $0x2] sm:$0xff]
        %v4269 = vld [vmem:[%s1846 + $0xa] sm:$0xff]
        %v4270 = vld [vmem:[%s1846 + $0x1a] sm:$0xff]
        %v4271 = vld [vmem:[%s1846 + $0x22] sm:$0xff]
        %v4272 = vld [vmem:[%s1846 + $0x32] sm:$0xff]
        %v4273 = vld [vmem:[%s1846 + $0x3a] sm:$0xff]
        %v4274 = vld [vmem:[%s1846 + $0x4a] sm:$0xff]
        %v4275 = vld [vmem:[%s1846 + $0x52] sm:$0xff]
        %v4276 = vld [vmem:[%s1846 + $0x62] sm:$0xff]
        %v4277 = vld [vmem:[%s1846 + $0x6a] sm:$0xff]
        %v4278 = vld [vmem:[%s1846 + $0x7a] sm:$0xff]
        %v4279 = vld [vmem:[%s1846 + $0x82] sm:$0xff]
        %v4280 = vld [vmem:[%s1846 + $0x92] sm:$0xff]
        %v4281 = vld [vmem:[%s1846 + $0x9a] sm:$0xff]
        %v4282 = vld [vmem:[%s1846 + $0xaa] sm:$0xff]
        %v4283 = vld [vmem:[%s1846 + $0xb2] sm:$0xff]
        %v4284 = vld [vmem:[%s1846 + $0xc2] sm:$0xff]
        %v4285 = vld [vmem:[%s1846 + $0xca] sm:$0xff]
        %v4286 = vld [vmem:[%s1846 + $0xda] sm:$0xff]
        %v4287 = vld [vmem:[%s1846 + $0xe2] sm:$0xff]
        %v4288 = vld [vmem:[%s1846 + $0xf2] sm:$0xff]
        %v4289 = vld [vmem:[%s1846 + $0xfa] sm:$0xff]
        %v4290 = vld [vmem:[%s1846 + $0x10a] sm:$0xff]
        %v4291 = vld [vmem:[%s1846 + $0x112] sm:$0xff]
        %v4292 = vld [vmem:[%s1846 + $0x122] sm:$0xff]
        %v4293 = vld [vmem:[%s1846 + $0x12a] sm:$0xff]
        %v4294 = vld [vmem:[%s1846 + $0x13a] sm:$0xff]
        %v4295 = vld [vmem:[%s1846 + $0x142] sm:$0xff]
        %v4296 = vld [vmem:[%s1846 + $0x152] sm:$0xff]
        %v4297 = vld [vmem:[%s1846 + $0x15a] sm:$0xff]
        %v4298 = vld [vmem:[%s1846 + $0x16a] sm:$0xff]
        %v4299 = vld [vmem:[%s1846 + $0x172] sm:$0xff]
        %4332 = vrot.lane.b32.xlu0 %v4268, 32
        %v4333 = vpop.permute.xlu0 %4332
        %4334 = vrot.lane.b32.xlu0 %v4269, 32
        %v4335 = vpop.permute.xlu0 %4334
        %4336 = vrot.lane.b32.xlu0 %v4270, 32
        %v4337 = vpop.permute.xlu0 %4336
        %4338 = vrot.lane.b32.xlu0 %v4271, 32
        %v4339 = vpop.permute.xlu0 %4338
        %4340 = vrot.lane.b32.xlu0 %v4272, 32
        %v4341 = vpop.permute.xlu0 %4340
        %4342 = vrot.lane.b32.xlu0 %v4273, 32
        %v4343 = vpop.permute.xlu0 %4342
        %4344 = vrot.lane.b32.xlu0 %v4274, 32
        %v4345 = vpop.permute.xlu0 %4344
        %4346 = vrot.lane.b32.xlu0 %v4275, 32
        %v4347 = vpop.permute.xlu0 %4346
        %4348 = vrot.lane.b32.xlu0 %v4276, 32
        %v4349 = vpop.permute.xlu0 %4348
        %4350 = vrot.lane.b32.xlu0 %v4277, 32
        %v4351 = vpop.permute.xlu0 %4350
        %4352 = vrot.lane.b32.xlu0 %v4278, 32
        %v4353 = vpop.permute.xlu0 %4352
        %4354 = vrot.lane.b32.xlu0 %v4279, 32
        %v4355 = vpop.permute.xlu0 %4354
        %4356 = vrot.lane.b32.xlu0 %v4280, 32
        %v4357 = vpop.permute.xlu0 %4356
        %4358 = vrot.lane.b32.xlu0 %v4281, 32
        %v4359 = vpop.permute.xlu0 %4358
        %4360 = vrot.lane.b32.xlu0 %v4282, 32
        %v4361 = vpop.permute.xlu0 %4360
        %4362 = vrot.lane.b32.xlu0 %v4283, 32
        %v4363 = vpop.permute.xlu0 %4362
        %4364 = vrot.lane.b32.xlu0 %v4284, 32
        %v4365 = vpop.permute.xlu0 %4364
        %4366 = vrot.lane.b32.xlu0 %v4285, 32
        %v4367 = vpop.permute.xlu0 %4366
        %4368 = vrot.lane.b32.xlu0 %v4286, 32
        %v4369 = vpop.permute.xlu0 %4368
        %4370 = vrot.lane.b32.xlu0 %v4287, 32
        %v4371 = vpop.permute.xlu0 %4370
        %4372 = vrot.lane.b32.xlu0 %v4288, 32
        %v4373 = vpop.permute.xlu0 %4372
        %4374 = vrot.lane.b32.xlu0 %v4289, 32
        %v4375 = vpop.permute.xlu0 %4374
        %4376 = vrot.lane.b32.xlu0 %v4290, 32
        %v4377 = vpop.permute.xlu0 %4376
        %4378 = vrot.lane.b32.xlu0 %v4291, 32
        %v4379 = vpop.permute.xlu0 %4378
        %4380 = vrot.lane.b32.xlu0 %v4292, 32
        %v4381 = vpop.permute.xlu0 %4380
        %4382 = vrot.lane.b32.xlu0 %v4293, 32
        %v4383 = vpop.permute.xlu0 %4382
        %4384 = vrot.lane.b32.xlu0 %v4294, 32
        %v4385 = vpop.permute.xlu0 %4384
        %4386 = vrot.lane.b32.xlu0 %v4295, 32
        %v4387 = vpop.permute.xlu0 %4386
        %4388 = vrot.lane.b32.xlu0 %v4296, 32
        %v4389 = vpop.permute.xlu0 %4388
        %4390 = vrot.lane.b32.xlu0 %v4297, 32
        %v4391 = vpop.permute.xlu0 %4390
        %4392 = vrot.lane.b32.xlu0 %v4298, 32
        %v4393 = vpop.permute.xlu0 %4392
        %4394 = vrot.lane.b32.xlu0 %v4299, 32
        %v4395 = vpop.permute.xlu0 %4394
        %4428 = vst.msk [vmem:[#allocation3] sm:$0xff] %vm2393, %v4333
        %4429 = vst.msk [vmem:[#allocation3 + $0x8] sm:$0xff] %vm2393, %v4335
        %4430 = vst.msk [vmem:[#allocation3 + $0x10] sm:$0xff] %vm2393, %v4337
        %4431 = vst.msk [vmem:[#allocation3 + $0x18] sm:$0xff] %vm2393, %v4339
        %4432 = vst.msk [vmem:[#allocation3 + $0x20] sm:$0xff] %vm2393, %v4341
        %4433 = vst.msk [vmem:[#allocation3 + $0x28] sm:$0xff] %vm2393, %v4343
        %4434 = vst.msk [vmem:[#allocation3 + $0x30] sm:$0xff] %vm2393, %v4345
        %4435 = vst.msk [vmem:[#allocation3 + $0x38] sm:$0xff] %vm2393, %v4347
        %4436 = vst.msk [vmem:[#allocation3 + $0x40] sm:$0xff] %vm2393, %v4349
        %4437 = vst.msk [vmem:[#allocation3 + $0x48] sm:$0xff] %vm2393, %v4351
        %4438 = vst.msk [vmem:[#allocation3 + $0x50] sm:$0xff] %vm2393, %v4353
        %4439 = vst.msk [vmem:[#allocation3 + $0x58] sm:$0xff] %vm2393, %v4355
        %4440 = vst.msk [vmem:[#allocation3 + $0x60] sm:$0xff] %vm2393, %v4357
        %4441 = vst.msk [vmem:[#allocation3 + $0x68] sm:$0xff] %vm2393, %v4359
        %4442 = vst.msk [vmem:[#allocation3 + $0x70] sm:$0xff] %vm2393, %v4361
        %4443 = vst.msk [vmem:[#allocation3 + $0x78] sm:$0xff] %vm2393, %v4363
        %4444 = vst.msk [vmem:[#allocation3 + $0x80] sm:$0xff] %vm2393, %v4365
        %4445 = vst.msk [vmem:[#allocation3 + $0x88] sm:$0xff] %vm2393, %v4367
        %4446 = vst.msk [vmem:[#allocation3 + $0x90] sm:$0xff] %vm2393, %v4369
        %4447 = vst.msk [vmem:[#allocation3 + $0x98] sm:$0xff] %vm2393, %v4371
        %4448 = vst.msk [vmem:[#allocation3 + $0xa0] sm:$0xff] %vm2393, %v4373
        %4449 = vst.msk [vmem:[#allocation3 + $0xa8] sm:$0xff] %vm2393, %v4375
        %4450 = vst.msk [vmem:[#allocation3 + $0xb0] sm:$0xff] %vm2393, %v4377
        %4451 = vst.msk [vmem:[#allocation3 + $0xb8] sm:$0xff] %vm2393, %v4379
        %4452 = vst.msk [vmem:[#allocation3 + $0xc0] sm:$0xff] %vm2393, %v4381
        %4453 = vst.msk [vmem:[#allocation3 + $0xc8] sm:$0xff] %vm2393, %v4383
        %4454 = vst.msk [vmem:[#allocation3 + $0xd0] sm:$0xff] %vm2393, %v4385
        %4455 = vst.msk [vmem:[#allocation3 + $0xd8] sm:$0xff] %vm2393, %v4387
        %4456 = vst.msk [vmem:[#allocation3 + $0xe0] sm:$0xff] %vm2393, %v4389
        %4457 = vst.msk [vmem:[#allocation3 + $0xe8] sm:$0xff] %vm2393, %v4391
        %4458 = vst.msk [vmem:[#allocation3 + $0xf0] sm:$0xff] %vm2393, %v4393
        %4459 = vst.msk [vmem:[#allocation3 + $0xf8] sm:$0xff] %vm2393, %v4395
        %v4460 = vld [vmem:[#allocation3] sm:$0xff]
        %v4461 = vld [vmem:[#allocation3 + $0x8] sm:$0xff]
        %v4462 = vld [vmem:[#allocation3 + $0x10] sm:$0xff]
        %v4463 = vld [vmem:[#allocation3 + $0x18] sm:$0xff]
        %v4464 = vld [vmem:[#allocation3 + $0x20] sm:$0xff]
        %v4465 = vld [vmem:[#allocation3 + $0x28] sm:$0xff]
        %v4466 = vld [vmem:[#allocation3 + $0x30] sm:$0xff]
        %v4467 = vld [vmem:[#allocation3 + $0x38] sm:$0xff]
        %v4468 = vld [vmem:[#allocation3 + $0x40] sm:$0xff]
        %v4469 = vld [vmem:[#allocation3 + $0x48] sm:$0xff]
        %v4470 = vld [vmem:[#allocation3 + $0x50] sm:$0xff]
        %v4471 = vld [vmem:[#allocation3 + $0x58] sm:$0xff]
        %v4472 = vld [vmem:[#allocation3 + $0x60] sm:$0xff]
        %v4473 = vld [vmem:[#allocation3 + $0x68] sm:$0xff]
        %v4474 = vld [vmem:[#allocation3 + $0x70] sm:$0xff]
        %v4475 = vld [vmem:[#allocation3 + $0x78] sm:$0xff]
        %v4476 = vld [vmem:[#allocation3 + $0x80] sm:$0xff]
        %v4477 = vld [vmem:[#allocation3 + $0x88] sm:$0xff]
        %v4478 = vld [vmem:[#allocation3 + $0x90] sm:$0xff]
        %v4479 = vld [vmem:[#allocation3 + $0x98] sm:$0xff]
        %v4480 = vld [vmem:[#allocation3 + $0xa0] sm:$0xff]
        %v4481 = vld [vmem:[#allocation3 + $0xa8] sm:$0xff]
        %v4482 = vld [vmem:[#allocation3 + $0xb0] sm:$0xff]
        %v4483 = vld [vmem:[#allocation3 + $0xb8] sm:$0xff]
        %v4484 = vld [vmem:[#allocation3 + $0xc0] sm:$0xff]
        %v4485 = vld [vmem:[#allocation3 + $0xc8] sm:$0xff]
        %v4486 = vld [vmem:[#allocation3 + $0xd0] sm:$0xff]
        %v4487 = vld [vmem:[#allocation3 + $0xd8] sm:$0xff]
        %v4488 = vld [vmem:[#allocation3 + $0xe0] sm:$0xff]
        %v4489 = vld [vmem:[#allocation3 + $0xe8] sm:$0xff]
        %v4490 = vld [vmem:[#allocation3 + $0xf0] sm:$0xff]
        %v4491 = vld [vmem:[#allocation3 + $0xf8] sm:$0xff]
        %v4492 = vld [vmem:[#allocation13] sm:$0xff]
        %v4493 = vld [vmem:[#allocation13 + $0x8] sm:$0xff]
        %v4494 = vld [vmem:[#allocation13 + $0x10] sm:$0xff]
        %v4495 = vld [vmem:[#allocation13 + $0x18] sm:$0xff]
        %v4496 = vld [vmem:[#allocation13 + $0x20] sm:$0xf]
        %v4497 = vld [vmem:[#allocation15] sm:$0x1]
        %v4499 = vlaneseq
        %v4500 = vshrl.u32 %v4499, 7
        %v4501 = vsub.s32 0, %v4500
        %v4502 = vrot.slane %v4497, %v4501
        %v4505 = vsel %vm2470, %v4460, 0
        %v4508 = vsel %vm2470, %v4461, 0
        %v4511 = vsel %vm2470, %v4462, 0
        %v4514 = vsel %vm2470, %v4463, 0
        %v4517 = vsel %vm2470, %v4464, 0
        %v4520 = vsel %vm2470, %v4465, 0
        %v4523 = vsel %vm2470, %v4466, 0
        %v4526 = vsel %vm2470, %v4467, 0
        %v4529 = vsel %vm2470, %v4468, 0
        %v4532 = vsel %vm2470, %v4469, 0
        %v4535 = vsel %vm2470, %v4470, 0
        %v4538 = vsel %vm2470, %v4471, 0
        %v4541 = vsel %vm2470, %v4472, 0
        %v4544 = vsel %vm2470, %v4473, 0
        %v4547 = vsel %vm2470, %v4474, 0
        %v4550 = vsel %vm2470, %v4475, 0
        %v4553 = vsel %vm2470, %v4476, 0
        %v4556 = vsel %vm2470, %v4477, 0
        %v4559 = vsel %vm2470, %v4478, 0
        %v4562 = vsel %vm2470, %v4479, 0
        %v4565 = vsel %vm2470, %v4480, 0
        %v4568 = vsel %vm2470, %v4481, 0
        %v4571 = vsel %vm2470, %v4482, 0
        %v4574 = vsel %vm2470, %v4483, 0
        %v4577 = vsel %vm2470, %v4484, 0
        %v4580 = vsel %vm2470, %v4485, 0
        %v4583 = vsel %vm2470, %v4486, 0
        %v4586 = vsel %vm2470, %v4487, 0
        %v4589 = vsel %vm2470, %v4488, 0
        %v4592 = vsel %vm2470, %v4489, 0
        %v4595 = vsel %vm2470, %v4490, 0
        %v4598 = vsel %vm2470, %v4491, 0
        %v4601 = vsel %vm2567, %v4496, 0
        %4603 = vmatprep.subr.mxu0 0.0
        %4604 = vmatpush1.msra.mxu0 %v4492
        %4605 = vmatprep.subr.mxu0 0.0
        %4606 = vmatpush1.msra.mxu0 %v4493
        %4607 = vmatprep.subr.mxu0 0.0
        %4608 = vmatpush1.msra.mxu0 %v4494
        %4609 = vmatprep.subr.mxu0 0.0
        %4610 = vmatpush1.msra.mxu0 %v4495
        %4611 = vmatprep.subr.mxu0 0.0
        %4612 = vmatpush1.msra.mxu0 %v4601
        %4613 = vmatprep.subr.mxu0 0.0
        %4614 = vmatpush1.msra.mxu0 0.0
        %4615 = vmatprep.subr.mxu0 0.0
        %4616 = vmatpush1.msra.mxu0 0.0
        %4617 = vmatprep.subr.mxu0 0.0
        %4618 = vmatpush1.msra.mxu0 0.0
        %4619 = vmatprep.subr.mxu0 0.0
        %4620 = vmatpush1.msra.mxu0 0.0
        %4621 = vmatprep.subr.mxu0 0.0
        %4622 = vmatpush1.msra.mxu0 0.0
        %4623 = vmatprep.subr.mxu0 0.0
        %4624 = vmatpush1.msra.mxu0 0.0
        %4625 = vmatprep.subr.mxu0 0.0
        %4626 = vmatpush1.msra.mxu0 0.0
        %4627 = vmatprep.subr.mxu0 0.0
        %4628 = vmatpush1.msra.mxu0 0.0
        %4629 = vmatprep.subr.mxu0 0.0
        %4630 = vmatpush1.msra.mxu0 0.0
        %4631 = vmatprep.subr.mxu0 0.0
        %4632 = vmatpush1.msra.mxu0 0.0
        %4633 = vmatprep.subr.mxu0 0.0
        %4634 = vmatpush1.msra.mxu0 0.0
        %4635 = vmatprep.subr.mxu0 0.0
        %4636 = vmatpush1.msra.mxu0 0.0
        %4637 = vmatprep.subr.mxu0 0.0
        %4638 = vmatpush1.msra.mxu0 0.0
        %4639 = vmatprep.subr.mxu0 0.0
        %4640 = vmatpush1.msra.mxu0 0.0
        %4641 = vmatprep.subr.mxu0 0.0
        %4642 = vmatpush1.msra.mxu0 0.0
        %4643 = vmatprep.subr.mxu0 0.0
        %4644 = vmatpush1.msra.mxu0 0.0
        %4645 = vmatprep.subr.mxu0 0.0
        %4646 = vmatpush1.msra.mxu0 0.0
        %4647 = vmatprep.subr.mxu0 0.0
        %4648 = vmatpush1.msra.mxu0 0.0
        %4649 = vmatprep.subr.mxu0 0.0
        %4650 = vmatpush1.msra.mxu0 0.0
        %4651 = vmatprep.subr.mxu0 0.0
        %4652 = vmatpush1.msra.mxu0 0.0
        %4653 = vmatprep.subr.mxu0 0.0
        %4654 = vmatpush1.msra.mxu0 0.0
        %4655 = vmatprep.subr.mxu0 0.0
        %4656 = vmatpush1.msra.mxu0 0.0
        %4657 = vmatprep.subr.mxu0 0.0
        %4658 = vmatpush1.msra.mxu0 0.0
        %4659 = vmatprep.subr.mxu0 0.0
        %4660 = vmatpush1.msra.mxu0 0.0
        %4661 = vmatprep.subr.mxu0 0.0
        %4662 = vmatpush1.msra.mxu0 0.0
        %4663 = vmatprep.subr.mxu0 0.0
        %4664 = vmatpush1.msra.mxu0 0.0
        %4665 = vmatprep.subr.mxu0 0.0
        %4666 = vmatpush1.msra.mxu0 0.0
        %4667 = vmatprep.mubr.f32.mxu0 0.0
        %4668 = vmatmul.mubr.f32.gmra.mrb[0].mxu0 %v4505
        %v4669 = vpop.f32.mrb[0].mxu0
        %v4670 = vadd.f32 %v4502, %v4669
        %v4671 = vpop.f32.mrb[0].mxu0
        %4672 = vmatprep.mubr.f32.mxu0 0.0
        %4673 = vmatmul.mubr.f32.gmra.mrb[0].mxu0 %v4508
        %v4674 = vpop.f32.mrb[0].mxu0
        %v4675 = vadd.f32 %v4502, %v4674
        %v4676 = vpop.f32.mrb[0].mxu0
        %4677 = vmatprep.mubr.f32.mxu0 0.0
        %4678 = vmatmul.mubr.f32.gmra.mrb[0].mxu0 %v4511
        %v4679 = vpop.f32.mrb[0].mxu0
        %v4680 = vadd.f32 %v4502, %v4679
        %v4681 = vpop.f32.mrb[0].mxu0
        %4682 = vmatprep.mubr.f32.mxu0 0.0
        %4683 = vmatmul.mubr.f32.gmra.mrb[0].mxu0 %v4514
        %v4684 = vpop.f32.mrb[0].mxu0
        %v4685 = vadd.f32 %v4502, %v4684
        %v4686 = vpop.f32.mrb[0].mxu0
        %4687 = vmatprep.mubr.f32.mxu0 0.0
        %4688 = vmatmul.mubr.f32.gmra.mrb[0].mxu0 %v4517
        %v4689 = vpop.f32.mrb[0].mxu0
        %v4690 = vadd.f32 %v4502, %v4689
        %v4691 = vpop.f32.mrb[0].mxu0
        %4692 = vmatprep.mubr.f32.mxu0 0.0
        %4693 = vmatmul.mubr.f32.gmra.mrb[0].mxu0 %v4520
        %v4694 = vpop.f32.mrb[0].mxu0
        %v4695 = vadd.f32 %v4502, %v4694
        %v4696 = vpop.f32.mrb[0].mxu0
        %4697 = vmatprep.mubr.f32.mxu0 0.0
        %4698 = vmatmul.mubr.f32.gmra.mrb[0].mxu0 %v4523
        %v4699 = vpop.f32.mrb[0].mxu0
        %v4700 = vadd.f32 %v4502, %v4699
        %v4701 = vpop.f32.mrb[0].mxu0
        %4702 = vmatprep.mubr.f32.mxu0 0.0
        %4703 = vmatmul.mubr.f32.gmra.mrb[0].mxu0 %v4526
        %v4704 = vpop.f32.mrb[0].mxu0
        %v4705 = vadd.f32 %v4502, %v4704
        %v4706 = vpop.f32.mrb[0].mxu0
        %4707 = vmatprep.mubr.f32.mxu0 0.0
        %4708 = vmatmul.mubr.f32.gmra.mrb[0].mxu0 %v4529
        %v4709 = vpop.f32.mrb[0].mxu0
        %v4710 = vadd.f32 %v4502, %v4709
        %v4711 = vpop.f32.mrb[0].mxu0
        %4712 = vmatprep.mubr.f32.mxu0 0.0
        %4713 = vmatmul.mubr.f32.gmra.mrb[0].mxu0 %v4532
        %v4714 = vpop.f32.mrb[0].mxu0
        %v4715 = vadd.f32 %v4502, %v4714
        %v4716 = vpop.f32.mrb[0].mxu0
        %4717 = vmatprep.mubr.f32.mxu0 0.0
        %4718 = vmatmul.mubr.f32.gmra.mrb[0].mxu0 %v4535
        %v4719 = vpop.f32.mrb[0].mxu0
        %v4720 = vadd.f32 %v4502, %v4719
        %v4721 = vpop.f32.mrb[0].mxu0
        %4722 = vmatprep.mubr.f32.mxu0 0.0
        %4723 = vmatmul.mubr.f32.gmra.mrb[0].mxu0 %v4538
        %v4724 = vpop.f32.mrb[0].mxu0
        %v4725 = vadd.f32 %v4502, %v4724
        %v4726 = vpop.f32.mrb[0].mxu0
        %4727 = vmatprep.mubr.f32.mxu0 0.0
        %4728 = vmatmul.mubr.f32.gmra.mrb[0].mxu0 %v4541
        %v4729 = vpop.f32.mrb[0].mxu0
        %v4730 = vadd.f32 %v4502, %v4729
        %v4731 = vpop.f32.mrb[0].mxu0
        %4732 = vmatprep.mubr.f32.mxu0 0.0
        %4733 = vmatmul.mubr.f32.gmra.mrb[0].mxu0 %v4544
        %v4734 = vpop.f32.mrb[0].mxu0
        %v4735 = vadd.f32 %v4502, %v4734
        %v4736 = vpop.f32.mrb[0].mxu0
        %4737 = vmatprep.mubr.f32.mxu0 0.0
        %4738 = vmatmul.mubr.f32.gmra.mrb[0].mxu0 %v4547
        %v4739 = vpop.f32.mrb[0].mxu0
        %v4740 = vadd.f32 %v4502, %v4739
        %v4741 = vpop.f32.mrb[0].mxu0
        %4742 = vmatprep.mubr.f32.mxu0 0.0
        %4743 = vmatmul.mubr.f32.gmra.mrb[0].mxu0 %v4550
        %v4744 = vpop.f32.mrb[0].mxu0
        %v4745 = vadd.f32 %v4502, %v4744
        %v4746 = vpop.f32.mrb[0].mxu0
        %4747 = vmatprep.mubr.f32.mxu0 0.0
        %4748 = vmatmul.mubr.f32.gmra.mrb[0].mxu0 %v4553
        %v4749 = vpop.f32.mrb[0].mxu0
        %v4750 = vadd.f32 %v4502, %v4749
        %v4751 = vpop.f32.mrb[0].mxu0
        %4752 = vmatprep.mubr.f32.mxu0 0.0
        %4753 = vmatmul.mubr.f32.gmra.mrb[0].mxu0 %v4556
        %v4754 = vpop.f32.mrb[0].mxu0
        %v4755 = vadd.f32 %v4502, %v4754
        %v4756 = vpop.f32.mrb[0].mxu0
        %4757 = vmatprep.mubr.f32.mxu0 0.0
        %4758 = vmatmul.mubr.f32.gmra.mrb[0].mxu0 %v4559
        %v4759 = vpop.f32.mrb[0].mxu0
        %v4760 = vadd.f32 %v4502, %v4759
        %v4761 = vpop.f32.mrb[0].mxu0
        %4762 = vmatprep.mubr.f32.mxu0 0.0
        %4763 = vmatmul.mubr.f32.gmra.mrb[0].mxu0 %v4562
        %v4764 = vpop.f32.mrb[0].mxu0
        %v4765 = vadd.f32 %v4502, %v4764
        %v4766 = vpop.f32.mrb[0].mxu0
        %4767 = vmatprep.mubr.f32.mxu0 0.0
        %4768 = vmatmul.mubr.f32.gmra.mrb[0].mxu0 %v4565
        %v4769 = vpop.f32.mrb[0].mxu0
        %v4770 = vadd.f32 %v4502, %v4769
        %v4771 = vpop.f32.mrb[0].mxu0
        %4772 = vmatprep.mubr.f32.mxu0 0.0
        %4773 = vmatmul.mubr.f32.gmra.mrb[0].mxu0 %v4568
        %v4774 = vpop.f32.mrb[0].mxu0
        %v4775 = vadd.f32 %v4502, %v4774
        %v4776 = vpop.f32.mrb[0].mxu0
        %4777 = vmatprep.mubr.f32.mxu0 0.0
        %4778 = vmatmul.mubr.f32.gmra.mrb[0].mxu0 %v4571
        %v4779 = vpop.f32.mrb[0].mxu0
        %v4780 = vadd.f32 %v4502, %v4779
        %v4781 = vpop.f32.mrb[0].mxu0
        %4782 = vmatprep.mubr.f32.mxu0 0.0
        %4783 = vmatmul.mubr.f32.gmra.mrb[0].mxu0 %v4574
        %v4784 = vpop.f32.mrb[0].mxu0
        %v4785 = vadd.f32 %v4502, %v4784
        %v4786 = vpop.f32.mrb[0].mxu0
        %4787 = vmatprep.mubr.f32.mxu0 0.0
        %4788 = vmatmul.mubr.f32.gmra.mrb[0].mxu0 %v4577
        %v4789 = vpop.f32.mrb[0].mxu0
        %v4790 = vadd.f32 %v4502, %v4789
        %v4791 = vpop.f32.mrb[0].mxu0
        %4792 = vmatprep.mubr.f32.mxu0 0.0
        %4793 = vmatmul.mubr.f32.gmra.mrb[0].mxu0 %v4580
        %v4794 = vpop.f32.mrb[0].mxu0
        %v4795 = vadd.f32 %v4502, %v4794
        %v4796 = vpop.f32.mrb[0].mxu0
        %4797 = vmatprep.mubr.f32.mxu0 0.0
        %4798 = vmatmul.mubr.f32.gmra.mrb[0].mxu0 %v4583
        %v4799 = vpop.f32.mrb[0].mxu0
        %v4800 = vadd.f32 %v4502, %v4799
        %v4801 = vpop.f32.mrb[0].mxu0
        %4802 = vmatprep.mubr.f32.mxu0 0.0
        %4803 = vmatmul.mubr.f32.gmra.mrb[0].mxu0 %v4586
        %v4804 = vpop.f32.mrb[0].mxu0
        %v4805 = vadd.f32 %v4502, %v4804
        %v4806 = vpop.f32.mrb[0].mxu0
        %4807 = vmatprep.mubr.f32.mxu0 0.0
        %4808 = vmatmul.mubr.f32.gmra.mrb[0].mxu0 %v4589
        %v4809 = vpop.f32.mrb[0].mxu0
        %v4810 = vadd.f32 %v4502, %v4809
        %v4811 = vpop.f32.mrb[0].mxu0
        %4812 = vmatprep.mubr.f32.mxu0 0.0
        %4813 = vmatmul.mubr.f32.gmra.mrb[0].mxu0 %v4592
        %v4814 = vpop.f32.mrb[0].mxu0
        %v4815 = vadd.f32 %v4502, %v4814
        %v4816 = vpop.f32.mrb[0].mxu0
        %4817 = vmatprep.mubr.f32.mxu0 0.0
        %4818 = vmatmul.mubr.f32.gmra.mrb[0].mxu0 %v4595
        %v4819 = vpop.f32.mrb[0].mxu0
        %v4820 = vadd.f32 %v4502, %v4819
        %v4821 = vpop.f32.mrb[0].mxu0
        %4822 = vmatprep.mubr.f32.mxu0 0.0
        %4823 = vmatmul.mubr.f32.gmra.mrb[0].mxu0 %v4598
        %v4824 = vpop.f32.mrb[0].mxu0
        %v4825 = vadd.f32 %v4502, %v4824
        %v4826 = vpop.f32.mrb[0].mxu0
        %4827 = vdwg.mxu0
        %v4828 = vadd.f32 %v4670, %v626
        %v4829 = vadd.f32 %v4675, %v631
        %v4830 = vadd.f32 %v4680, %v636
        %v4831 = vadd.f32 %v4685, %v641
        %v4832 = vadd.f32 %v4690, %v646
        %v4833 = vadd.f32 %v4695, %v651
        %v4834 = vadd.f32 %v4700, %v656
        %v4835 = vadd.f32 %v4705, %v661
        %v4836 = vadd.f32 %v4710, %v666
        %v4837 = vadd.f32 %v4715, %v671
        %v4838 = vadd.f32 %v4720, %v676
        %v4839 = vadd.f32 %v4725, %v681
        %v4840 = vadd.f32 %v4730, %v686
        %v4841 = vadd.f32 %v4735, %v691
        %v4842 = vadd.f32 %v4740, %v696
        %v4843 = vadd.f32 %v4745, %v701
        %v4844 = vadd.f32 %v4750, %v706
        %v4845 = vadd.f32 %v4755, %v711
        %v4846 = vadd.f32 %v4760, %v716
        %v4847 = vadd.f32 %v4765, %v721
        %v4848 = vadd.f32 %v4770, %v726
        %v4849 = vadd.f32 %v4775, %v731
        %v4850 = vadd.f32 %v4780, %v736
        %v4851 = vadd.f32 %v4785, %v741
        %v4852 = vadd.f32 %v4790, %v746
        %v4853 = vadd.f32 %v4795, %v751
        %v4854 = vadd.f32 %v4800, %v756
        %v4855 = vadd.f32 %v4805, %v761
        %v4856 = vadd.f32 %v4810, %v766
        %v4857 = vadd.f32 %v4815, %v771
        %v4858 = vadd.f32 %v4820, %v776
        %v4859 = vadd.f32 %v4825, %v781
        %4860 = vst.msk [vmem:[%s375] sm:$0xff] %vm376, %v4828
        %4861 = vst.msk [vmem:[%s375 + $0x8] sm:$0xff] %vm376, %v4829
        %4862 = vst.msk [vmem:[%s375 + $0x10] sm:$0xff] %vm376, %v4830
        %4863 = vst.msk [vmem:[%s375 + $0x18] sm:$0xff] %vm376, %v4831
        %4864 = vst.msk [vmem:[%s375 + $0x20] sm:$0xff] %vm376, %v4832
        %4865 = vst.msk [vmem:[%s375 + $0x28] sm:$0xff] %vm376, %v4833
        %4866 = vst.msk [vmem:[%s375 + $0x30] sm:$0xff] %vm376, %v4834
        %4867 = vst.msk [vmem:[%s375 + $0x38] sm:$0xff] %vm376, %v4835
        %4868 = vst.msk [vmem:[%s375 + $0x40] sm:$0xff] %vm376, %v4836
        %4869 = vst.msk [vmem:[%s375 + $0x48] sm:$0xff] %vm376, %v4837
        %4870 = vst.msk [vmem:[%s375 + $0x50] sm:$0xff] %vm376, %v4838
        %4871 = vst.msk [vmem:[%s375 + $0x58] sm:$0xff] %vm376, %v4839
        %4872 = vst.msk [vmem:[%s375 + $0x60] sm:$0xff] %vm376, %v4840
        %4873 = vst.msk [vmem:[%s375 + $0x68] sm:$0xff] %vm376, %v4841
        %4874 = vst.msk [vmem:[%s375 + $0x70] sm:$0xff] %vm376, %v4842
        %4875 = vst.msk [vmem:[%s375 + $0x78] sm:$0xff] %vm376, %v4843
        %4876 = vst.msk [vmem:[%s375 + $0x80] sm:$0xff] %vm376, %v4844
        %4877 = vst.msk [vmem:[%s375 + $0x88] sm:$0xff] %vm376, %v4845
        %4878 = vst.msk [vmem:[%s375 + $0x90] sm:$0xff] %vm376, %v4846
        %4879 = vst.msk [vmem:[%s375 + $0x98] sm:$0xff] %vm376, %v4847
        %4880 = vst.msk [vmem:[%s375 + $0xa0] sm:$0xff] %vm376, %v4848
        %4881 = vst.msk [vmem:[%s375 + $0xa8] sm:$0xff] %vm376, %v4849
        %4882 = vst.msk [vmem:[%s375 + $0xb0] sm:$0xff] %vm376, %v4850
        %4883 = vst.msk [vmem:[%s375 + $0xb8] sm:$0xff] %vm376, %v4851
        %4884 = vst.msk [vmem:[%s375 + $0xc0] sm:$0xff] %vm376, %v4852
        %4885 = vst.msk [vmem:[%s375 + $0xc8] sm:$0xff] %vm376, %v4853
        %4886 = vst.msk [vmem:[%s375 + $0xd0] sm:$0xff] %vm376, %v4854
        %4887 = vst.msk [vmem:[%s375 + $0xd8] sm:$0xff] %vm376, %v4855
        %4888 = vst.msk [vmem:[%s375 + $0xe0] sm:$0xff] %vm376, %v4856
        %4889 = vst.msk [vmem:[%s375 + $0xe8] sm:$0xff] %vm376, %v4857
        %4890 = vst.msk [vmem:[%s375 + $0xf0] sm:$0xff] %vm376, %v4858
        %4891 = vst.msk [vmem:[%s375 + $0xf8] sm:$0xff] %vm376, %v4859
        %s4892 = sand.u32 %s187, 1
        %s4893 = scalar_lea.sflag [#allocation6], %s4892
        %s4894 = sand.u32 %s187, 1
        %s4895 = smul.addr %s4894, 256
        %s4896 = scalar_lea.vmem [#allocation16], %s4895
        // Predicated region
        $region77: #{tpu_custom_call.1} parent=47 // pred_check
          %p4897 = pneg %p197
        $region78: #{tpu_custom_call.1} parent=47 // pred_check_branch
          %4899 = sbr.rel (%p4897) target = $region80
        $region79: #{tpu_custom_call.1} parent=47 // pred_region
          %s4901 = ssub.s32 4096, 4096
          %4902 = vsyncadd %s4893, %s4901
          %s4903 = smul.addr %s27, 32
          %s4904 = smul.addr %s4903, 128
          %s4905 = scalar_lea.hbm %s7, %s4904
          %s4906 = sshll.u32 %s4896, 4
          %s4907 = int_to_ptr.vmem [resolvable:$true] %s4906
          %4912 = dma.vmem_to_hbm [thread:$0]  %s4907, 4096, %s4905, %s4893, 128, 128, 8
        $region80: #{tpu_custom_call.1} parent=47 // pred_fallthru
          _
      $region48: #{tpu_custom_call.1} parent=5 // pred_fallthru
        _
      %p4913 = scmp.le.s32.totalorder 2, %s22
      // Predicated region
      $region81: #{tpu_custom_call.1} parent=5 // pred_check
        %p4914 = pneg %p4913
      $region82: #{tpu_custom_call.1} parent=5 // pred_check_branch
        %4916 = sbr.rel (%p4914) target = $region84
      $region83: #{tpu_custom_call.1} parent=5 // pred_region
        %s4917 = ssub.s32 %s22, 2
        // Predicated region
        $region85: #{tpu_custom_call.1} parent=83 // pred_check
          %p4918 = pneg %p203
        $region86: #{tpu_custom_call.1} parent=83 // pred_check_branch
          %4920 = sbr.rel (%p4918) target = $region88
        $region87: #{tpu_custom_call.1} parent=83 // pred_region
          %s4921 = sand.u32 %s188, 1
          %s4922 = scalar_lea.sflag [#allocation6], %s4921
          %s4923 = sand.u32 %s188, 1
          %s4924 = smul.addr %s4923, 256
          %s4925 = scalar_lea.vmem [#allocation16], %s4924
          %4926 = dma.done %s4922, 4096
        $region88: #{tpu_custom_call.1} parent=83 // pred_fallthru
          _
      $region84: #{tpu_custom_call.1} parent=5 // pred_fallthru
        _
    $region6: #{tpu_custom_call.1} parent=1 // loop_footer
      %s26 = sadd.s32 1, %s22
    $region7: #{tpu_custom_call.1} parent=1 // loop_footer_branch
      %21 = sbr.rel target = $region3
    $region8: #{tpu_custom_call.1} parent=1 // loop_exit
      _
    %4927 = vsyncpa [#allocation5], 1
    %s4928 = scalar_lea.sflag [#allocation5], 1
    %4929 = vsyncpa %s4928, 1
    %4930 = vsyncpa [#allocation8], 1
    %4931 = vsyncpa [#allocation11], 1
    %4932 = vsyncpa [#allocation14], 1
    %4933 = vsyncpa [#allocation6], 1
    %s4934 = scalar_lea.sflag [#allocation6], 1
    %4935 = vsyncpa %s4934, 1

</llo_original>
